<compile_context>
chip_gen: v5e
topology: v5e:2x2
jax: 0.10.0
libtpu: 0.0.40
codegen_flags: <defaults>
</compile_context>

<pallas_src>
import jax
import jax.numpy as jnp
from jax.experimental import pallas as pl
from jax.experimental.pallas import tpu as pltpu

# Operand dtype for MXU matmuls (accumulation stays f32).
DOT_DT = jnp.bfloat16

# ----------------------------- small config -----------------------------
CFG = dict(
    feature_dimension=12,
    period_embedding_dim=4,
    period_levels=64,
    feature_conditioning_dim=32,
    feature_conv_kernel_size=3,
    frame_size=4,
    signal_levels=256,
    signal_embedding_dim=8,
    gru_a_units=32,
    gru_b_units=16,
    output_levels=32,
    num_signals=3,          # len(input_layout['signals'])
)
CFG["feature_channels"] = CFG["feature_dimension"] + CFG["period_embedding_dim"]
CFG["gru_a_input_dim"] = (CFG["num_signals"] * CFG["signal_embedding_dim"]
                          + CFG["feature_conditioning_dim"])
CFG["gru_b_input_dim"] = CFG["gru_a_units"] + CFG["feature_conditioning_dim"]


# ------------------------------ fused kernel ------------------------------
def lpcnet_kernel(x_ref, c1w_ref, c1b_ref, c2w_ref, c2b_ref,
                  d1w_ref, d1b_ref, d2w_ref, d2b_ref,
                  sig_ref, ha0_ref, hb0_ref,
                  wia_sig_ref, wia_c_ref, bia_ref, wha_ref, bha_ref,
                  wib_a_ref, wib_c_ref, bib_ref, whb_ref, bhb_ref,
                  fw_ref, fb_ref, ab_ref,
                  logp_ref, ha_out_ref, hb_out_ref,
                  gia_sc, ha_sc, gib_sc, hb_sc):
    """One batch element per grid step: frame-rate prologue -> GRU A -> GRU B -> DualFC."""
    f32 = jnp.float32
    nF = gia_sc.shape[0]                 # conditioning frames
    Ha = ha0_ref.shape[-1]
    Hb = hb0_ref.shape[-1]
    FS = ha_sc.shape[1] // Ha            # samples per frame
    O = logp_ref.shape[-1] // FS         # output levels

    # ---------------- frame-rate network (prologue; `c` stays in registers) ----------------
    def conv_valid_tanh(h, w_ref, b_ref):
        # 'valid' conv as K accumulated shifted matmuls (no im2col lane-offset concat).
        K = w_ref.shape[0]
        Tout = h.shape[0] - K + 1
        acc = jnp.dot(h[0:Tout, :].astype(DOT_DT), w_ref[0], preferred_element_type=f32)
        for k in range(1, K):
            acc += jnp.dot(h[k:k + Tout, :].astype(DOT_DT), w_ref[k],
                           preferred_element_type=f32)
        return jnp.tanh(acc + b_ref[...])

    def dense_tanh(h, w_ref, b_ref):
        return jnp.tanh(jnp.dot(h.astype(DOT_DT), w_ref[...],
                                preferred_element_type=f32) + b_ref[...])

    h = conv_valid_tanh(x_ref[0], c1w_ref, c1b_ref)     # (Tf-K+1, D)
    h = conv_valid_tanh(h, c2w_ref, c2b_ref)            # (nF, D)
    h = dense_tanh(h, d1w_ref, d1b_ref)
    c = dense_tanh(h, d2w_ref, d2b_ref)                 # (nF, D) conditioning, frame rate

    # ---------- pre-loop: every input-gate contribution as a few big bf16 matmuls ----------
    cb = c.astype(DOT_DT)
    sig = sig_ref[0].astype(DOT_DT)                     # (nF, FS*SE) frame-packed embeddings

    # GRU-A input gates, frame-packed & gate-concatenated (bias folded in):
    #   row f = [ step0 (r|z|n) | step1 (r|z|n) | ... ]   (FS*3Ha lanes)
    gia_sc[...] = (jnp.dot(sig, wia_sig_ref[...], preferred_element_type=f32)
                   + jnp.dot(cb, wia_c_ref[...], preferred_element_type=f32)
                   + bia_ref[...])

    # conditioning part of GRU-B input gates (ha-driven part added after the GRU-A pass).
    gib_sc[...] = (jnp.dot(cb, wib_c_ref[...], preferred_element_type=f32)
                   + bib_ref[...])

    # ------ GRU A: only ONE fused (1,Ha)x(Ha,3Ha) bf16 dot on the serial chain per step ------
    wha = wha_ref[...]                                  # (Ha, 3Ha) bf16, loop-invariant
    bha = bha_ref[...]                                  # (1, 3Ha) f32

    def gru_a_frame(f, ha):
        row = gia_sc[pl.ds(f, 1), :]                    # (1, FS*3Ha) lane-dense frame load
        outs = []
        for i in range(FS):                             # statically unrolled frame steps
            g = row[:, i * 3 * Ha:(i + 1) * 3 * Ha]     # static lane slice: this step's gates
            a = jnp.dot(ha.astype(DOT_DT), wha, preferred_element_type=f32) + bha
            r = jax.nn.sigmoid(g[:, :Ha] + a[:, :Ha])
            z = jax.nn.sigmoid(g[:, Ha:2 * Ha] + a[:, Ha:2 * Ha])
            n = jnp.tanh(g[:, 2 * Ha:] + r * a[:, 2 * Ha:])
            ha = (1.0 - z) * n + z * ha
            outs.append(ha)
        # one lane-dense (1, FS*Ha) store per frame (no narrow masked stores)
        ha_sc[pl.ds(f, 1), :] = jnp.concatenate(outs, axis=-1)
        return ha

    ha_f = jax.lax.fori_loop(0, nF, gru_a_frame, ha0_ref[0])

    # ---- GRU-B input gates from GRU-A outputs: ONE batched matmul over the whole sequence ----
    # the block-diagonal weight keeps everything in the frame-packed layout (no relayout).
    gib_sc[...] += jnp.dot(ha_sc[...].astype(DOT_DT), wib_a_ref[...],
                           preferred_element_type=f32)

    # --------- GRU B: only its own (1,Hb)x(Hb,3Hb) recurrent bf16 dot per step ---------
    whb = whb_ref[...]                                  # (Hb, 3Hb) bf16
    bhb = bhb_ref[...]                                  # (1, 3Hb) f32

    def gru_b_frame(f, hb):
        row = gib_sc[pl.ds(f, 1), :]                    # (1, FS*3Hb)
        outs = []
        for i in range(FS):
            g = row[:, i * 3 * Hb:(i + 1) * 3 * Hb]
            a = jnp.dot(hb.astype(DOT_DT), whb, preferred_element_type=f32) + bhb
            r = jax.nn.sigmoid(g[:, :Hb] + a[:, :Hb])
            z = jax.nn.sigmoid(g[:, Hb:2 * Hb] + a[:, Hb:2 * Hb])
            n = jnp.tanh(g[:, 2 * Hb:] + r * a[:, 2 * Hb:])
            hb = (1.0 - z) * n + z * hb
            outs.append(hb)
        hb_sc[pl.ds(f, 1), :] = jnp.concatenate(outs, axis=-1)   # (1, FS*Hb) dense store
        return hb

    hb_f = jax.lax.fori_loop(0, nF, gru_b_frame, hb0_ref[0])

    # -------- post-loop: fused DualFC + log_softmax, frame-packed (block-diag weight) --------
    y = (jnp.dot(hb_sc[...].astype(DOT_DT), fw_ref[...], preferred_element_type=f32)
         + fb_ref[...])                                 # (nF, FS*2O)
    y = ab_ref[...] * jnp.tanh(y)
    lps = []
    for i in range(FS):
        logits = y[:, 2 * O * i:2 * O * i + O] + y[:, 2 * O * i + O:2 * O * (i + 1)]
        m = jnp.max(logits, axis=-1, keepdims=True)
        lse = jnp.log(jnp.sum(jnp.exp(logits - m), axis=-1, keepdims=True))
        lps.append(logits - m - lse)
    logp_ref[0] = jnp.concatenate(lps, axis=-1)         # (nF, FS*O) lane-dense store
    ha_out_ref[0] = ha_f
    hb_out_ref[0] = hb_f


# ----------------------------- parameters -----------------------------
def init_params(key, cfg):
    D = cfg["feature_conditioning_dim"]
    K = cfg["feature_conv_kernel_size"]
    Cin = cfg["feature_channels"]
    Ha = cfg["gru_a_units"]
    Hb = cfg["gru_b_units"]
    O = cfg["output_levels"]
    SE = cfg["num_signals"] * cfg["signal_embedding_dim"]
    ks = jax.random.split(key, 22)

    def w(k, shape, s=0.1):
        return (s * jax.random.normal(k, shape)).astype(jnp.float32)

    p = {}
    p["period_embedding"] = w(ks[0], (cfg["period_levels"], cfg["period_embedding_dim"]))
    p["signal_embedding"] = w(ks[1], (cfg["signal_levels"], cfg["signal_embedding_dim"]))
    # conv weights stored (K, C_in, C_out); p["conv1_w"][k, c, d] == torch weight[d, c, k].
    p["conv1_w"] = w(ks[2], (K, Cin, D)); p["conv1_b"] = w(ks[3], (1, D), 0.01)
    p["conv2_w"] = w(ks[4], (K, D, D));   p["conv2_b"] = w(ks[5], (1, D), 0.01)
    # dense weights stored (in, out)  (== torch Linear weight transposed)
    p["dense1_w"] = w(ks[6], (D, D)); p["dense1_b"] = w(ks[7], (1, D), 0.01)
    p["dense2_w"] = w(ks[8], (D, D)); p["dense2_b"] = w(ks[9], (1, D), 0.01)
    # GRU A: gate axis 0 = (r, z, n); input weights split into the signal part (first SE
    # input rows) and the conditioning part (next D rows).
    p["gru_a_wi_sig"] = w(ks[10], (3, SE, Ha))
    p["gru_a_wi_c"] = w(ks[11], (3, D, Ha))
    p["gru_a_bi"] = w(ks[12], (3, 1, Ha), 0.01)
    p["gru_a_wh"] = w(ks[13], (3, Ha, Ha))
    p["gru_a_bh"] = w(ks[14], (3, 1, Ha), 0.01)
    # GRU B: input = [gru_a output (Ha rows); conditioning (D rows)]
    p["gru_b_wi_a"] = w(ks[15], (3, Ha, Hb))
    p["gru_b_wi_c"] = w(ks[16], (3, D, Hb))
    p["gru_b_bi"] = w(ks[17], (3, 1, Hb), 0.01)
    p["gru_b_wh"] = w(ks[18], (3, Hb, Hb))
    p["gru_b_bh"] = w(ks[19], (3, 1, Hb), 0.01)
    # DualFC fused: columns [dense1 | dense2], scales [alpha | beta]
    p["fc_w"] = w(ks[20], (Hb, 2 * O))
    p["fc_b"] = w(ks[21], (1, 2 * O), 0.01)
    p["fc_ab"] = jnp.ones((1, 2 * O), jnp.float32)
    return p


def prepare_kernel_params(p, cfg):
    """Host-side weight prep: gate concatenation (r|z|n), per-frame block-diagonal /
    column-tiled layouts (frame-packed matmuls need no in-kernel relayout), and bf16
    pre-cast of every matmul weight (biases stay f32)."""
    FS = cfg["frame_size"]

    def cat_g(wi):                 # (3, in, out) -> (in, 3*out)
        return jnp.concatenate([wi[0], wi[1], wi[2]], axis=-1)

    def cat_b(bi):                 # (3, 1, out) -> (1, 3*out)
        return jnp.concatenate([bi[0], bi[1], bi[2]], axis=-1)

    def blk_diag(wm, n):           # per-frame block-diagonal: (r, c) -> (n*r, n*c)
        r, c = wm.shape
        out = jnp.zeros((n * r, n * c), wm.dtype)
        for i in range(n):
            out = out.at[i * r:(i + 1) * r, i * c:(i + 1) * c].set(wm)
        return out

    def tile_c(wm, n):             # frame-rate operand reused for all FS steps of a frame
        return jnp.concatenate([wm] * n, axis=-1)

    wia_sig = cat_g(p["gru_a_wi_sig"])
    wia_c = cat_g(p["gru_a_wi_c"])
    wib_a = cat_g(p["gru_b_wi_a"])
    wib_c = cat_g(p["gru_b_wi_c"])

    return dict(
        conv1_w=p["conv1_w"].astype(DOT_DT), conv1_b=p["conv1_b"],
        conv2_w=p["conv2_w"].astype(DOT_DT), conv2_b=p["conv2_b"],
        dense1_w=p["dense1_w"].astype(DOT_DT), dense1_b=p["dense1_b"],
        dense2_w=p["dense2_w"].astype(DOT_DT), dense2_b=p["dense2_b"],
        wia_sig_blk=blk_diag(wia_sig, FS).astype(DOT_DT),   # (FS*SE, FS*3Ha)
        wia_c_rep=tile_c(wia_c, FS).astype(DOT_DT),         # (D, FS*3Ha)
        bia_rep=tile_c(cat_b(p["gru_a_bi"]), FS),           # (1, FS*3Ha)
        wha_cat=cat_g(p["gru_a_wh"]).astype(DOT_DT),        # (Ha, 3Ha)
        bha_cat=cat_b(p["gru_a_bh"]),                       # (1, 3Ha)
        wib_a_blk=blk_diag(wib_a, FS).astype(DOT_DT),       # (FS*Ha, FS*3Hb)
        wib_c_rep=tile_c(wib_c, FS).astype(DOT_DT),         # (D, FS*3Hb)
        bib_rep=tile_c(cat_b(p["gru_b_bi"]), FS),           # (1, FS*3Hb)
        whb_cat=cat_g(p["gru_b_wh"]).astype(DOT_DT),        # (Hb, 3Hb)
        bhb_cat=cat_b(p["gru_b_bh"]),                       # (1, 3Hb)
        fw_blk=blk_diag(p["fc_w"], FS).astype(DOT_DT),      # (FS*Hb, FS*2O)
        fb_rep=tile_c(p["fc_b"], FS),                       # (1, FS*2O)
        ab_rep=tile_c(p["fc_ab"], FS),                      # (1, FS*2O)
    )


# ------------------------------ forward ------------------------------
def make_forward(cfg):
    D = cfg["feature_conditioning_dim"]
    K = cfg["feature_conv_kernel_size"]
    Cin = cfg["feature_channels"]
    O = cfg["output_levels"]
    FS = cfg["frame_size"]
    Ha = cfg["gru_a_units"]
    Hb = cfg["gru_b_units"]
    SE = cfg["num_signals"] * cfg["signal_embedding_dim"]

    # lane-dense log-prob packing invariant (frame row = FS*O lanes)
    assert (FS * O) % 128 == 0, "frame_size * output_levels must be a multiple of 128"

    def batch_spec(shape):         # per-batch-element block (grid axis 0 = batch)
        return pl.BlockSpec((1,) + shape, lambda b: (b,) + (0,) * len(shape))

    def full2(shape):              # full 2-D weight, resident across the batch grid
        return pl.BlockSpec(shape, lambda b: (0, 0))

    def full3(shape):
        return pl.BlockSpec(shape, lambda b: (0, 0, 0))

    @jax.jit
    def forward(params, features, periods, signals, gru_a_state, gru_b_state):
        B, Tf, _ = features.shape
        nF = Tf - 2 * (K - 1)              # frames left after two 'valid' convs
        T = signals.shape[1]
        assert T == nF * FS, "signals length must equal frames * frame_size"

        kw = prepare_kernel_params(params, cfg)

        # embedding gathers on host (XLA); everything else runs in the fused kernel.
        per_emb = jnp.take(params["period_embedding"], periods[..., 0], axis=0)
        x = jnp.concatenate([features.astype(jnp.float32), per_emb], axis=-1)   # (B,Tf,Cin)

        sig_emb = jnp.take(params["signal_embedding"], signals, axis=0).reshape(B, T, SE)
        sig_packed = sig_emb.reshape(B, nF, FS * SE)          # frame-packed (host reshape)

        ha0 = gru_a_state[0].reshape(B, 1, Ha).astype(jnp.float32)
        hb0 = gru_b_state[0].reshape(B, 1, Hb).astype(jnp.float32)

        in_specs = [
            batch_spec((Tf, Cin)),              # x
            full3((K, Cin, D)),                 # conv1_w
            full2((1, D)),                      # conv1_b
            full3((K, D, D)),                   # conv2_w
            full2((1, D)),                      # conv2_b
            full2((D, D)),                      # dense1_w
            full2((1, D)),                      # dense1_b
            full2((D, D)),                      # dense2_w
            full2((1, D)),                      # dense2_b
            batch_spec((nF, FS * SE)),          # sig_packed
            batch_spec((1, Ha)),                # ha0
            batch_spec((1, Hb)),                # hb0
            full2((FS * SE, FS * 3 * Ha)),      # wia_sig_blk
            full2((D, FS * 3 * Ha)),            # wia_c_rep
            full2((1, FS * 3 * Ha)),            # bia_rep
            full2((Ha, 3 * Ha)),                # wha_cat
            full2((1, 3 * Ha)),                 # bha_cat
            full2((FS * Ha, FS * 3 * Hb)),      # wib_a_blk
            full2((D, FS * 3 * Hb)),            # wib_c_rep
            full2((1, FS * 3 * Hb)),            # bib_rep
            full2((Hb, 3 * Hb)),                # whb_cat
            full2((1, 3 * Hb)),                 # bhb_cat
            full2((FS * Hb, FS * 2 * O)),       # fw_blk
            full2((1, FS * 2 * O)),             # fb_rep
            full2((1, FS * 2 * O)),             # ab_rep
        ]
        out_specs = (
            batch_spec((nF, FS * O)),           # packed log-probs
            batch_spec((1, Ha)),                # final GRU-A state (streaming use)
            batch_spec((1, Hb)),                # final GRU-B state
        )
        out_shape = (
            jax.ShapeDtypeStruct((B, nF, FS * O), jnp.float32),
            jax.ShapeDtypeStruct((B, 1, Ha), jnp.float32),
            jax.ShapeDtypeStruct((B, 1, Hb), jnp.float32),
        )
        scratch_shapes = [
            pltpu.VMEM((nF, FS * 3 * Ha), jnp.float32),   # GRU-A input gates, frame-packed
            pltpu.VMEM((nF, FS * Ha), jnp.float32),       # staged GRU-A outputs (lane-dense)
            pltpu.VMEM((nF, FS * 3 * Hb), jnp.float32),   # GRU-B input gates, frame-packed
            pltpu.VMEM((nF, FS * Hb), jnp.float32),       # staged GRU-B outputs (lane-dense)
        ]

        logp_packed, _ha_f, _hb_f = pl.pallas_call(
            lpcnet_kernel,
            grid=(B,),
            out_shape=out_shape,
            in_specs=in_specs,
            out_specs=out_specs,
            scratch_shapes=scratch_shapes,
            compiler_params=pltpu.CompilerParams(
                dimension_semantics=("parallel",),          # batch across TCs on v7x
                vmem_limit_bytes=32 * 1024 * 1024),
        )(x,
          kw["conv1_w"], kw["conv1_b"], kw["conv2_w"], kw["conv2_b"],
          kw["dense1_w"], kw["dense1_b"], kw["dense2_w"], kw["dense2_b"],
          sig_packed, ha0, hb0,
          kw["wia_sig_blk"], kw["wia_c_rep"], kw["bia_rep"], kw["wha_cat"], kw["bha_cat"],
          kw["wib_a_blk"], kw["wib_c_rep"], kw["bib_rep"], kw["whb_cat"], kw["bhb_cat"],
          kw["fw_blk"], kw["fb_rep"], kw["ab_rep"])

        # lane-dense (B, frames, FS*O) -> (B, T, O); final GRU states are available as
        # extra kernel outputs (dropped to match the PyTorch forward()).
        return logp_packed.reshape(B, T, O)

    return forward


# ----------------------- pure-JAX reference (f32) -----------------------
def reference_forward(params, features, periods, signals, gru_a_state, gru_b_state, cfg):
    FS = cfg["frame_size"]
    O = cfg["output_levels"]
    per_emb = params["period_embedding"][periods[..., 0]]
    x = jnp.concatenate([features, per_emb], axis=-1)
    B = x.shape[0]

    def conv_valid(h, w, b):       # w: (K, Cin, D)
        K = w.shape[0]
        Tout = h.shape[1] - K + 1
        y = sum(h[:, k:k + Tout, :] @ w[k] for k in range(K)) + b
        return jnp.tanh(y)

    h = conv_valid(x, params["conv1_w"], params["conv1_b"])
    h = conv_valid(h, params["conv2_w"], params["conv2_b"])
    h = jnp.tanh(h @ params["dense1_w"] + params["dense1_b"])
    c = jnp.tanh(h @ params["dense2_w"] + params["dense2_b"])

    T = signals.shape[1]
    sig_emb = params["signal_embedding"][signals].reshape(B, T, -1)
    c_up = jnp.repeat(c, FS, axis=1)
    ha, hb = gru_a_state[0], gru_b_state[0]

    def gru_step(x_parts, w_parts, bi, h_prev, wh, bh):
        gi = [sum(xp @ wp[g] for xp, wp in zip(x_parts, w_parts)) + bi[g] for g in range(3)]
        gh = [h_prev @ wh[g] + bh[g] for g in range(3)]
        r = jax.nn.sigmoid(gi[0] + gh[0])
        z = jax.nn.sigmoid(gi[1] + gh[1])
        n = jnp.tanh(gi[2] + r * gh[2])
        return (1.0 - z) * n + z * h_prev

    outs = []
    for t in range(T):
        xs, xc = sig_emb[:, t], c_up[:, t]
        ha = gru_step([xs, xc], [params["gru_a_wi_sig"], params["gru_a_wi_c"]],
                      params["gru_a_bi"], ha, params["gru_a_wh"], params["gru_a_bh"])
        hb = gru_step([ha, xc], [params["gru_b_wi_a"], params["gru_b_wi_c"]],
                      params["gru_b_bi"], hb, params["gru_b_wh"], params["gru_b_bh"])
        y = params["fc_ab"] * jnp.tanh(hb @ params["fc_w"] + params["fc_b"])
        logits = y[:, :O] + y[:, O:]
        outs.append(jax.nn.log_softmax(logits, axis=-1))
    return jnp.stack(outs, axis=1)


# -------------------------------- main --------------------------------
if __name__ == "__main__":
    key = jax.random.PRNGKey(0)
    kpar, kf, kper, ksig = jax.random.split(key, 4)

    params = init_params(kpar, CFG)

    B = 2
    nF = 4                                                   # conditioning frames
    Tf = nF + 2 * (CFG["feature_conv_kernel_size"] - 1)      # = 8 feature frames
    Tsig = nF * CFG["frame_size"]                            # = 16 samples

    features = jax.random.normal(kf, (B, Tf, CFG["feature_dimension"]), jnp.float32)
    periods = jax.random.randint(kper, (B, Tf, 1), 0, CFG["period_levels"], jnp.int32)
    signals = jax.random.randint(ksig, (B, Tsig, CFG["num_signals"]), 0,
                                 CFG["signal_levels"], jnp.int32)
    gru_a_state = jnp.zeros((1, B, CFG["gru_a_units"]), jnp.float32)
    gru_b_state = jnp.zeros((1, B, CFG["gru_b_units"]), jnp.float32)

    forward = make_forward(CFG)
    log_probs = forward(params, features, periods, signals, gru_a_state, gru_b_state)
    log_probs = jax.block_until_ready(log_probs)

    assert log_probs.shape == (B, Tsig, CFG["output_levels"])
    assert bool(jnp.all(jnp.isfinite(log_probs)))
    # log_softmax sanity: rows sum to ~1 in prob space
    assert bool(jnp.allclose(jnp.sum(jnp.exp(log_probs), axis=-1), 1.0, atol=1e-4))

    # numerical check vs pure-JAX f32 reference (loose tol: bf16 MXU operands, incl.
    # the recurrent dots; re-check tolerance before scaling T).
    ref = reference_forward(params, features, periods, signals,
                            gru_a_state, gru_b_state, CFG)
    err = float(jnp.max(jnp.abs(log_probs - ref)))
    assert err < 5e-2, err

    print("KERNEL_OK")
</pallas_src>

<mosaic_0001>
module attributes {stable_mosaic.version = 11 : i64} {
  func.func @lpcnet_kernel(%arg0: i32, %arg1: memref<1x8x16xf32, #tpu.memory_space<vmem>>, %arg2: memref<3x16x32xbf16, #tpu.memory_space<vmem>>, %arg3: memref<1x32xf32, #tpu.memory_space<vmem>>, %arg4: memref<3x32x32xbf16, #tpu.memory_space<vmem>>, %arg5: memref<1x32xf32, #tpu.memory_space<vmem>>, %arg6: memref<32x32xbf16, #tpu.memory_space<vmem>>, %arg7: memref<1x32xf32, #tpu.memory_space<vmem>>, %arg8: memref<32x32xbf16, #tpu.memory_space<vmem>>, %arg9: memref<1x32xf32, #tpu.memory_space<vmem>>, %arg10: memref<1x4x96xf32, #tpu.memory_space<vmem>>, %arg11: memref<1x1x32xf32, #tpu.memory_space<vmem>>, %arg12: memref<1x1x16xf32, #tpu.memory_space<vmem>>, %arg13: memref<96x384xbf16, #tpu.memory_space<vmem>>, %arg14: memref<32x384xbf16, #tpu.memory_space<vmem>>, %arg15: memref<1x384xf32, #tpu.memory_space<vmem>>, %arg16: memref<32x96xbf16, #tpu.memory_space<vmem>>, %arg17: memref<1x96xf32, #tpu.memory_space<vmem>>, %arg18: memref<128x192xbf16, #tpu.memory_space<vmem>>, %arg19: memref<32x192xbf16, #tpu.memory_space<vmem>>, %arg20: memref<1x192xf32, #tpu.memory_space<vmem>>, %arg21: memref<16x48xbf16, #tpu.memory_space<vmem>>, %arg22: memref<1x48xf32, #tpu.memory_space<vmem>>, %arg23: memref<64x256xbf16, #tpu.memory_space<vmem>>, %arg24: memref<1x256xf32, #tpu.memory_space<vmem>>, %arg25: memref<1x256xf32, #tpu.memory_space<vmem>>, %arg26: memref<1x4x128xf32, #tpu.memory_space<vmem>>, %arg27: memref<1x1x32xf32, #tpu.memory_space<vmem>>, %arg28: memref<1x1x16xf32, #tpu.memory_space<vmem>>, %arg29: memref<4x384xf32, #tpu.memory_space<vmem>>, %arg30: memref<4x128xf32, #tpu.memory_space<vmem>>, %arg31: memref<4x192xf32, #tpu.memory_space<vmem>>, %arg32: memref<4x64xf32, #tpu.memory_space<vmem>>) attributes {dimension_semantics = [#tpu.dimension_semantics<parallel>], iteration_bounds = array<i64: 2>, scalar_prefetch = 0 : i64, scratch_operands = 4 : i64, tpu.core_type = #tpu.core_type<tc>, window_params = [{transform_indices = @transform_0, window_bounds = array<i64: 1, 8, 16>}, {pipeline_mode = #tpu.pipeline_mode<synchronous>, transform_indices = @transform_1, window_bounds = array<i64: 3, 16, 32>}, {pipeline_mode = #tpu.pipeline_mode<synchronous>, transform_indices = @transform_2, window_bounds = array<i64: 1, 32>}, {pipeline_mode = #tpu.pipeline_mode<synchronous>, transform_indices = @transform_3, window_bounds = array<i64: 3, 32, 32>}, {pipeline_mode = #tpu.pipeline_mode<synchronous>, transform_indices = @transform_4, window_bounds = array<i64: 1, 32>}, {pipeline_mode = #tpu.pipeline_mode<synchronous>, transform_indices = @transform_5, window_bounds = array<i64: 32, 32>}, {pipeline_mode = #tpu.pipeline_mode<synchronous>, transform_indices = @transform_6, window_bounds = array<i64: 1, 32>}, {pipeline_mode = #tpu.pipeline_mode<synchronous>, transform_indices = @transform_7, window_bounds = array<i64: 32, 32>}, {pipeline_mode = #tpu.pipeline_mode<synchronous>, transform_indices = @transform_8, window_bounds = array<i64: 1, 32>}, {transform_indices = @transform_9, window_bounds = array<i64: 1, 4, 96>}, {transform_indices = @transform_10, window_bounds = array<i64: 1, 1, 32>}, {transform_indices = @transform_11, window_bounds = array<i64: 1, 1, 16>}, {pipeline_mode = #tpu.pipeline_mode<synchronous>, transform_indices = @transform_12, window_bounds = array<i64: 96, 384>}, {pipeline_mode = #tpu.pipeline_mode<synchronous>, transform_indices = @transform_13, window_bounds = array<i64: 32, 384>}, {pipeline_mode = #tpu.pipeline_mode<synchronous>, transform_indices = @transform_14, window_bounds = array<i64: 1, 384>}, {pipeline_mode = #tpu.pipeline_mode<synchronous>, transform_indices = @transform_15, window_bounds = array<i64: 32, 96>}, {pipeline_mode = #tpu.pipeline_mode<synchronous>, transform_indices = @transform_16, window_bounds = array<i64: 1, 96>}, {pipeline_mode = #tpu.pipeline_mode<synchronous>, transform_indices = @transform_17, window_bounds = array<i64: 128, 192>}, {pipeline_mode = #tpu.pipeline_mode<synchronous>, transform_indices = @transform_18, window_bounds = array<i64: 32, 192>}, {pipeline_mode = #tpu.pipeline_mode<synchronous>, transform_indices = @transform_19, window_bounds = array<i64: 1, 192>}, {pipeline_mode = #tpu.pipeline_mode<synchronous>, transform_indices = @transform_20, window_bounds = array<i64: 16, 48>}, {pipeline_mode = #tpu.pipeline_mode<synchronous>, transform_indices = @transform_21, window_bounds = array<i64: 1, 48>}, {pipeline_mode = #tpu.pipeline_mode<synchronous>, transform_indices = @transform_22, window_bounds = array<i64: 64, 256>}, {pipeline_mode = #tpu.pipeline_mode<synchronous>, transform_indices = @transform_23, window_bounds = array<i64: 1, 256>}, {pipeline_mode = #tpu.pipeline_mode<synchronous>, transform_indices = @transform_24, window_bounds = array<i64: 1, 256>}, {transform_indices = @transform_25, window_bounds = array<i64: 1, 4, 128>}, {transform_indices = @transform_26, window_bounds = array<i64: 1, 1, 32>}, {transform_indices = @transform_27, window_bounds = array<i64: 1, 1, 16>}]} {
    %c0 = arith.constant 0 : index
    %c0_0 = arith.constant 0 : index
    %c0_1 = arith.constant 0 : index
    %0 = vector.load %arg1[%c0, %c0_0, %c0_1] : memref<1x8x16xf32, #tpu.memory_space<vmem>>, vector<1x8x16xf32>
    %1 = vector.shape_cast %0 : vector<1x8x16xf32> to vector<8x16xf32>
    %2 = vector.extract_strided_slice %1 {offsets = [0, 0], sizes = [6, 16], strides = [1, 1]} : vector<8x16xf32> to vector<6x16xf32>
    %3 = arith.truncf %2 : vector<6x16xf32> to vector<6x16xbf16>
    %c0_2 = arith.constant 0 : index
    %c0_3 = arith.constant 0 : index
    %c0_4 = arith.constant 0 : index
    %4 = vector.load %arg2[%c0_2, %c0_3, %c0_4] : memref<3x16x32xbf16, #tpu.memory_space<vmem>>, vector<1x16x32xbf16>
    %5 = vector.shape_cast %4 : vector<1x16x32xbf16> to vector<16x32xbf16>
    %cst = arith.constant dense<0.000000e+00> : vector<6x32xf32>
    %6 = tpu.matmul %3, %5, %cst {dimension_numbers = #tpu.dot_dimension_numbers<[1], [0], [0], [1], [0, 0, 1, 1], [], []>} : vector<6x16xbf16>, vector<16x32xbf16>, vector<6x32xf32> -> vector<6x32xf32>
    %7 = vector.extract_strided_slice %1 {offsets = [1, 0], sizes = [6, 16], strides = [1, 1]} : vector<8x16xf32> to vector<6x16xf32>
    %8 = arith.truncf %7 : vector<6x16xf32> to vector<6x16xbf16>
    %c1 = arith.constant 1 : index
    %c0_5 = arith.constant 0 : index
    %c0_6 = arith.constant 0 : index
    %9 = vector.load %arg2[%c1, %c0_5, %c0_6] : memref<3x16x32xbf16, #tpu.memory_space<vmem>>, vector<1x16x32xbf16>
    %10 = vector.shape_cast %9 : vector<1x16x32xbf16> to vector<16x32xbf16>
    %cst_7 = arith.constant dense<0.000000e+00> : vector<6x32xf32>
    %11 = tpu.matmul %8, %10, %cst_7 {dimension_numbers = #tpu.dot_dimension_numbers<[1], [0], [0], [1], [0, 0, 1, 1], [], []>} : vector<6x16xbf16>, vector<16x32xbf16>, vector<6x32xf32> -> vector<6x32xf32>
    %12 = arith.addf %6, %11 : vector<6x32xf32>
    %13 = vector.extract_strided_slice %1 {offsets = [2, 0], sizes = [6, 16], strides = [1, 1]} : vector<8x16xf32> to vector<6x16xf32>
    %14 = arith.truncf %13 : vector<6x16xf32> to vector<6x16xbf16>
    %c2 = arith.constant 2 : index
    %c0_8 = arith.constant 0 : index
    %c0_9 = arith.constant 0 : index
    %15 = vector.load %arg2[%c2, %c0_8, %c0_9] : memref<3x16x32xbf16, #tpu.memory_space<vmem>>, vector<1x16x32xbf16>
    %16 = vector.shape_cast %15 : vector<1x16x32xbf16> to vector<16x32xbf16>
    %cst_10 = arith.constant dense<0.000000e+00> : vector<6x32xf32>
    %17 = tpu.matmul %14, %16, %cst_10 {dimension_numbers = #tpu.dot_dimension_numbers<[1], [0], [0], [1], [0, 0, 1, 1], [], []>} : vector<6x16xbf16>, vector<16x32xbf16>, vector<6x32xf32> -> vector<6x32xf32>
    %18 = arith.addf %12, %17 : vector<6x32xf32>
    %c0_11 = arith.constant 0 : index
    %c0_12 = arith.constant 0 : index
    %19 = vector.load %arg3[%c0_11, %c0_12] : memref<1x32xf32, #tpu.memory_space<vmem>>, vector<1x32xf32>
    %20 = vector.broadcast %19 : vector<1x32xf32> to vector<6x32xf32>
    %21 = arith.addf %18, %20 : vector<6x32xf32>
    %22 = math.tanh %21 : vector<6x32xf32>
    %23 = vector.extract_strided_slice %22 {offsets = [0, 0], sizes = [4, 32], strides = [1, 1]} : vector<6x32xf32> to vector<4x32xf32>
    %24 = arith.truncf %23 : vector<4x32xf32> to vector<4x32xbf16>
    %c0_13 = arith.constant 0 : index
    %c0_14 = arith.constant 0 : index
    %c0_15 = arith.constant 0 : index
    %25 = vector.load %arg4[%c0_13, %c0_14, %c0_15] : memref<3x32x32xbf16, #tpu.memory_space<vmem>>, vector<1x32x32xbf16>
    %26 = vector.shape_cast %25 : vector<1x32x32xbf16> to vector<32x32xbf16>
    %cst_16 = arith.constant dense<0.000000e+00> : vector<4x32xf32>
    %27 = tpu.matmul %24, %26, %cst_16 {dimension_numbers = #tpu.dot_dimension_numbers<[1], [0], [0], [1], [0, 0, 1, 1], [], []>} : vector<4x32xbf16>, vector<32x32xbf16>, vector<4x32xf32> -> vector<4x32xf32>
    %28 = vector.extract_strided_slice %22 {offsets = [1, 0], sizes = [4, 32], strides = [1, 1]} : vector<6x32xf32> to vector<4x32xf32>
    %29 = arith.truncf %28 : vector<4x32xf32> to vector<4x32xbf16>
    %c1_17 = arith.constant 1 : index
    %c0_18 = arith.constant 0 : index
    %c0_19 = arith.constant 0 : index
    %30 = vector.load %arg4[%c1_17, %c0_18, %c0_19] : memref<3x32x32xbf16, #tpu.memory_space<vmem>>, vector<1x32x32xbf16>
    %31 = vector.shape_cast %30 : vector<1x32x32xbf16> to vector<32x32xbf16>
    %cst_20 = arith.constant dense<0.000000e+00> : vector<4x32xf32>
    %32 = tpu.matmul %29, %31, %cst_20 {dimension_numbers = #tpu.dot_dimension_numbers<[1], [0], [0], [1], [0, 0, 1, 1], [], []>} : vector<4x32xbf16>, vector<32x32xbf16>, vector<4x32xf32> -> vector<4x32xf32>
    %33 = arith.addf %27, %32 : vector<4x32xf32>
    %34 = vector.extract_strided_slice %22 {offsets = [2, 0], sizes = [4, 32], strides = [1, 1]} : vector<6x32xf32> to vector<4x32xf32>
    %35 = arith.truncf %34 : vector<4x32xf32> to vector<4x32xbf16>
    %c2_21 = arith.constant 2 : index
    %c0_22 = arith.constant 0 : index
    %c0_23 = arith.constant 0 : index
    %36 = vector.load %arg4[%c2_21, %c0_22, %c0_23] : memref<3x32x32xbf16, #tpu.memory_space<vmem>>, vector<1x32x32xbf16>
    %37 = vector.shape_cast %36 : vector<1x32x32xbf16> to vector<32x32xbf16>
    %cst_24 = arith.constant dense<0.000000e+00> : vector<4x32xf32>
    %38 = tpu.matmul %35, %37, %cst_24 {dimension_numbers = #tpu.dot_dimension_numbers<[1], [0], [0], [1], [0, 0, 1, 1], [], []>} : vector<4x32xbf16>, vector<32x32xbf16>, vector<4x32xf32> -> vector<4x32xf32>
    %39 = arith.addf %33, %38 : vector<4x32xf32>
    %c0_25 = arith.constant 0 : index
    %c0_26 = arith.constant 0 : index
    %40 = vector.load %arg5[%c0_25, %c0_26] : memref<1x32xf32, #tpu.memory_space<vmem>>, vector<1x32xf32>
    %41 = vector.broadcast %40 : vector<1x32xf32> to vector<4x32xf32>
    %42 = arith.addf %39, %41 : vector<4x32xf32>
    %43 = math.tanh %42 : vector<4x32xf32>
    %44 = arith.truncf %43 : vector<4x32xf32> to vector<4x32xbf16>
    %c0_27 = arith.constant 0 : index
    %c0_28 = arith.constant 0 : index
    %45 = vector.load %arg6[%c0_27, %c0_28] : memref<32x32xbf16, #tpu.memory_space<vmem>>, vector<32x32xbf16>
    %cst_29 = arith.constant dense<0.000000e+00> : vector<4x32xf32>
    %46 = tpu.matmul %44, %45, %cst_29 {dimension_numbers = #tpu.dot_dimension_numbers<[1], [0], [0], [1], [0, 0, 1, 1], [], []>} : vector<4x32xbf16>, vector<32x32xbf16>, vector<4x32xf32> -> vector<4x32xf32>
    %c0_30 = arith.constant 0 : index
    %c0_31 = arith.constant 0 : index
    %47 = vector.load %arg7[%c0_30, %c0_31] : memref<1x32xf32, #tpu.memory_space<vmem>>, vector<1x32xf32>
    %48 = vector.broadcast %47 : vector<1x32xf32> to vector<4x32xf32>
    %49 = arith.addf %46, %48 : vector<4x32xf32>
    %50 = math.tanh %49 : vector<4x32xf32>
    %51 = arith.truncf %50 : vector<4x32xf32> to vector<4x32xbf16>
    %c0_32 = arith.constant 0 : index
    %c0_33 = arith.constant 0 : index
    %52 = vector.load %arg8[%c0_32, %c0_33] : memref<32x32xbf16, #tpu.memory_space<vmem>>, vector<32x32xbf16>
    %cst_34 = arith.constant dense<0.000000e+00> : vector<4x32xf32>
    %53 = tpu.matmul %51, %52, %cst_34 {dimension_numbers = #tpu.dot_dimension_numbers<[1], [0], [0], [1], [0, 0, 1, 1], [], []>} : vector<4x32xbf16>, vector<32x32xbf16>, vector<4x32xf32> -> vector<4x32xf32>
    %c0_35 = arith.constant 0 : index
    %c0_36 = arith.constant 0 : index
    %54 = vector.load %arg9[%c0_35, %c0_36] : memref<1x32xf32, #tpu.memory_space<vmem>>, vector<1x32xf32>
    %55 = vector.broadcast %54 : vector<1x32xf32> to vector<4x32xf32>
    %56 = arith.addf %53, %55 : vector<4x32xf32>
    %57 = math.tanh %56 : vector<4x32xf32>
    %58 = arith.truncf %57 : vector<4x32xf32> to vector<4x32xbf16>
    %c0_37 = arith.constant 0 : index
    %c0_38 = arith.constant 0 : index
    %c0_39 = arith.constant 0 : index
    %59 = vector.load %arg10[%c0_37, %c0_38, %c0_39] : memref<1x4x96xf32, #tpu.memory_space<vmem>>, vector<1x4x96xf32>
    %60 = vector.shape_cast %59 : vector<1x4x96xf32> to vector<4x96xf32>
    %61 = arith.truncf %60 : vector<4x96xf32> to vector<4x96xbf16>
    %c0_40 = arith.constant 0 : index
    %c0_41 = arith.constant 0 : index
    %62 = vector.load %arg13[%c0_40, %c0_41] : memref<96x384xbf16, #tpu.memory_space<vmem>>, vector<96x384xbf16>
    %cst_42 = arith.constant dense<0.000000e+00> : vector<4x384xf32>
    %63 = tpu.matmul %61, %62, %cst_42 {dimension_numbers = #tpu.dot_dimension_numbers<[1], [0], [0], [1], [0, 0, 1, 1], [], []>} : vector<4x96xbf16>, vector<96x384xbf16>, vector<4x384xf32> -> vector<4x384xf32>
    %c0_43 = arith.constant 0 : index
    %c0_44 = arith.constant 0 : index
    %64 = vector.load %arg14[%c0_43, %c0_44] : memref<32x384xbf16, #tpu.memory_space<vmem>>, vector<32x384xbf16>
    %cst_45 = arith.constant dense<0.000000e+00> : vector<4x384xf32>
    %65 = tpu.matmul %58, %64, %cst_45 {dimension_numbers = #tpu.dot_dimension_numbers<[1], [0], [0], [1], [0, 0, 1, 1], [], []>} : vector<4x32xbf16>, vector<32x384xbf16>, vector<4x384xf32> -> vector<4x384xf32>
    %66 = arith.addf %63, %65 : vector<4x384xf32>
    %c0_46 = arith.constant 0 : index
    %c0_47 = arith.constant 0 : index
    %67 = vector.load %arg15[%c0_46, %c0_47] : memref<1x384xf32, #tpu.memory_space<vmem>>, vector<1x384xf32>
    %68 = vector.broadcast %67 : vector<1x384xf32> to vector<4x384xf32>
    %69 = arith.addf %66, %68 : vector<4x384xf32>
    %c0_48 = arith.constant 0 : index
    %c0_49 = arith.constant 0 : index
    %70 = vector.load %arg29[%c0_48, %c0_49] : memref<4x384xf32, #tpu.memory_space<vmem>>, vector<4x384xf32>
    tpu.vector_store %arg29[%c0_48, %c0_49], %69 {strides = array<i32>} : memref<4x384xf32, #tpu.memory_space<vmem>>, vector<4x384xf32>,
    %c0_50 = arith.constant 0 : index
    %c0_51 = arith.constant 0 : index
    %71 = vector.load %arg19[%c0_50, %c0_51] : memref<32x192xbf16, #tpu.memory_space<vmem>>, vector<32x192xbf16>
    %cst_52 = arith.constant dense<0.000000e+00> : vector<4x192xf32>
    %72 = tpu.matmul %58, %71, %cst_52 {dimension_numbers = #tpu.dot_dimension_numbers<[1], [0], [0], [1], [0, 0, 1, 1], [], []>} : vector<4x32xbf16>, vector<32x192xbf16>, vector<4x192xf32> -> vector<4x192xf32>
    %c0_53 = arith.constant 0 : index
    %c0_54 = arith.constant 0 : index
    %73 = vector.load %arg20[%c0_53, %c0_54] : memref<1x192xf32, #tpu.memory_space<vmem>>, vector<1x192xf32>
    %74 = vector.broadcast %73 : vector<1x192xf32> to vector<4x192xf32>
    %75 = arith.addf %72, %74 : vector<4x192xf32>
    %c0_55 = arith.constant 0 : index
    %c0_56 = arith.constant 0 : index
    %76 = vector.load %arg31[%c0_55, %c0_56] : memref<4x192xf32, #tpu.memory_space<vmem>>, vector<4x192xf32>
    tpu.vector_store %arg31[%c0_55, %c0_56], %75 {strides = array<i32>} : memref<4x192xf32, #tpu.memory_space<vmem>>, vector<4x192xf32>,
    %c0_57 = arith.constant 0 : index
    %c0_58 = arith.constant 0 : index
    %77 = vector.load %arg16[%c0_57, %c0_58] : memref<32x96xbf16, #tpu.memory_space<vmem>>, vector<32x96xbf16>
    %c0_59 = arith.constant 0 : index
    %c0_60 = arith.constant 0 : index
    %78 = vector.load %arg17[%c0_59, %c0_60] : memref<1x96xf32, #tpu.memory_space<vmem>>, vector<1x96xf32>
    %c0_61 = arith.constant 0 : index
    %c0_62 = arith.constant 0 : index
    %c0_63 = arith.constant 0 : index
    %79 = vector.load %arg11[%c0_61, %c0_62, %c0_63] : memref<1x1x32xf32, #tpu.memory_space<vmem>>, vector<1x1x32xf32>
    %80 = vector.shape_cast %79 : vector<1x1x32xf32> to vector<1x32xf32>
    %c0_i32 = arith.constant 0 : i32
    %c4_i32 = arith.constant 4 : i32
    %81 = arith.addi %c0_i32, %c4_i32 : i32
    %c1_i32 = arith.constant 1 : i32
    %82 = scf.for %arg33 = %c0_i32 to %81 step %c1_i32 iter_args(%arg34 = %80) -> (vector<1x32xf32>)  : i32 {
      %177 = arith.index_cast %arg33 : i32 to index
      %c0_111 = arith.constant 0 : index
      %178 = vector.load %arg29[%177, %c0_111] : memref<4x384xf32, #tpu.memory_space<vmem>>, vector<1x384xf32>
      %179 = vector.extract_strided_slice %178 {offsets = [0, 0], sizes = [1, 96], strides = [1, 1]} : vector<1x384xf32> to vector<1x96xf32>
      %180 = arith.truncf %arg34 : vector<1x32xf32> to vector<1x32xbf16>
      %cst_112 = arith.constant dense<0.000000e+00> : vector<1x96xf32>
      %181 = tpu.matmul %180, %77, %cst_112 {dimension_numbers = #tpu.dot_dimension_numbers<[1], [0], [0], [1], [0, 0, 1, 1], [], []>} : vector<1x32xbf16>, vector<32x96xbf16>, vector<1x96xf32> -> vector<1x96xf32>
      %182 = arith.addf %181, %78 : vector<1x96xf32>
      %183 = vector.extract_strided_slice %179 {offsets = [0, 0], sizes = [1, 32], strides = [1, 1]} : vector<1x96xf32> to vector<1x32xf32>
      %184 = vector.extract_strided_slice %182 {offsets = [0, 0], sizes = [1, 32], strides = [1, 1]} : vector<1x96xf32> to vector<1x32xf32>
      %185 = arith.addf %183, %184 : vector<1x32xf32>
      %186 = arith.negf %185 : vector<1x32xf32>
      %187 = math.exp %186 : vector<1x32xf32>
      %cst_113 = arith.constant 1.000000e+00 : f32
      %188 = vector.broadcast %cst_113 : f32 to vector<1x32xf32>
      %189 = arith.addf %188, %187 : vector<1x32xf32>
      %190 = arith.divf %188, %189 : vector<1x32xf32>
      %191 = vector.extract_strided_slice %179 {offsets = [0, 32], sizes = [1, 32], strides = [1, 1]} : vector<1x96xf32> to vector<1x32xf32>
      %192 = vector.extract_strided_slice %182 {offsets = [0, 32], sizes = [1, 32], strides = [1, 1]} : vector<1x96xf32> to vector<1x32xf32>
      %193 = arith.addf %191, %192 : vector<1x32xf32>
      %194 = arith.negf %193 : vector<1x32xf32>
      %195 = math.exp %194 : vector<1x32xf32>
      %cst_114 = arith.constant 1.000000e+00 : f32
      %196 = vector.broadcast %cst_114 : f32 to vector<1x32xf32>
      %197 = arith.addf %196, %195 : vector<1x32xf32>
      %198 = arith.divf %196, %197 : vector<1x32xf32>
      %199 = vector.extract_strided_slice %179 {offsets = [0, 64], sizes = [1, 32], strides = [1, 1]} : vector<1x96xf32> to vector<1x32xf32>
      %200 = vector.extract_strided_slice %182 {offsets = [0, 64], sizes = [1, 32], strides = [1, 1]} : vector<1x96xf32> to vector<1x32xf32>
      %201 = arith.mulf %190, %200 : vector<1x32xf32>
      %202 = arith.addf %199, %201 : vector<1x32xf32>
      %203 = math.tanh %202 : vector<1x32xf32>
      %cst_115 = arith.constant 1.000000e+00 : f32
      %204 = vector.broadcast %cst_115 : f32 to vector<1x32xf32>
      %205 = arith.subf %204, %198 : vector<1x32xf32>
      %206 = arith.mulf %205, %203 : vector<1x32xf32>
      %207 = arith.mulf %198, %arg34 : vector<1x32xf32>
      %208 = arith.addf %206, %207 : vector<1x32xf32>
      %209 = vector.extract_strided_slice %178 {offsets = [0, 96], sizes = [1, 96], strides = [1, 1]} : vector<1x384xf32> to vector<1x96xf32>
      %210 = arith.truncf %208 : vector<1x32xf32> to vector<1x32xbf16>
      %cst_116 = arith.constant dense<0.000000e+00> : vector<1x96xf32>
      %211 = tpu.matmul %210, %77, %cst_116 {dimension_numbers = #tpu.dot_dimension_numbers<[1], [0], [0], [1], [0, 0, 1, 1], [], []>} : vector<1x32xbf16>, vector<32x96xbf16>, vector<1x96xf32> -> vector<1x96xf32>
      %212 = arith.addf %211, %78 : vector<1x96xf32>
      %213 = vector.extract_strided_slice %209 {offsets = [0, 0], sizes = [1, 32], strides = [1, 1]} : vector<1x96xf32> to vector<1x32xf32>
      %214 = vector.extract_strided_slice %212 {offsets = [0, 0], sizes = [1, 32], strides = [1, 1]} : vector<1x96xf32> to vector<1x32xf32>
      %215 = arith.addf %213, %214 : vector<1x32xf32>
      %216 = arith.negf %215 : vector<1x32xf32>
      %217 = math.exp %216 : vector<1x32xf32>
      %cst_117 = arith.constant 1.000000e+00 : f32
      %218 = vector.broadcast %cst_117 : f32 to vector<1x32xf32>
      %219 = arith.addf %218, %217 : vector<1x32xf32>
      %220 = arith.divf %218, %219 : vector<1x32xf32>
      %221 = vector.extract_strided_slice %209 {offsets = [0, 32], sizes = [1, 32], strides = [1, 1]} : vector<1x96xf32> to vector<1x32xf32>
      %222 = vector.extract_strided_slice %212 {offsets = [0, 32], sizes = [1, 32], strides = [1, 1]} : vector<1x96xf32> to vector<1x32xf32>
      %223 = arith.addf %221, %222 : vector<1x32xf32>
      %224 = arith.negf %223 : vector<1x32xf32>
      %225 = math.exp %224 : vector<1x32xf32>
      %cst_118 = arith.constant 1.000000e+00 : f32
      %226 = vector.broadcast %cst_118 : f32 to vector<1x32xf32>
      %227 = arith.addf %226, %225 : vector<1x32xf32>
      %228 = arith.divf %226, %227 : vector<1x32xf32>
      %229 = vector.extract_strided_slice %209 {offsets = [0, 64], sizes = [1, 32], strides = [1, 1]} : vector<1x96xf32> to vector<1x32xf32>
      %230 = vector.extract_strided_slice %212 {offsets = [0, 64], sizes = [1, 32], strides = [1, 1]} : vector<1x96xf32> to vector<1x32xf32>
      %231 = arith.mulf %220, %230 : vector<1x32xf32>
      %232 = arith.addf %229, %231 : vector<1x32xf32>
      %233 = math.tanh %232 : vector<1x32xf32>
      %cst_119 = arith.constant 1.000000e+00 : f32
      %234 = vector.broadcast %cst_119 : f32 to vector<1x32xf32>
      %235 = arith.subf %234, %228 : vector<1x32xf32>
      %236 = arith.mulf %235, %233 : vector<1x32xf32>
      %237 = arith.mulf %228, %208 : vector<1x32xf32>
      %238 = arith.addf %236, %237 : vector<1x32xf32>
      %239 = vector.extract_strided_slice %178 {offsets = [0, 192], sizes = [1, 96], strides = [1, 1]} : vector<1x384xf32> to vector<1x96xf32>
      %240 = arith.truncf %238 : vector<1x32xf32> to vector<1x32xbf16>
      %cst_120 = arith.constant dense<0.000000e+00> : vector<1x96xf32>
      %241 = tpu.matmul %240, %77, %cst_120 {dimension_numbers = #tpu.dot_dimension_numbers<[1], [0], [0], [1], [0, 0, 1, 1], [], []>} : vector<1x32xbf16>, vector<32x96xbf16>, vector<1x96xf32> -> vector<1x96xf32>
      %242 = arith.addf %241, %78 : vector<1x96xf32>
      %243 = vector.extract_strided_slice %239 {offsets = [0, 0], sizes = [1, 32], strides = [1, 1]} : vector<1x96xf32> to vector<1x32xf32>
      %244 = vector.extract_strided_slice %242 {offsets = [0, 0], sizes = [1, 32], strides = [1, 1]} : vector<1x96xf32> to vector<1x32xf32>
      %245 = arith.addf %243, %244 : vector<1x32xf32>
      %246 = arith.negf %245 : vector<1x32xf32>
      %247 = math.exp %246 : vector<1x32xf32>
      %cst_121 = arith.constant 1.000000e+00 : f32
      %248 = vector.broadcast %cst_121 : f32 to vector<1x32xf32>
      %249 = arith.addf %248, %247 : vector<1x32xf32>
      %250 = arith.divf %248, %249 : vector<1x32xf32>
      %251 = vector.extract_strided_slice %239 {offsets = [0, 32], sizes = [1, 32], strides = [1, 1]} : vector<1x96xf32> to vector<1x32xf32>
      %252 = vector.extract_strided_slice %242 {offsets = [0, 32], sizes = [1, 32], strides = [1, 1]} : vector<1x96xf32> to vector<1x32xf32>
      %253 = arith.addf %251, %252 : vector<1x32xf32>
      %254 = arith.negf %253 : vector<1x32xf32>
      %255 = math.exp %254 : vector<1x32xf32>
      %cst_122 = arith.constant 1.000000e+00 : f32
      %256 = vector.broadcast %cst_122 : f32 to vector<1x32xf32>
      %257 = arith.addf %256, %255 : vector<1x32xf32>
      %258 = arith.divf %256, %257 : vector<1x32xf32>
      %259 = vector.extract_strided_slice %239 {offsets = [0, 64], sizes = [1, 32], strides = [1, 1]} : vector<1x96xf32> to vector<1x32xf32>
      %260 = vector.extract_strided_slice %242 {offsets = [0, 64], sizes = [1, 32], strides = [1, 1]} : vector<1x96xf32> to vector<1x32xf32>
      %261 = arith.mulf %250, %260 : vector<1x32xf32>
      %262 = arith.addf %259, %261 : vector<1x32xf32>
      %263 = math.tanh %262 : vector<1x32xf32>
      %cst_123 = arith.constant 1.000000e+00 : f32
      %264 = vector.broadcast %cst_123 : f32 to vector<1x32xf32>
      %265 = arith.subf %264, %258 : vector<1x32xf32>
      %266 = arith.mulf %265, %263 : vector<1x32xf32>
      %267 = arith.mulf %258, %238 : vector<1x32xf32>
      %268 = arith.addf %266, %267 : vector<1x32xf32>
      %269 = vector.extract_strided_slice %178 {offsets = [0, 288], sizes = [1, 96], strides = [1, 1]} : vector<1x384xf32> to vector<1x96xf32>
      %270 = arith.truncf %268 : vector<1x32xf32> to vector<1x32xbf16>
      %cst_124 = arith.constant dense<0.000000e+00> : vector<1x96xf32>
      %271 = tpu.matmul %270, %77, %cst_124 {dimension_numbers = #tpu.dot_dimension_numbers<[1], [0], [0], [1], [0, 0, 1, 1], [], []>} : vector<1x32xbf16>, vector<32x96xbf16>, vector<1x96xf32> -> vector<1x96xf32>
      %272 = arith.addf %271, %78 : vector<1x96xf32>
      %273 = vector.extract_strided_slice %269 {offsets = [0, 0], sizes = [1, 32], strides = [1, 1]} : vector<1x96xf32> to vector<1x32xf32>
      %274 = vector.extract_strided_slice %272 {offsets = [0, 0], sizes = [1, 32], strides = [1, 1]} : vector<1x96xf32> to vector<1x32xf32>
      %275 = arith.addf %273, %274 : vector<1x32xf32>
      %276 = arith.negf %275 : vector<1x32xf32>
      %277 = math.exp %276 : vector<1x32xf32>
      %cst_125 = arith.constant 1.000000e+00 : f32
      %278 = vector.broadcast %cst_125 : f32 to vector<1x32xf32>
      %279 = arith.addf %278, %277 : vector<1x32xf32>
      %280 = arith.divf %278, %279 : vector<1x32xf32>
      %281 = vector.extract_strided_slice %269 {offsets = [0, 32], sizes = [1, 32], strides = [1, 1]} : vector<1x96xf32> to vector<1x32xf32>
      %282 = vector.extract_strided_slice %272 {offsets = [0, 32], sizes = [1, 32], strides = [1, 1]} : vector<1x96xf32> to vector<1x32xf32>
      %283 = arith.addf %281, %282 : vector<1x32xf32>
      %284 = arith.negf %283 : vector<1x32xf32>
      %285 = math.exp %284 : vector<1x32xf32>
      %cst_126 = arith.constant 1.000000e+00 : f32
      %286 = vector.broadcast %cst_126 : f32 to vector<1x32xf32>
      %287 = arith.addf %286, %285 : vector<1x32xf32>
      %288 = arith.divf %286, %287 : vector<1x32xf32>
      %289 = vector.extract_strided_slice %269 {offsets = [0, 64], sizes = [1, 32], strides = [1, 1]} : vector<1x96xf32> to vector<1x32xf32>
      %290 = vector.extract_strided_slice %272 {offsets = [0, 64], sizes = [1, 32], strides = [1, 1]} : vector<1x96xf32> to vector<1x32xf32>
      %291 = arith.mulf %280, %290 : vector<1x32xf32>
      %292 = arith.addf %289, %291 : vector<1x32xf32>
      %293 = math.tanh %292 : vector<1x32xf32>
      %cst_127 = arith.constant 1.000000e+00 : f32
      %294 = vector.broadcast %cst_127 : f32 to vector<1x32xf32>
      %295 = arith.subf %294, %288 : vector<1x32xf32>
      %296 = arith.mulf %295, %293 : vector<1x32xf32>
      %297 = arith.mulf %288, %268 : vector<1x32xf32>
      %298 = arith.addf %296, %297 : vector<1x32xf32>
      %299 = tpu.concatenate %208, %238, %268, %298 in 1 : vector<1x32xf32>, vector<1x32xf32>, vector<1x32xf32>, vector<1x32xf32> -> vector<1x128xf32>
      %300 = arith.index_cast %arg33 : i32 to index
      %c0_128 = arith.constant 0 : index
      %301 = vector.load %arg30[%300, %c0_128] : memref<4x128xf32, #tpu.memory_space<vmem>>, vector<1x128xf32>
      tpu.vector_store %arg30[%300, %c0_128], %299 {strides = array<i32>} : memref<4x128xf32, #tpu.memory_space<vmem>>, vector<1x128xf32>,
      scf.yield %298 : vector<1x32xf32>
    }
    %c4_i32_64 = arith.constant 4 : i32
    %c0_65 = arith.constant 0 : index
    %c0_66 = arith.constant 0 : index
    %83 = vector.load %arg31[%c0_65, %c0_66] : memref<4x192xf32, #tpu.memory_space<vmem>>, vector<4x192xf32>
    %c0_67 = arith.constant 0 : index
    %c0_68 = arith.constant 0 : index
    %84 = vector.load %arg30[%c0_67, %c0_68] : memref<4x128xf32, #tpu.memory_space<vmem>>, vector<4x128xf32>
    %85 = arith.truncf %84 : vector<4x128xf32> to vector<4x128xbf16>
    %c0_69 = arith.constant 0 : index
    %c0_70 = arith.constant 0 : index
    %86 = vector.load %arg18[%c0_69, %c0_70] : memref<128x192xbf16, #tpu.memory_space<vmem>>, vector<128x192xbf16>
    %cst_71 = arith.constant dense<0.000000e+00> : vector<4x192xf32>
    %87 = tpu.matmul %85, %86, %cst_71 {dimension_numbers = #tpu.dot_dimension_numbers<[1], [0], [0], [1], [0, 0, 1, 1], [], []>} : vector<4x128xbf16>, vector<128x192xbf16>, vector<4x192xf32> -> vector<4x192xf32>
    %88 = arith.addf %83, %87 : vector<4x192xf32>
    %c0_72 = arith.constant 0 : index
    %c0_73 = arith.constant 0 : index
    %89 = vector.load %arg31[%c0_72, %c0_73] : memref<4x192xf32, #tpu.memory_space<vmem>>, vector<4x192xf32>
    tpu.vector_store %arg31[%c0_72, %c0_73], %88 {strides = array<i32>} : memref<4x192xf32, #tpu.memory_space<vmem>>, vector<4x192xf32>,
    %c0_74 = arith.constant 0 : index
    %c0_75 = arith.constant 0 : index
    %90 = vector.load %arg21[%c0_74, %c0_75] : memref<16x48xbf16, #tpu.memory_space<vmem>>, vector<16x48xbf16>
    %c0_76 = arith.constant 0 : index
    %c0_77 = arith.constant 0 : index
    %91 = vector.load %arg22[%c0_76, %c0_77] : memref<1x48xf32, #tpu.memory_space<vmem>>, vector<1x48xf32>
    %c0_78 = arith.constant 0 : index
    %c0_79 = arith.constant 0 : index
    %c0_80 = arith.constant 0 : index
    %92 = vector.load %arg12[%c0_78, %c0_79, %c0_80] : memref<1x1x16xf32, #tpu.memory_space<vmem>>, vector<1x1x16xf32>
    %93 = vector.shape_cast %92 : vector<1x1x16xf32> to vector<1x16xf32>
    %c0_i32_81 = arith.constant 0 : i32
    %c4_i32_82 = arith.constant 4 : i32
    %94 = arith.addi %c0_i32_81, %c4_i32_82 : i32
    %c1_i32_83 = arith.constant 1 : i32
    %95 = scf.for %arg33 = %c0_i32_81 to %94 step %c1_i32_83 iter_args(%arg34 = %93) -> (vector<1x16xf32>)  : i32 {
      %177 = arith.index_cast %arg33 : i32 to index
      %c0_111 = arith.constant 0 : index
      %178 = vector.load %arg31[%177, %c0_111] : memref<4x192xf32, #tpu.memory_space<vmem>>, vector<1x192xf32>
      %179 = vector.extract_strided_slice %178 {offsets = [0, 0], sizes = [1, 48], strides = [1, 1]} : vector<1x192xf32> to vector<1x48xf32>
      %180 = arith.truncf %arg34 : vector<1x16xf32> to vector<1x16xbf16>
      %cst_112 = arith.constant dense<0.000000e+00> : vector<1x48xf32>
      %181 = tpu.matmul %180, %90, %cst_112 {dimension_numbers = #tpu.dot_dimension_numbers<[1], [0], [0], [1], [0, 0, 1, 1], [], []>} : vector<1x16xbf16>, vector<16x48xbf16>, vector<1x48xf32> -> vector<1x48xf32>
      %182 = arith.addf %181, %91 : vector<1x48xf32>
      %183 = vector.extract_strided_slice %179 {offsets = [0, 0], sizes = [1, 16], strides = [1, 1]} : vector<1x48xf32> to vector<1x16xf32>
      %184 = vector.extract_strided_slice %182 {offsets = [0, 0], sizes = [1, 16], strides = [1, 1]} : vector<1x48xf32> to vector<1x16xf32>
      %185 = arith.addf %183, %184 : vector<1x16xf32>
      %186 = arith.negf %185 : vector<1x16xf32>
      %187 = math.exp %186 : vector<1x16xf32>
      %cst_113 = arith.constant 1.000000e+00 : f32
      %188 = vector.broadcast %cst_113 : f32 to vector<1x16xf32>
      %189 = arith.addf %188, %187 : vector<1x16xf32>
      %190 = arith.divf %188, %189 : vector<1x16xf32>
      %191 = vector.extract_strided_slice %179 {offsets = [0, 16], sizes = [1, 16], strides = [1, 1]} : vector<1x48xf32> to vector<1x16xf32>
      %192 = vector.extract_strided_slice %182 {offsets = [0, 16], sizes = [1, 16], strides = [1, 1]} : vector<1x48xf32> to vector<1x16xf32>
      %193 = arith.addf %191, %192 : vector<1x16xf32>
      %194 = arith.negf %193 : vector<1x16xf32>
      %195 = math.exp %194 : vector<1x16xf32>
      %cst_114 = arith.constant 1.000000e+00 : f32
      %196 = vector.broadcast %cst_114 : f32 to vector<1x16xf32>
      %197 = arith.addf %196, %195 : vector<1x16xf32>
      %198 = arith.divf %196, %197 : vector<1x16xf32>
      %199 = vector.extract_strided_slice %179 {offsets = [0, 32], sizes = [1, 16], strides = [1, 1]} : vector<1x48xf32> to vector<1x16xf32>
      %200 = vector.extract_strided_slice %182 {offsets = [0, 32], sizes = [1, 16], strides = [1, 1]} : vector<1x48xf32> to vector<1x16xf32>
      %201 = arith.mulf %190, %200 : vector<1x16xf32>
      %202 = arith.addf %199, %201 : vector<1x16xf32>
      %203 = math.tanh %202 : vector<1x16xf32>
      %cst_115 = arith.constant 1.000000e+00 : f32
      %204 = vector.broadcast %cst_115 : f32 to vector<1x16xf32>
      %205 = arith.subf %204, %198 : vector<1x16xf32>
      %206 = arith.mulf %205, %203 : vector<1x16xf32>
      %207 = arith.mulf %198, %arg34 : vector<1x16xf32>
      %208 = arith.addf %206, %207 : vector<1x16xf32>
      %209 = vector.extract_strided_slice %178 {offsets = [0, 48], sizes = [1, 48], strides = [1, 1]} : vector<1x192xf32> to vector<1x48xf32>
      %210 = arith.truncf %208 : vector<1x16xf32> to vector<1x16xbf16>
      %cst_116 = arith.constant dense<0.000000e+00> : vector<1x48xf32>
      %211 = tpu.matmul %210, %90, %cst_116 {dimension_numbers = #tpu.dot_dimension_numbers<[1], [0], [0], [1], [0, 0, 1, 1], [], []>} : vector<1x16xbf16>, vector<16x48xbf16>, vector<1x48xf32> -> vector<1x48xf32>
      %212 = arith.addf %211, %91 : vector<1x48xf32>
      %213 = vector.extract_strided_slice %209 {offsets = [0, 0], sizes = [1, 16], strides = [1, 1]} : vector<1x48xf32> to vector<1x16xf32>
      %214 = vector.extract_strided_slice %212 {offsets = [0, 0], sizes = [1, 16], strides = [1, 1]} : vector<1x48xf32> to vector<1x16xf32>
      %215 = arith.addf %213, %214 : vector<1x16xf32>
      %216 = arith.negf %215 : vector<1x16xf32>
      %217 = math.exp %216 : vector<1x16xf32>
      %cst_117 = arith.constant 1.000000e+00 : f32
      %218 = vector.broadcast %cst_117 : f32 to vector<1x16xf32>
      %219 = arith.addf %218, %217 : vector<1x16xf32>
      %220 = arith.divf %218, %219 : vector<1x16xf32>
      %221 = vector.extract_strided_slice %209 {offsets = [0, 16], sizes = [1, 16], strides = [1, 1]} : vector<1x48xf32> to vector<1x16xf32>
      %222 = vector.extract_strided_slice %212 {offsets = [0, 16], sizes = [1, 16], strides = [1, 1]} : vector<1x48xf32> to vector<1x16xf32>
      %223 = arith.addf %221, %222 : vector<1x16xf32>
      %224 = arith.negf %223 : vector<1x16xf32>
      %225 = math.exp %224 : vector<1x16xf32>
      %cst_118 = arith.constant 1.000000e+00 : f32
      %226 = vector.broadcast %cst_118 : f32 to vector<1x16xf32>
      %227 = arith.addf %226, %225 : vector<1x16xf32>
      %228 = arith.divf %226, %227 : vector<1x16xf32>
      %229 = vector.extract_strided_slice %209 {offsets = [0, 32], sizes = [1, 16], strides = [1, 1]} : vector<1x48xf32> to vector<1x16xf32>
      %230 = vector.extract_strided_slice %212 {offsets = [0, 32], sizes = [1, 16], strides = [1, 1]} : vector<1x48xf32> to vector<1x16xf32>
      %231 = arith.mulf %220, %230 : vector<1x16xf32>
      %232 = arith.addf %229, %231 : vector<1x16xf32>
      %233 = math.tanh %232 : vector<1x16xf32>
      %cst_119 = arith.constant 1.000000e+00 : f32
      %234 = vector.broadcast %cst_119 : f32 to vector<1x16xf32>
      %235 = arith.subf %234, %228 : vector<1x16xf32>
      %236 = arith.mulf %235, %233 : vector<1x16xf32>
      %237 = arith.mulf %228, %208 : vector<1x16xf32>
      %238 = arith.addf %236, %237 : vector<1x16xf32>
      %239 = vector.extract_strided_slice %178 {offsets = [0, 96], sizes = [1, 48], strides = [1, 1]} : vector<1x192xf32> to vector<1x48xf32>
      %240 = arith.truncf %238 : vector<1x16xf32> to vector<1x16xbf16>
      %cst_120 = arith.constant dense<0.000000e+00> : vector<1x48xf32>
      %241 = tpu.matmul %240, %90, %cst_120 {dimension_numbers = #tpu.dot_dimension_numbers<[1], [0], [0], [1], [0, 0, 1, 1], [], []>} : vector<1x16xbf16>, vector<16x48xbf16>, vector<1x48xf32> -> vector<1x48xf32>
      %242 = arith.addf %241, %91 : vector<1x48xf32>
      %243 = vector.extract_strided_slice %239 {offsets = [0, 0], sizes = [1, 16], strides = [1, 1]} : vector<1x48xf32> to vector<1x16xf32>
      %244 = vector.extract_strided_slice %242 {offsets = [0, 0], sizes = [1, 16], strides = [1, 1]} : vector<1x48xf32> to vector<1x16xf32>
      %245 = arith.addf %243, %244 : vector<1x16xf32>
      %246 = arith.negf %245 : vector<1x16xf32>
      %247 = math.exp %246 : vector<1x16xf32>
      %cst_121 = arith.constant 1.000000e+00 : f32
      %248 = vector.broadcast %cst_121 : f32 to vector<1x16xf32>
      %249 = arith.addf %248, %247 : vector<1x16xf32>
      %250 = arith.divf %248, %249 : vector<1x16xf32>
      %251 = vector.extract_strided_slice %239 {offsets = [0, 16], sizes = [1, 16], strides = [1, 1]} : vector<1x48xf32> to vector<1x16xf32>
      %252 = vector.extract_strided_slice %242 {offsets = [0, 16], sizes = [1, 16], strides = [1, 1]} : vector<1x48xf32> to vector<1x16xf32>
      %253 = arith.addf %251, %252 : vector<1x16xf32>
      %254 = arith.negf %253 : vector<1x16xf32>
      %255 = math.exp %254 : vector<1x16xf32>
      %cst_122 = arith.constant 1.000000e+00 : f32
      %256 = vector.broadcast %cst_122 : f32 to vector<1x16xf32>
      %257 = arith.addf %256, %255 : vector<1x16xf32>
      %258 = arith.divf %256, %257 : vector<1x16xf32>
      %259 = vector.extract_strided_slice %239 {offsets = [0, 32], sizes = [1, 16], strides = [1, 1]} : vector<1x48xf32> to vector<1x16xf32>
      %260 = vector.extract_strided_slice %242 {offsets = [0, 32], sizes = [1, 16], strides = [1, 1]} : vector<1x48xf32> to vector<1x16xf32>
      %261 = arith.mulf %250, %260 : vector<1x16xf32>
      %262 = arith.addf %259, %261 : vector<1x16xf32>
      %263 = math.tanh %262 : vector<1x16xf32>
      %cst_123 = arith.constant 1.000000e+00 : f32
      %264 = vector.broadcast %cst_123 : f32 to vector<1x16xf32>
      %265 = arith.subf %264, %258 : vector<1x16xf32>
      %266 = arith.mulf %265, %263 : vector<1x16xf32>
      %267 = arith.mulf %258, %238 : vector<1x16xf32>
      %268 = arith.addf %266, %267 : vector<1x16xf32>
      %269 = vector.extract_strided_slice %178 {offsets = [0, 144], sizes = [1, 48], strides = [1, 1]} : vector<1x192xf32> to vector<1x48xf32>
      %270 = arith.truncf %268 : vector<1x16xf32> to vector<1x16xbf16>
      %cst_124 = arith.constant dense<0.000000e+00> : vector<1x48xf32>
      %271 = tpu.matmul %270, %90, %cst_124 {dimension_numbers = #tpu.dot_dimension_numbers<[1], [0], [0], [1], [0, 0, 1, 1], [], []>} : vector<1x16xbf16>, vector<16x48xbf16>, vector<1x48xf32> -> vector<1x48xf32>
      %272 = arith.addf %271, %91 : vector<1x48xf32>
      %273 = vector.extract_strided_slice %269 {offsets = [0, 0], sizes = [1, 16], strides = [1, 1]} : vector<1x48xf32> to vector<1x16xf32>
      %274 = vector.extract_strided_slice %272 {offsets = [0, 0], sizes = [1, 16], strides = [1, 1]} : vector<1x48xf32> to vector<1x16xf32>
      %275 = arith.addf %273, %274 : vector<1x16xf32>
      %276 = arith.negf %275 : vector<1x16xf32>
      %277 = math.exp %276 : vector<1x16xf32>
      %cst_125 = arith.constant 1.000000e+00 : f32
      %278 = vector.broadcast %cst_125 : f32 to vector<1x16xf32>
      %279 = arith.addf %278, %277 : vector<1x16xf32>
      %280 = arith.divf %278, %279 : vector<1x16xf32>
      %281 = vector.extract_strided_slice %269 {offsets = [0, 16], sizes = [1, 16], strides = [1, 1]} : vector<1x48xf32> to vector<1x16xf32>
      %282 = vector.extract_strided_slice %272 {offsets = [0, 16], sizes = [1, 16], strides = [1, 1]} : vector<1x48xf32> to vector<1x16xf32>
      %283 = arith.addf %281, %282 : vector<1x16xf32>
      %284 = arith.negf %283 : vector<1x16xf32>
      %285 = math.exp %284 : vector<1x16xf32>
      %cst_126 = arith.constant 1.000000e+00 : f32
      %286 = vector.broadcast %cst_126 : f32 to vector<1x16xf32>
      %287 = arith.addf %286, %285 : vector<1x16xf32>
      %288 = arith.divf %286, %287 : vector<1x16xf32>
      %289 = vector.extract_strided_slice %269 {offsets = [0, 32], sizes = [1, 16], strides = [1, 1]} : vector<1x48xf32> to vector<1x16xf32>
      %290 = vector.extract_strided_slice %272 {offsets = [0, 32], sizes = [1, 16], strides = [1, 1]} : vector<1x48xf32> to vector<1x16xf32>
      %291 = arith.mulf %280, %290 : vector<1x16xf32>
      %292 = arith.addf %289, %291 : vector<1x16xf32>
      %293 = math.tanh %292 : vector<1x16xf32>
      %cst_127 = arith.constant 1.000000e+00 : f32
      %294 = vector.broadcast %cst_127 : f32 to vector<1x16xf32>
      %295 = arith.subf %294, %288 : vector<1x16xf32>
      %296 = arith.mulf %295, %293 : vector<1x16xf32>
      %297 = arith.mulf %288, %268 : vector<1x16xf32>
      %298 = arith.addf %296, %297 : vector<1x16xf32>
      %299 = tpu.concatenate %208, %238, %268, %298 in 1 : vector<1x16xf32>, vector<1x16xf32>, vector<1x16xf32>, vector<1x16xf32> -> vector<1x64xf32>
      %300 = arith.index_cast %arg33 : i32 to index
      %c0_128 = arith.constant 0 : index
      %301 = vector.load %arg32[%300, %c0_128] : memref<4x64xf32, #tpu.memory_space<vmem>>, vector<1x64xf32>
      tpu.vector_store %arg32[%300, %c0_128], %299 {strides = array<i32>} : memref<4x64xf32, #tpu.memory_space<vmem>>, vector<1x64xf32>,
      scf.yield %298 : vector<1x16xf32>
    }
    %c4_i32_84 = arith.constant 4 : i32
    %c0_85 = arith.constant 0 : index
    %c0_86 = arith.constant 0 : index
    %96 = vector.load %arg32[%c0_85, %c0_86] : memref<4x64xf32, #tpu.memory_space<vmem>>, vector<4x64xf32>
    %97 = arith.truncf %96 : vector<4x64xf32> to vector<4x64xbf16>
    %c0_87 = arith.constant 0 : index
    %c0_88 = arith.constant 0 : index
    %98 = vector.load %arg23[%c0_87, %c0_88] : memref<64x256xbf16, #tpu.memory_space<vmem>>, vector<64x256xbf16>
    %cst_89 = arith.constant dense<0.000000e+00> : vector<4x256xf32>
    %99 = tpu.matmul %97, %98, %cst_89 {dimension_numbers = #tpu.dot_dimension_numbers<[1], [0], [0], [1], [0, 0, 1, 1], [], []>} : vector<4x64xbf16>, vector<64x256xbf16>, vector<4x256xf32> -> vector<4x256xf32>
    %c0_90 = arith.constant 0 : index
    %c0_91 = arith.constant 0 : index
    %100 = vector.load %arg24[%c0_90, %c0_91] : memref<1x256xf32, #tpu.memory_space<vmem>>, vector<1x256xf32>
    %101 = vector.broadcast %100 : vector<1x256xf32> to vector<4x256xf32>
    %102 = arith.addf %99, %101 : vector<4x256xf32>
    %c0_92 = arith.constant 0 : index
    %c0_93 = arith.constant 0 : index
    %103 = vector.load %arg25[%c0_92, %c0_93] : memref<1x256xf32, #tpu.memory_space<vmem>>, vector<1x256xf32>
    %104 = math.tanh %102 : vector<4x256xf32>
    %105 = vector.broadcast %103 : vector<1x256xf32> to vector<4x256xf32>
    %106 = arith.mulf %105, %104 : vector<4x256xf32>
    %107 = vector.extract_strided_slice %106 {offsets = [0, 0], sizes = [4, 32], strides = [1, 1]} : vector<4x256xf32> to vector<4x32xf32>
    %108 = vector.extract_strided_slice %106 {offsets = [0, 32], sizes = [4, 32], strides = [1, 1]} : vector<4x256xf32> to vector<4x32xf32>
    %109 = arith.addf %107, %108 : vector<4x32xf32>
    %cst_94 = arith.constant dense<0xFF800000> : vector<4xf32>
    %110 = vector.multi_reduction <maximumf>, %109, %cst_94 [1] : vector<4x32xf32> to vector<4xf32>
    %111 = vector.shape_cast %110 : vector<4xf32> to vector<4x1xf32>
    %112 = vector.broadcast %111 : vector<4x1xf32> to vector<4x32xf32>
    %113 = arith.subf %109, %112 : vector<4x32xf32>
    %114 = math.exp %113 : vector<4x32xf32>
    %cst_95 = arith.constant dense<0.000000e+00> : vector<4xf32>
    %115 = vector.multi_reduction <add>, %114, %cst_95 [1] : vector<4x32xf32> to vector<4xf32>
    %116 = vector.shape_cast %115 : vector<4xf32> to vector<4x1xf32>
    %117 = math.log %116 : vector<4x1xf32>
    %118 = vector.broadcast %111 : vector<4x1xf32> to vector<4x32xf32>
    %119 = arith.subf %109, %118 : vector<4x32xf32>
    %120 = vector.broadcast %117 : vector<4x1xf32> to vector<4x32xf32>
    %121 = arith.subf %119, %120 : vector<4x32xf32>
    %122 = vector.extract_strided_slice %106 {offsets = [0, 64], sizes = [4, 32], strides = [1, 1]} : vector<4x256xf32> to vector<4x32xf32>
    %123 = vector.extract_strided_slice %106 {offsets = [0, 96], sizes = [4, 32], strides = [1, 1]} : vector<4x256xf32> to vector<4x32xf32>
    %124 = arith.addf %122, %123 : vector<4x32xf32>
    %cst_96 = arith.constant dense<0xFF800000> : vector<4xf32>
    %125 = vector.multi_reduction <maximumf>, %124, %cst_96 [1] : vector<4x32xf32> to vector<4xf32>
    %126 = vector.shape_cast %125 : vector<4xf32> to vector<4x1xf32>
    %127 = vector.broadcast %126 : vector<4x1xf32> to vector<4x32xf32>
    %128 = arith.subf %124, %127 : vector<4x32xf32>
    %129 = math.exp %128 : vector<4x32xf32>
    %cst_97 = arith.constant dense<0.000000e+00> : vector<4xf32>
    %130 = vector.multi_reduction <add>, %129, %cst_97 [1] : vector<4x32xf32> to vector<4xf32>
    %131 = vector.shape_cast %130 : vector<4xf32> to vector<4x1xf32>
    %132 = math.log %131 : vector<4x1xf32>
    %133 = vector.broadcast %126 : vector<4x1xf32> to vector<4x32xf32>
    %134 = arith.subf %124, %133 : vector<4x32xf32>
    %135 = vector.broadcast %132 : vector<4x1xf32> to vector<4x32xf32>
    %136 = arith.subf %134, %135 : vector<4x32xf32>
    %137 = vector.extract_strided_slice %106 {offsets = [0, 128], sizes = [4, 32], strides = [1, 1]} : vector<4x256xf32> to vector<4x32xf32>
    %138 = vector.extract_strided_slice %106 {offsets = [0, 160], sizes = [4, 32], strides = [1, 1]} : vector<4x256xf32> to vector<4x32xf32>
    %139 = arith.addf %137, %138 : vector<4x32xf32>
    %cst_98 = arith.constant dense<0xFF800000> : vector<4xf32>
    %140 = vector.multi_reduction <maximumf>, %139, %cst_98 [1] : vector<4x32xf32> to vector<4xf32>
    %141 = vector.shape_cast %140 : vector<4xf32> to vector<4x1xf32>
    %142 = vector.broadcast %141 : vector<4x1xf32> to vector<4x32xf32>
    %143 = arith.subf %139, %142 : vector<4x32xf32>
    %144 = math.exp %143 : vector<4x32xf32>
    %cst_99 = arith.constant dense<0.000000e+00> : vector<4xf32>
    %145 = vector.multi_reduction <add>, %144, %cst_99 [1] : vector<4x32xf32> to vector<4xf32>
    %146 = vector.shape_cast %145 : vector<4xf32> to vector<4x1xf32>
    %147 = math.log %146 : vector<4x1xf32>
    %148 = vector.broadcast %141 : vector<4x1xf32> to vector<4x32xf32>
    %149 = arith.subf %139, %148 : vector<4x32xf32>
    %150 = vector.broadcast %147 : vector<4x1xf32> to vector<4x32xf32>
    %151 = arith.subf %149, %150 : vector<4x32xf32>
    %152 = vector.extract_strided_slice %106 {offsets = [0, 192], sizes = [4, 32], strides = [1, 1]} : vector<4x256xf32> to vector<4x32xf32>
    %153 = vector.extract_strided_slice %106 {offsets = [0, 224], sizes = [4, 32], strides = [1, 1]} : vector<4x256xf32> to vector<4x32xf32>
    %154 = arith.addf %152, %153 : vector<4x32xf32>
    %cst_100 = arith.constant dense<0xFF800000> : vector<4xf32>
    %155 = vector.multi_reduction <maximumf>, %154, %cst_100 [1] : vector<4x32xf32> to vector<4xf32>
    %156 = vector.shape_cast %155 : vector<4xf32> to vector<4x1xf32>
    %157 = vector.broadcast %156 : vector<4x1xf32> to vector<4x32xf32>
    %158 = arith.subf %154, %157 : vector<4x32xf32>
    %159 = math.exp %158 : vector<4x32xf32>
    %cst_101 = arith.constant dense<0.000000e+00> : vector<4xf32>
    %160 = vector.multi_reduction <add>, %159, %cst_101 [1] : vector<4x32xf32> to vector<4xf32>
    %161 = vector.shape_cast %160 : vector<4xf32> to vector<4x1xf32>
    %162 = math.log %161 : vector<4x1xf32>
    %163 = vector.broadcast %156 : vector<4x1xf32> to vector<4x32xf32>
    %164 = arith.subf %154, %163 : vector<4x32xf32>
    %165 = vector.broadcast %162 : vector<4x1xf32> to vector<4x32xf32>
    %166 = arith.subf %164, %165 : vector<4x32xf32>
    %167 = tpu.concatenate %121, %136, %151, %166 in 1 : vector<4x32xf32>, vector<4x32xf32>, vector<4x32xf32>, vector<4x32xf32> -> vector<4x128xf32>
    %c0_102 = arith.constant 0 : index
    %c0_103 = arith.constant 0 : index
    %c0_104 = arith.constant 0 : index
    %168 = vector.load %arg26[%c0_102, %c0_103, %c0_104] : memref<1x4x128xf32, #tpu.memory_space<vmem>>, vector<1x4x128xf32>
    %169 = vector.shape_cast %168 : vector<1x4x128xf32> to vector<4x128xf32>
    %170 = vector.shape_cast %167 : vector<4x128xf32> to vector<1x4x128xf32>
    tpu.vector_store %arg26[%c0_102, %c0_103, %c0_104], %170 {strides = array<i32>} : memref<1x4x128xf32, #tpu.memory_space<vmem>>, vector<1x4x128xf32>,
    %c0_105 = arith.constant 0 : index
    %c0_106 = arith.constant 0 : index
    %c0_107 = arith.constant 0 : index
    %171 = vector.load %arg27[%c0_105, %c0_106, %c0_107] : memref<1x1x32xf32, #tpu.memory_space<vmem>>, vector<1x1x32xf32>
    %172 = vector.shape_cast %171 : vector<1x1x32xf32> to vector<1x32xf32>
    %173 = vector.shape_cast %82 : vector<1x32xf32> to vector<1x1x32xf32>
    tpu.vector_store %arg27[%c0_105, %c0_106, %c0_107], %173 {strides = array<i32>} : memref<1x1x32xf32, #tpu.memory_space<vmem>>, vector<1x1x32xf32>,
    %c0_108 = arith.constant 0 : index
    %c0_109 = arith.constant 0 : index
    %c0_110 = arith.constant 0 : index
    %174 = vector.load %arg28[%c0_108, %c0_109, %c0_110] : memref<1x1x16xf32, #tpu.memory_space<vmem>>, vector<1x1x16xf32>
    %175 = vector.shape_cast %174 : vector<1x1x16xf32> to vector<1x16xf32>
    %176 = vector.shape_cast %95 : vector<1x16xf32> to vector<1x1x16xf32>
    tpu.vector_store %arg28[%c0_108, %c0_109, %c0_110], %176 {strides = array<i32>} : memref<1x1x16xf32, #tpu.memory_space<vmem>>, vector<1x1x16xf32>,
    return
  }
  func.func @transform_0(%arg0: i32) -> (i32, i32, i32) {
    %c0_i32 = arith.constant 0 : i32
    %c0_i32_0 = arith.constant 0 : i32
    %c0_i32_1 = arith.constant 0 : i32
    return %arg0, %c0_i32, %c0_i32_0 : i32, i32, i32
  }
  func.func @transform_1(%arg0: i32) -> (i32, i32, i32) {
    %c0_i32 = arith.constant 0 : i32
    %c0_i32_0 = arith.constant 0 : i32
    %c0_i32_1 = arith.constant 0 : i32
    %c0_i32_2 = arith.constant 0 : i32
    return %c0_i32, %c0_i32_0, %c0_i32_1 : i32, i32, i32
  }
  func.func @transform_2(%arg0: i32) -> (i32, i32) {
    %c0_i32 = arith.constant 0 : i32
    %c0_i32_0 = arith.constant 0 : i32
    %c0_i32_1 = arith.constant 0 : i32
    return %c0_i32, %c0_i32_0 : i32, i32
  }
  func.func @transform_3(%arg0: i32) -> (i32, i32, i32) {
    %c0_i32 = arith.constant 0 : i32
    %c0_i32_0 = arith.constant 0 : i32
    %c0_i32_1 = arith.constant 0 : i32
    %c0_i32_2 = arith.constant 0 : i32
    return %c0_i32, %c0_i32_0, %c0_i32_1 : i32, i32, i32
  }
  func.func @transform_4(%arg0: i32) -> (i32, i32) {
    %c0_i32 = arith.constant 0 : i32
    %c0_i32_0 = arith.constant 0 : i32
    %c0_i32_1 = arith.constant 0 : i32
    return %c0_i32, %c0_i32_0 : i32, i32
  }
  func.func @transform_5(%arg0: i32) -> (i32, i32) {
    %c0_i32 = arith.constant 0 : i32
    %c0_i32_0 = arith.constant 0 : i32
    %c0_i32_1 = arith.constant 0 : i32
    return %c0_i32, %c0_i32_0 : i32, i32
  }
  func.func @transform_6(%arg0: i32) -> (i32, i32) {
    %c0_i32 = arith.constant 0 : i32
    %c0_i32_0 = arith.constant 0 : i32
    %c0_i32_1 = arith.constant 0 : i32
    return %c0_i32, %c0_i32_0 : i32, i32
  }
  func.func @transform_7(%arg0: i32) -> (i32, i32) {
    %c0_i32 = arith.constant 0 : i32
    %c0_i32_0 = arith.constant 0 : i32
    %c0_i32_1 = arith.constant 0 : i32
    return %c0_i32, %c0_i32_0 : i32, i32
  }
  func.func @transform_8(%arg0: i32) -> (i32, i32) {
    %c0_i32 = arith.constant 0 : i32
    %c0_i32_0 = arith.constant 0 : i32
    %c0_i32_1 = arith.constant 0 : i32
    return %c0_i32, %c0_i32_0 : i32, i32
  }
  func.func @transform_9(%arg0: i32) -> (i32, i32, i32) {
    %c0_i32 = arith.constant 0 : i32
    %c0_i32_0 = arith.constant 0 : i32
    %c0_i32_1 = arith.constant 0 : i32
    return %arg0, %c0_i32, %c0_i32_0 : i32, i32, i32
  }
  func.func @transform_10(%arg0: i32) -> (i32, i32, i32) {
    %c0_i32 = arith.constant 0 : i32
    %c0_i32_0 = arith.constant 0 : i32
    %c0_i32_1 = arith.constant 0 : i32
    return %arg0, %c0_i32, %c0_i32_0 : i32, i32, i32
  }
  func.func @transform_11(%arg0: i32) -> (i32, i32, i32) {
    %c0_i32 = arith.constant 0 : i32
    %c0_i32_0 = arith.constant 0 : i32
    %c0_i32_1 = arith.constant 0 : i32
    return %arg0, %c0_i32, %c0_i32_0 : i32, i32, i32
  }
  func.func @transform_12(%arg0: i32) -> (i32, i32) {
    %c0_i32 = arith.constant 0 : i32
    %c0_i32_0 = arith.constant 0 : i32
    %c0_i32_1 = arith.constant 0 : i32
    return %c0_i32, %c0_i32_0 : i32, i32
  }
  func.func @transform_13(%arg0: i32) -> (i32, i32) {
    %c0_i32 = arith.constant 0 : i32
    %c0_i32_0 = arith.constant 0 : i32
    %c0_i32_1 = arith.constant 0 : i32
    return %c0_i32, %c0_i32_0 : i32, i32
  }
  func.func @transform_14(%arg0: i32) -> (i32, i32) {
    %c0_i32 = arith.constant 0 : i32
    %c0_i32_0 = arith.constant 0 : i32
    %c0_i32_1 = arith.constant 0 : i32
    return %c0_i32, %c0_i32_0 : i32, i32
  }
  func.func @transform_15(%arg0: i32) -> (i32, i32) {
    %c0_i32 = arith.constant 0 : i32
    %c0_i32_0 = arith.constant 0 : i32
    %c0_i32_1 = arith.constant 0 : i32
    return %c0_i32, %c0_i32_0 : i32, i32
  }
  func.func @transform_16(%arg0: i32) -> (i32, i32) {
    %c0_i32 = arith.constant 0 : i32
    %c0_i32_0 = arith.constant 0 : i32
    %c0_i32_1 = arith.constant 0 : i32
    return %c0_i32, %c0_i32_0 : i32, i32
  }
  func.func @transform_17(%arg0: i32) -> (i32, i32) {
    %c0_i32 = arith.constant 0 : i32
    %c0_i32_0 = arith.constant 0 : i32
    %c0_i32_1 = arith.constant 0 : i32
    return %c0_i32, %c0_i32_0 : i32, i32
  }
  func.func @transform_18(%arg0: i32) -> (i32, i32) {
    %c0_i32 = arith.constant 0 : i32
    %c0_i32_0 = arith.constant 0 : i32
    %c0_i32_1 = arith.constant 0 : i32
    return %c0_i32, %c0_i32_0 : i32, i32
  }
  func.func @transform_19(%arg0: i32) -> (i32, i32) {
    %c0_i32 = arith.constant 0 : i32
    %c0_i32_0 = arith.constant 0 : i32
    %c0_i32_1 = arith.constant 0 : i32
    return %c0_i32, %c0_i32_0 : i32, i32
  }
  func.func @transform_20(%arg0: i32) -> (i32, i32) {
    %c0_i32 = arith.constant 0 : i32
    %c0_i32_0 = arith.constant 0 : i32
    %c0_i32_1 = arith.constant 0 : i32
    return %c0_i32, %c0_i32_0 : i32, i32
  }
  func.func @transform_21(%arg0: i32) -> (i32, i32) {
    %c0_i32 = arith.constant 0 : i32
    %c0_i32_0 = arith.constant 0 : i32
    %c0_i32_1 = arith.constant 0 : i32
    return %c0_i32, %c0_i32_0 : i32, i32
  }
  func.func @transform_22(%arg0: i32) -> (i32, i32) {
    %c0_i32 = arith.constant 0 : i32
    %c0_i32_0 = arith.constant 0 : i32
    %c0_i32_1 = arith.constant 0 : i32
    return %c0_i32, %c0_i32_0 : i32, i32
  }
  func.func @transform_23(%arg0: i32) -> (i32, i32) {
    %c0_i32 = arith.constant 0 : i32
    %c0_i32_0 = arith.constant 0 : i32
    %c0_i32_1 = arith.constant 0 : i32
    return %c0_i32, %c0_i32_0 : i32, i32
  }
  func.func @transform_24(%arg0: i32) -> (i32, i32) {
    %c0_i32 = arith.constant 0 : i32
    %c0_i32_0 = arith.constant 0 : i32
    %c0_i32_1 = arith.constant 0 : i32
    return %c0_i32, %c0_i32_0 : i32, i32
  }
  func.func @transform_25(%arg0: i32) -> (i32, i32, i32) {
    %c0_i32 = arith.constant 0 : i32
    %c0_i32_0 = arith.constant 0 : i32
    %c0_i32_1 = arith.constant 0 : i32
    return %arg0, %c0_i32, %c0_i32_0 : i32, i32, i32
  }
  func.func @transform_26(%arg0: i32) -> (i32, i32, i32) {
    %c0_i32 = arith.constant 0 : i32
    %c0_i32_0 = arith.constant 0 : i32
    %c0_i32_1 = arith.constant 0 : i32
    return %arg0, %c0_i32, %c0_i32_0 : i32, i32, i32
  }
  func.func @transform_27(%arg0: i32) -> (i32, i32, i32) {
    %c0_i32 = arith.constant 0 : i32
    %c0_i32_0 = arith.constant 0 : i32
    %c0_i32_1 = arith.constant 0 : i32
    return %arg0, %c0_i32, %c0_i32_0 : i32, i32, i32
  }
}

</mosaic_0001>

<llo_original>
// kernel: forward.1
$region0: #{forward.1}
  #allocation0 [shape = 'u32[]', space=smem, size = 0x4, offset = 0x4, fixed_abs, tag = 'smem constant byte address 0x4 - core index']
  #allocation1 [shape = 'u32[72,128]{1,0:T(1,128)}', space=vmem, size = 0x9000, scoped, tag = 'internal scratch']
  #allocation2 [shape = 'f32[4,384]{1,0:T(4,128)}', space=vmem, size = 0x1800, scoped, tag = 'scratch operand']
  #allocation3 [shape = 'f32[4,128]{1,0:T(4,128)}', space=vmem, size = 0x800, scoped, tag = 'scratch operand']
  #allocation4 [shape = 'f32[4,192]{1,0:T(4,128)}', space=vmem, size = 0x1000, scoped, tag = 'scratch operand']
  #allocation5 [shape = 'f32[4,64]{1,0:T(4,128)}', space=vmem, size = 0x800, scoped, tag = 'scratch operand']
  %s0 = inlined_call_operand.vmem [shape: f32[2,8,16], index: 0, kind: input, shape index: {}]
  %s1 = inlined_call_operand.vmem [shape: bf16[3,16,32], index: 1, kind: input, shape index: {}]
  %s2 = inlined_call_operand.vmem [shape: f32[1,32], index: 2, kind: input, shape index: {}]
  %s3 = inlined_call_operand.vmem [shape: bf16[3,32,32], index: 3, kind: input, shape index: {}]
  %s4 = inlined_call_operand.vmem [shape: f32[1,32], index: 4, kind: input, shape index: {}]
  %s5 = inlined_call_operand.vmem [shape: bf16[32,32], index: 5, kind: input, shape index: {}]
  %s6 = inlined_call_operand.vmem [shape: f32[1,32], index: 6, kind: input, shape index: {}]
  %s7 = inlined_call_operand.vmem [shape: bf16[32,32], index: 7, kind: input, shape index: {}]
  %s8 = inlined_call_operand.vmem [shape: f32[1,32], index: 8, kind: input, shape index: {}]
  %s9 = inlined_call_operand.vmem [shape: f32[2,4,96], index: 9, kind: input, shape index: {}]
  %s10 = inlined_call_operand.vmem [shape: f32[2,1,32], index: 10, kind: input, shape index: {}]
  %s11 = inlined_call_operand.vmem [shape: f32[2,1,16], index: 11, kind: input, shape index: {}]
  %s12 = inlined_call_operand.vmem [shape: bf16[96,384], index: 12, kind: input, shape index: {}]
  %s13 = inlined_call_operand.vmem [shape: bf16[32,384], index: 13, kind: input, shape index: {}]
  %s14 = inlined_call_operand.vmem [shape: f32[1,384], index: 14, kind: input, shape index: {}]
  %s15 = inlined_call_operand.vmem [shape: bf16[32,96], index: 15, kind: input, shape index: {}]
  %s16 = inlined_call_operand.vmem [shape: f32[1,96], index: 16, kind: input, shape index: {}]
  %s17 = inlined_call_operand.vmem [shape: bf16[128,192], index: 17, kind: input, shape index: {}]
  %s18 = inlined_call_operand.vmem [shape: bf16[32,192], index: 18, kind: input, shape index: {}]
  %s19 = inlined_call_operand.vmem [shape: f32[1,192], index: 19, kind: input, shape index: {}]
  %s20 = inlined_call_operand.vmem [shape: bf16[16,48], index: 20, kind: input, shape index: {}]
  %s21 = inlined_call_operand.vmem [shape: f32[1,48], index: 21, kind: input, shape index: {}]
  %s22 = inlined_call_operand.vmem [shape: bf16[64,256], index: 22, kind: input, shape index: {}]
  %s23 = inlined_call_operand.vmem [shape: f32[1,256], index: 23, kind: input, shape index: {}]
  %s24 = inlined_call_operand.vmem [shape: f32[1,256], index: 24, kind: input, shape index: {}]
  %s25 = inlined_call_operand.vmem [shape: f32[2,4,128], index: 25, kind: output, shape index: {0}]
  %s26 = inlined_call_operand.hbm [shape: f32[2,1,32], index: 26, kind: output, shape index: {1}]
  %s27 = inlined_call_operand.hbm [shape: f32[2,1,16], index: 27, kind: output, shape index: {2}]
  %28 = xla_tuple %s25, %s26, %s27
  %s29 = sld [smem:[#allocation0]]
  $region163: #{forward.1} parent=0
    _
  %s31 = ssub.s32 1, %s29
  %s32 = scalar_select 0, %s31, %s29
  $region1: #{forward.1} parent=0
    #allocation6 [shape = 'u8[1024]{0}', space=vmem, size = 0x400, scoped, tag = 'output window, operand 1']
    #allocation7 [shape = 's32[2]{0}', space=sflag, size = 0x8, scoped, tag = 'scoped memory for forward.1']
    #allocation8 [shape = 'u8[1024]{0}', space=vmem, size = 0x400, scoped, tag = 'output window, operand 2']
    #allocation9 [shape = 's32[2]{0}', space=sflag, size = 0x8, scoped, tag = 'scoped memory for forward.1']
    %33 = vsyncpa [#allocation7], 0
    %s34 = scalar_lea.sflag [#allocation7], 1
    %35 = vsyncpa %s34, 0
    %36 = vsyncpa [#allocation9], 0
    %s37 = scalar_lea.sflag [#allocation9], 1
    %38 = vsyncpa %s37, 0
    loop: start=0, step=1, limit=4
    $region2: #{forward.1} parent=1 // loop_pre_header
      _
    $region3: #{forward.1} parent=1 // loop_header
      %s40 = sphi 0, %s44
      %p41 = scmp.ge.s32.totalorder %s40, 4
      %s50 = sphi 0, %s52
      %s53 = sphi 0, %s50
      %s54 = sphi 0, %s53
      %s70 = sphi 0, %s54
      %s74 = sphi 0, %s74
      %s76 = sphi 0, %s74
      %s77 = sphi 0, %s76
      %s91 = sphi 0, %s77
      %s95 = sphi 0, %s95
      %s97 = sphi 0, %s95
      %s98 = sphi 0, %s97
      %s112 = sphi 0, %s98
      %s116 = sphi 0, %s116
      %s118 = sphi 0, %s116
      %s119 = sphi 0, %s118
      %s133 = sphi 0, %s119
      %s137 = sphi 0, %s137
      %s139 = sphi 0, %s137
      %s140 = sphi 0, %s139
      %s154 = sphi 0, %s140
      %s158 = sphi 0, %s158
      %s160 = sphi 0, %s158
      %s161 = sphi 0, %s160
      %s175 = sphi 0, %s161
      %s179 = sphi 0, %s179
      %s181 = sphi 0, %s179
      %s182 = sphi 0, %s181
      %s196 = sphi 0, %s182
      %s200 = sphi 0, %s200
      %s202 = sphi 0, %s200
      %s203 = sphi 0, %s202
      %s217 = sphi 0, %s203
      %s221 = sphi 0, %s221
      %s223 = sphi 0, %s221
      %s224 = sphi 0, %s223
      %s238 = sphi 0, %s224
      %s244 = sphi 0, %s246
      %s247 = sphi 0, %s244
      %s248 = sphi 0, %s247
      %s264 = sphi 0, %s248
      %s270 = sphi 0, %s272
      %s273 = sphi 0, %s270
      %s274 = sphi 0, %s273
      %s290 = sphi 0, %s274
      %s296 = sphi 0, %s298
      %s299 = sphi 0, %s296
      %s300 = sphi 0, %s299
      %s316 = sphi 0, %s300
      %s320 = sphi 0, %s320
      %s322 = sphi 0, %s320
      %s323 = sphi 0, %s322
      %s337 = sphi 0, %s323
      %s341 = sphi 0, %s341
      %s343 = sphi 0, %s341
      %s344 = sphi 0, %s343
      %s358 = sphi 0, %s344
      %s362 = sphi 0, %s362
      %s364 = sphi 0, %s362
      %s365 = sphi 0, %s364
      %s379 = sphi 0, %s365
      %s383 = sphi 0, %s383
      %s385 = sphi 0, %s383
      %s386 = sphi 0, %s385
      %s400 = sphi 0, %s386
      %s404 = sphi 0, %s404
      %s406 = sphi 0, %s404
      %s407 = sphi 0, %s406
      %s421 = sphi 0, %s407
      %s425 = sphi 0, %s425
      %s427 = sphi 0, %s425
      %s428 = sphi 0, %s427
      %s442 = sphi 0, %s428
      %s446 = sphi 0, %s446
      %s448 = sphi 0, %s446
      %s449 = sphi 0, %s448
      %s463 = sphi 0, %s449
      %s467 = sphi 0, %s467
      %s469 = sphi 0, %s467
      %s470 = sphi 0, %s469
      %s484 = sphi 0, %s470
      %s488 = sphi 0, %s488
      %s490 = sphi 0, %s488
      %s491 = sphi 0, %s490
      %s505 = sphi 0, %s491
      %s509 = sphi 0, %s509
      %s511 = sphi 0, %s509
      %s512 = sphi 0, %s511
      %s526 = sphi 0, %s512
      %s530 = sphi 0, %s530
      %s532 = sphi 0, %s530
      %s533 = sphi 0, %s532
      %s547 = sphi 0, %s533
      %s551 = sphi 0, %s551
      %s553 = sphi 0, %s551
      %s554 = sphi 0, %s553
      %s568 = sphi 0, %s554
      %s572 = sphi 0, %s572
      %s574 = sphi 0, %s572
      %s575 = sphi 0, %s574
      %s589 = sphi 0, %s575
      %s595 = sphi 0, %s597
      %s598 = sphi 0, %s595
      %s599 = sphi 0, %s598
      %s615 = sphi 0, %s599
      %s621 = sphi 0, %s623
      %s624 = sphi 0, %s621
      %s625 = sphi 0, %s624
      %s641 = sphi 0, %s625
      %s647 = sphi 0, %s649
      %s650 = sphi 0, %s647
      %s651 = sphi 0, %s650
      %s667 = sphi 0, %s651
    $region4: #{forward.1} parent=1 // loop_header_branch
      %43 = sbr.rel (%p41) target = $region8
    $region5: #{forward.1} parent=1 // loop_body
      %s45 = ssub.s32 %s40, 1
      %s46 = ssub.s32 %s40, 2
      %s47 = sadd.s32 %s40, 1
      %s48 = ssub.s32 %s40, %s47
      %p49 = scmp.eq.s32.totalorder %s48, 0
      %s51 = sadd.s32 %s50, 1
      %s52 = scalar_select %p49, %s50, %s51
      %p55 = pneg %p49
      %p56 = scmp.eq.s32.totalorder %s40, 1
      %p57 = por %p55, %p56
      %p58 = scmp.ne.s32.totalorder %s50, %s53
      %p59 = scmp.eq.s32.totalorder %s40, 0
      %p60 = por %p58, %p59
      %p61 = scmp.ne.s32.totalorder %s50, %s53
      %p62 = scmp.eq.s32.totalorder %s45, 1
      %p63 = por %p61, %p62
      %p64 = scmp.ne.s32.totalorder %s53, %s54
      %p65 = scmp.eq.s32.totalorder %s45, 0
      %p66 = por %p64, %p65
      %p67 = scmp.ne.s32.totalorder %s53, %s54
      %p68 = scmp.eq.s32.totalorder %s46, 1
      %p69 = por %p67, %p68
      %p71 = scmp.ne.s32.totalorder %s54, %s70
      %p72 = scmp.eq.s32.totalorder %s46, 0
      %p73 = por %p71, %p72
      %s75 = sadd.s32 %s74, 1
      %p78 = scmp.eq.s32.totalorder %s40, 1
      %p79 = scmp.ne.s32.totalorder %s74, %s76
      %p80 = scmp.eq.s32.totalorder %s40, 0
      %p81 = por %p79, %p80
      %p82 = scmp.ne.s32.totalorder %s74, %s76
      %p83 = scmp.eq.s32.totalorder %s45, 1
      %p84 = por %p82, %p83
      %p85 = scmp.ne.s32.totalorder %s76, %s77
      %p86 = scmp.eq.s32.totalorder %s45, 0
      %p87 = por %p85, %p86
      %p88 = scmp.ne.s32.totalorder %s76, %s77
      %p89 = scmp.eq.s32.totalorder %s46, 1
      %p90 = por %p88, %p89
      %p92 = scmp.ne.s32.totalorder %s77, %s91
      %p93 = scmp.eq.s32.totalorder %s46, 0
      %p94 = por %p92, %p93
      %s96 = sadd.s32 %s95, 1
      %p99 = scmp.eq.s32.totalorder %s40, 1
      %p100 = scmp.ne.s32.totalorder %s95, %s97
      %p101 = scmp.eq.s32.totalorder %s40, 0
      %p102 = por %p100, %p101
      %p103 = scmp.ne.s32.totalorder %s95, %s97
      %p104 = scmp.eq.s32.totalorder %s45, 1
      %p105 = por %p103, %p104
      %p106 = scmp.ne.s32.totalorder %s97, %s98
      %p107 = scmp.eq.s32.totalorder %s45, 0
      %p108 = por %p106, %p107
      %p109 = scmp.ne.s32.totalorder %s97, %s98
      %p110 = scmp.eq.s32.totalorder %s46, 1
      %p111 = por %p109, %p110
      %p113 = scmp.ne.s32.totalorder %s98, %s112
      %p114 = scmp.eq.s32.totalorder %s46, 0
      %p115 = por %p113, %p114
      %s117 = sadd.s32 %s116, 1
      %p120 = scmp.eq.s32.totalorder %s40, 1
      %p121 = scmp.ne.s32.totalorder %s116, %s118
      %p122 = scmp.eq.s32.totalorder %s40, 0
      %p123 = por %p121, %p122
      %p124 = scmp.ne.s32.totalorder %s116, %s118
      %p125 = scmp.eq.s32.totalorder %s45, 1
      %p126 = por %p124, %p125
      %p127 = scmp.ne.s32.totalorder %s118, %s119
      %p128 = scmp.eq.s32.totalorder %s45, 0
      %p129 = por %p127, %p128
      %p130 = scmp.ne.s32.totalorder %s118, %s119
      %p131 = scmp.eq.s32.totalorder %s46, 1
      %p132 = por %p130, %p131
      %p134 = scmp.ne.s32.totalorder %s119, %s133
      %p135 = scmp.eq.s32.totalorder %s46, 0
      %p136 = por %p134, %p135
      %s138 = sadd.s32 %s137, 1
      %p141 = scmp.eq.s32.totalorder %s40, 1
      %p142 = scmp.ne.s32.totalorder %s137, %s139
      %p143 = scmp.eq.s32.totalorder %s40, 0
      %p144 = por %p142, %p143
      %p145 = scmp.ne.s32.totalorder %s137, %s139
      %p146 = scmp.eq.s32.totalorder %s45, 1
      %p147 = por %p145, %p146
      %p148 = scmp.ne.s32.totalorder %s139, %s140
      %p149 = scmp.eq.s32.totalorder %s45, 0
      %p150 = por %p148, %p149
      %p151 = scmp.ne.s32.totalorder %s139, %s140
      %p152 = scmp.eq.s32.totalorder %s46, 1
      %p153 = por %p151, %p152
      %p155 = scmp.ne.s32.totalorder %s140, %s154
      %p156 = scmp.eq.s32.totalorder %s46, 0
      %p157 = por %p155, %p156
      %s159 = sadd.s32 %s158, 1
      %p162 = scmp.eq.s32.totalorder %s40, 1
      %p163 = scmp.ne.s32.totalorder %s158, %s160
      %p164 = scmp.eq.s32.totalorder %s40, 0
      %p165 = por %p163, %p164
      %p166 = scmp.ne.s32.totalorder %s158, %s160
      %p167 = scmp.eq.s32.totalorder %s45, 1
      %p168 = por %p166, %p167
      %p169 = scmp.ne.s32.totalorder %s160, %s161
      %p170 = scmp.eq.s32.totalorder %s45, 0
      %p171 = por %p169, %p170
      %p172 = scmp.ne.s32.totalorder %s160, %s161
      %p173 = scmp.eq.s32.totalorder %s46, 1
      %p174 = por %p172, %p173
      %p176 = scmp.ne.s32.totalorder %s161, %s175
      %p177 = scmp.eq.s32.totalorder %s46, 0
      %p178 = por %p176, %p177
      %s180 = sadd.s32 %s179, 1
      %p183 = scmp.eq.s32.totalorder %s40, 1
      %p184 = scmp.ne.s32.totalorder %s179, %s181
      %p185 = scmp.eq.s32.totalorder %s40, 0
      %p186 = por %p184, %p185
      %p187 = scmp.ne.s32.totalorder %s179, %s181
      %p188 = scmp.eq.s32.totalorder %s45, 1
      %p189 = por %p187, %p188
      %p190 = scmp.ne.s32.totalorder %s181, %s182
      %p191 = scmp.eq.s32.totalorder %s45, 0
      %p192 = por %p190, %p191
      %p193 = scmp.ne.s32.totalorder %s181, %s182
      %p194 = scmp.eq.s32.totalorder %s46, 1
      %p195 = por %p193, %p194
      %p197 = scmp.ne.s32.totalorder %s182, %s196
      %p198 = scmp.eq.s32.totalorder %s46, 0
      %p199 = por %p197, %p198
      %s201 = sadd.s32 %s200, 1
      %p204 = scmp.eq.s32.totalorder %s40, 1
      %p205 = scmp.ne.s32.totalorder %s200, %s202
      %p206 = scmp.eq.s32.totalorder %s40, 0
      %p207 = por %p205, %p206
      %p208 = scmp.ne.s32.totalorder %s200, %s202
      %p209 = scmp.eq.s32.totalorder %s45, 1
      %p210 = por %p208, %p209
      %p211 = scmp.ne.s32.totalorder %s202, %s203
      %p212 = scmp.eq.s32.totalorder %s45, 0
      %p213 = por %p211, %p212
      %p214 = scmp.ne.s32.totalorder %s202, %s203
      %p215 = scmp.eq.s32.totalorder %s46, 1
      %p216 = por %p214, %p215
      %p218 = scmp.ne.s32.totalorder %s203, %s217
      %p219 = scmp.eq.s32.totalorder %s46, 0
      %p220 = por %p218, %p219
      %s222 = sadd.s32 %s221, 1
      %p225 = scmp.eq.s32.totalorder %s40, 1
      %p226 = scmp.ne.s32.totalorder %s221, %s223
      %p227 = scmp.eq.s32.totalorder %s40, 0
      %p228 = por %p226, %p227
      %p229 = scmp.ne.s32.totalorder %s221, %s223
      %p230 = scmp.eq.s32.totalorder %s45, 1
      %p231 = por %p229, %p230
      %p232 = scmp.ne.s32.totalorder %s223, %s224
      %p233 = scmp.eq.s32.totalorder %s45, 0
      %p234 = por %p232, %p233
      %p235 = scmp.ne.s32.totalorder %s223, %s224
      %p236 = scmp.eq.s32.totalorder %s46, 1
      %p237 = por %p235, %p236
      %p239 = scmp.ne.s32.totalorder %s224, %s238
      %p240 = scmp.eq.s32.totalorder %s46, 0
      %p241 = por %p239, %p240
      %s242 = ssub.s32 %s40, %s47
      %p243 = scmp.eq.s32.totalorder %s242, 0
      %s245 = sadd.s32 %s244, 1
      %s246 = scalar_select %p243, %s244, %s245
      %p249 = pneg %p243
      %p250 = scmp.eq.s32.totalorder %s40, 1
      %p251 = por %p249, %p250
      %p252 = scmp.ne.s32.totalorder %s244, %s247
      %p253 = scmp.eq.s32.totalorder %s40, 0
      %p254 = por %p252, %p253
      %p255 = scmp.ne.s32.totalorder %s244, %s247
      %p256 = scmp.eq.s32.totalorder %s45, 1
      %p257 = por %p255, %p256
      %p258 = scmp.ne.s32.totalorder %s247, %s248
      %p259 = scmp.eq.s32.totalorder %s45, 0
      %p260 = por %p258, %p259
      %p261 = scmp.ne.s32.totalorder %s247, %s248
      %p262 = scmp.eq.s32.totalorder %s46, 1
      %p263 = por %p261, %p262
      %p265 = scmp.ne.s32.totalorder %s248, %s264
      %p266 = scmp.eq.s32.totalorder %s46, 0
      %p267 = por %p265, %p266
      %s268 = ssub.s32 %s40, %s47
      %p269 = scmp.eq.s32.totalorder %s268, 0
      %s271 = sadd.s32 %s270, 1
      %s272 = scalar_select %p269, %s270, %s271
      %p275 = pneg %p269
      %p276 = scmp.eq.s32.totalorder %s40, 1
      %p277 = por %p275, %p276
      %p278 = scmp.ne.s32.totalorder %s270, %s273
      %p279 = scmp.eq.s32.totalorder %s40, 0
      %p280 = por %p278, %p279
      %p281 = scmp.ne.s32.totalorder %s270, %s273
      %p282 = scmp.eq.s32.totalorder %s45, 1
      %p283 = por %p281, %p282
      %p284 = scmp.ne.s32.totalorder %s273, %s274
      %p285 = scmp.eq.s32.totalorder %s45, 0
      %p286 = por %p284, %p285
      %p287 = scmp.ne.s32.totalorder %s273, %s274
      %p288 = scmp.eq.s32.totalorder %s46, 1
      %p289 = por %p287, %p288
      %p291 = scmp.ne.s32.totalorder %s274, %s290
      %p292 = scmp.eq.s32.totalorder %s46, 0
      %p293 = por %p291, %p292
      %s294 = ssub.s32 %s40, %s47
      %p295 = scmp.eq.s32.totalorder %s294, 0
      %s297 = sadd.s32 %s296, 1
      %s298 = scalar_select %p295, %s296, %s297
      %p301 = pneg %p295
      %p302 = scmp.eq.s32.totalorder %s40, 1
      %p303 = por %p301, %p302
      %p304 = scmp.ne.s32.totalorder %s296, %s299
      %p305 = scmp.eq.s32.totalorder %s40, 0
      %p306 = por %p304, %p305
      %p307 = scmp.ne.s32.totalorder %s296, %s299
      %p308 = scmp.eq.s32.totalorder %s45, 1
      %p309 = por %p307, %p308
      %p310 = scmp.ne.s32.totalorder %s299, %s300
      %p311 = scmp.eq.s32.totalorder %s45, 0
      %p312 = por %p310, %p311
      %p313 = scmp.ne.s32.totalorder %s299, %s300
      %p314 = scmp.eq.s32.totalorder %s46, 1
      %p315 = por %p313, %p314
      %p317 = scmp.ne.s32.totalorder %s300, %s316
      %p318 = scmp.eq.s32.totalorder %s46, 0
      %p319 = por %p317, %p318
      %s321 = sadd.s32 %s320, 1
      %p324 = scmp.eq.s32.totalorder %s40, 1
      %p325 = scmp.ne.s32.totalorder %s320, %s322
      %p326 = scmp.eq.s32.totalorder %s40, 0
      %p327 = por %p325, %p326
      %p328 = scmp.ne.s32.totalorder %s320, %s322
      %p329 = scmp.eq.s32.totalorder %s45, 1
      %p330 = por %p328, %p329
      %p331 = scmp.ne.s32.totalorder %s322, %s323
      %p332 = scmp.eq.s32.totalorder %s45, 0
      %p333 = por %p331, %p332
      %p334 = scmp.ne.s32.totalorder %s322, %s323
      %p335 = scmp.eq.s32.totalorder %s46, 1
      %p336 = por %p334, %p335
      %p338 = scmp.ne.s32.totalorder %s323, %s337
      %p339 = scmp.eq.s32.totalorder %s46, 0
      %p340 = por %p338, %p339
      %s342 = sadd.s32 %s341, 1
      %p345 = scmp.eq.s32.totalorder %s40, 1
      %p346 = scmp.ne.s32.totalorder %s341, %s343
      %p347 = scmp.eq.s32.totalorder %s40, 0
      %p348 = por %p346, %p347
      %p349 = scmp.ne.s32.totalorder %s341, %s343
      %p350 = scmp.eq.s32.totalorder %s45, 1
      %p351 = por %p349, %p350
      %p352 = scmp.ne.s32.totalorder %s343, %s344
      %p353 = scmp.eq.s32.totalorder %s45, 0
      %p354 = por %p352, %p353
      %p355 = scmp.ne.s32.totalorder %s343, %s344
      %p356 = scmp.eq.s32.totalorder %s46, 1
      %p357 = por %p355, %p356
      %p359 = scmp.ne.s32.totalorder %s344, %s358
      %p360 = scmp.eq.s32.totalorder %s46, 0
      %p361 = por %p359, %p360
      %s363 = sadd.s32 %s362, 1
      %p366 = scmp.eq.s32.totalorder %s40, 1
      %p367 = scmp.ne.s32.totalorder %s362, %s364
      %p368 = scmp.eq.s32.totalorder %s40, 0
      %p369 = por %p367, %p368
      %p370 = scmp.ne.s32.totalorder %s362, %s364
      %p371 = scmp.eq.s32.totalorder %s45, 1
      %p372 = por %p370, %p371
      %p373 = scmp.ne.s32.totalorder %s364, %s365
      %p374 = scmp.eq.s32.totalorder %s45, 0
      %p375 = por %p373, %p374
      %p376 = scmp.ne.s32.totalorder %s364, %s365
      %p377 = scmp.eq.s32.totalorder %s46, 1
      %p378 = por %p376, %p377
      %p380 = scmp.ne.s32.totalorder %s365, %s379
      %p381 = scmp.eq.s32.totalorder %s46, 0
      %p382 = por %p380, %p381
      %s384 = sadd.s32 %s383, 1
      %p387 = scmp.eq.s32.totalorder %s40, 1
      %p388 = scmp.ne.s32.totalorder %s383, %s385
      %p389 = scmp.eq.s32.totalorder %s40, 0
      %p390 = por %p388, %p389
      %p391 = scmp.ne.s32.totalorder %s383, %s385
      %p392 = scmp.eq.s32.totalorder %s45, 1
      %p393 = por %p391, %p392
      %p394 = scmp.ne.s32.totalorder %s385, %s386
      %p395 = scmp.eq.s32.totalorder %s45, 0
      %p396 = por %p394, %p395
      %p397 = scmp.ne.s32.totalorder %s385, %s386
      %p398 = scmp.eq.s32.totalorder %s46, 1
      %p399 = por %p397, %p398
      %p401 = scmp.ne.s32.totalorder %s386, %s400
      %p402 = scmp.eq.s32.totalorder %s46, 0
      %p403 = por %p401, %p402
      %s405 = sadd.s32 %s404, 1
      %p408 = scmp.eq.s32.totalorder %s40, 1
      %p409 = scmp.ne.s32.totalorder %s404, %s406
      %p410 = scmp.eq.s32.totalorder %s40, 0
      %p411 = por %p409, %p410
      %p412 = scmp.ne.s32.totalorder %s404, %s406
      %p413 = scmp.eq.s32.totalorder %s45, 1
      %p414 = por %p412, %p413
      %p415 = scmp.ne.s32.totalorder %s406, %s407
      %p416 = scmp.eq.s32.totalorder %s45, 0
      %p417 = por %p415, %p416
      %p418 = scmp.ne.s32.totalorder %s406, %s407
      %p419 = scmp.eq.s32.totalorder %s46, 1
      %p420 = por %p418, %p419
      %p422 = scmp.ne.s32.totalorder %s407, %s421
      %p423 = scmp.eq.s32.totalorder %s46, 0
      %p424 = por %p422, %p423
      %s426 = sadd.s32 %s425, 1
      %p429 = scmp.eq.s32.totalorder %s40, 1
      %p430 = scmp.ne.s32.totalorder %s425, %s427
      %p431 = scmp.eq.s32.totalorder %s40, 0
      %p432 = por %p430, %p431
      %p433 = scmp.ne.s32.totalorder %s425, %s427
      %p434 = scmp.eq.s32.totalorder %s45, 1
      %p435 = por %p433, %p434
      %p436 = scmp.ne.s32.totalorder %s427, %s428
      %p437 = scmp.eq.s32.totalorder %s45, 0
      %p438 = por %p436, %p437
      %p439 = scmp.ne.s32.totalorder %s427, %s428
      %p440 = scmp.eq.s32.totalorder %s46, 1
      %p441 = por %p439, %p440
      %p443 = scmp.ne.s32.totalorder %s428, %s442
      %p444 = scmp.eq.s32.totalorder %s46, 0
      %p445 = por %p443, %p444
      %s447 = sadd.s32 %s446, 1
      %p450 = scmp.eq.s32.totalorder %s40, 1
      %p451 = scmp.ne.s32.totalorder %s446, %s448
      %p452 = scmp.eq.s32.totalorder %s40, 0
      %p453 = por %p451, %p452
      %p454 = scmp.ne.s32.totalorder %s446, %s448
      %p455 = scmp.eq.s32.totalorder %s45, 1
      %p456 = por %p454, %p455
      %p457 = scmp.ne.s32.totalorder %s448, %s449
      %p458 = scmp.eq.s32.totalorder %s45, 0
      %p459 = por %p457, %p458
      %p460 = scmp.ne.s32.totalorder %s448, %s449
      %p461 = scmp.eq.s32.totalorder %s46, 1
      %p462 = por %p460, %p461
      %p464 = scmp.ne.s32.totalorder %s449, %s463
      %p465 = scmp.eq.s32.totalorder %s46, 0
      %p466 = por %p464, %p465
      %s468 = sadd.s32 %s467, 1
      %p471 = scmp.eq.s32.totalorder %s40, 1
      %p472 = scmp.ne.s32.totalorder %s467, %s469
      %p473 = scmp.eq.s32.totalorder %s40, 0
      %p474 = por %p472, %p473
      %p475 = scmp.ne.s32.totalorder %s467, %s469
      %p476 = scmp.eq.s32.totalorder %s45, 1
      %p477 = por %p475, %p476
      %p478 = scmp.ne.s32.totalorder %s469, %s470
      %p479 = scmp.eq.s32.totalorder %s45, 0
      %p480 = por %p478, %p479
      %p481 = scmp.ne.s32.totalorder %s469, %s470
      %p482 = scmp.eq.s32.totalorder %s46, 1
      %p483 = por %p481, %p482
      %p485 = scmp.ne.s32.totalorder %s470, %s484
      %p486 = scmp.eq.s32.totalorder %s46, 0
      %p487 = por %p485, %p486
      %s489 = sadd.s32 %s488, 1
      %p492 = scmp.eq.s32.totalorder %s40, 1
      %p493 = scmp.ne.s32.totalorder %s488, %s490
      %p494 = scmp.eq.s32.totalorder %s40, 0
      %p495 = por %p493, %p494
      %p496 = scmp.ne.s32.totalorder %s488, %s490
      %p497 = scmp.eq.s32.totalorder %s45, 1
      %p498 = por %p496, %p497
      %p499 = scmp.ne.s32.totalorder %s490, %s491
      %p500 = scmp.eq.s32.totalorder %s45, 0
      %p501 = por %p499, %p500
      %p502 = scmp.ne.s32.totalorder %s490, %s491
      %p503 = scmp.eq.s32.totalorder %s46, 1
      %p504 = por %p502, %p503
      %p506 = scmp.ne.s32.totalorder %s491, %s505
      %p507 = scmp.eq.s32.totalorder %s46, 0
      %p508 = por %p506, %p507
      %s510 = sadd.s32 %s509, 1
      %p513 = scmp.eq.s32.totalorder %s40, 1
      %p514 = scmp.ne.s32.totalorder %s509, %s511
      %p515 = scmp.eq.s32.totalorder %s40, 0
      %p516 = por %p514, %p515
      %p517 = scmp.ne.s32.totalorder %s509, %s511
      %p518 = scmp.eq.s32.totalorder %s45, 1
      %p519 = por %p517, %p518
      %p520 = scmp.ne.s32.totalorder %s511, %s512
      %p521 = scmp.eq.s32.totalorder %s45, 0
      %p522 = por %p520, %p521
      %p523 = scmp.ne.s32.totalorder %s511, %s512
      %p524 = scmp.eq.s32.totalorder %s46, 1
      %p525 = por %p523, %p524
      %p527 = scmp.ne.s32.totalorder %s512, %s526
      %p528 = scmp.eq.s32.totalorder %s46, 0
      %p529 = por %p527, %p528
      %s531 = sadd.s32 %s530, 1
      %p534 = scmp.eq.s32.totalorder %s40, 1
      %p535 = scmp.ne.s32.totalorder %s530, %s532
      %p536 = scmp.eq.s32.totalorder %s40, 0
      %p537 = por %p535, %p536
      %p538 = scmp.ne.s32.totalorder %s530, %s532
      %p539 = scmp.eq.s32.totalorder %s45, 1
      %p540 = por %p538, %p539
      %p541 = scmp.ne.s32.totalorder %s532, %s533
      %p542 = scmp.eq.s32.totalorder %s45, 0
      %p543 = por %p541, %p542
      %p544 = scmp.ne.s32.totalorder %s532, %s533
      %p545 = scmp.eq.s32.totalorder %s46, 1
      %p546 = por %p544, %p545
      %p548 = scmp.ne.s32.totalorder %s533, %s547
      %p549 = scmp.eq.s32.totalorder %s46, 0
      %p550 = por %p548, %p549
      %s552 = sadd.s32 %s551, 1
      %p555 = scmp.eq.s32.totalorder %s40, 1
      %p556 = scmp.ne.s32.totalorder %s551, %s553
      %p557 = scmp.eq.s32.totalorder %s40, 0
      %p558 = por %p556, %p557
      %p559 = scmp.ne.s32.totalorder %s551, %s553
      %p560 = scmp.eq.s32.totalorder %s45, 1
      %p561 = por %p559, %p560
      %p562 = scmp.ne.s32.totalorder %s553, %s554
      %p563 = scmp.eq.s32.totalorder %s45, 0
      %p564 = por %p562, %p563
      %p565 = scmp.ne.s32.totalorder %s553, %s554
      %p566 = scmp.eq.s32.totalorder %s46, 1
      %p567 = por %p565, %p566
      %p569 = scmp.ne.s32.totalorder %s554, %s568
      %p570 = scmp.eq.s32.totalorder %s46, 0
      %p571 = por %p569, %p570
      %s573 = sadd.s32 %s572, 1
      %p576 = scmp.eq.s32.totalorder %s40, 1
      %p577 = scmp.ne.s32.totalorder %s572, %s574
      %p578 = scmp.eq.s32.totalorder %s40, 0
      %p579 = por %p577, %p578
      %p580 = scmp.ne.s32.totalorder %s572, %s574
      %p581 = scmp.eq.s32.totalorder %s45, 1
      %p582 = por %p580, %p581
      %p583 = scmp.ne.s32.totalorder %s574, %s575
      %p584 = scmp.eq.s32.totalorder %s45, 0
      %p585 = por %p583, %p584
      %p586 = scmp.ne.s32.totalorder %s574, %s575
      %p587 = scmp.eq.s32.totalorder %s46, 1
      %p588 = por %p586, %p587
      %p590 = scmp.ne.s32.totalorder %s575, %s589
      %p591 = scmp.eq.s32.totalorder %s46, 0
      %p592 = por %p590, %p591
      %s593 = ssub.s32 %s40, %s47
      %p594 = scmp.eq.s32.totalorder %s593, 0
      %s596 = sadd.s32 %s595, 1
      %s597 = scalar_select %p594, %s595, %s596
      %p600 = pneg %p594
      %p601 = scmp.eq.s32.totalorder %s40, 1
      %p602 = por %p600, %p601
      %p603 = scmp.ne.s32.totalorder %s595, %s598
      %p604 = scmp.eq.s32.totalorder %s40, 0
      %p605 = por %p603, %p604
      %p606 = scmp.ne.s32.totalorder %s595, %s598
      %p607 = scmp.eq.s32.totalorder %s45, 1
      %p608 = por %p606, %p607
      %p609 = scmp.ne.s32.totalorder %s598, %s599
      %p610 = scmp.eq.s32.totalorder %s45, 0
      %p611 = por %p609, %p610
      %p612 = scmp.ne.s32.totalorder %s598, %s599
      %p613 = scmp.eq.s32.totalorder %s46, 1
      %p614 = por %p612, %p613
      %p616 = scmp.ne.s32.totalorder %s599, %s615
      %p617 = scmp.eq.s32.totalorder %s46, 0
      %p618 = por %p616, %p617
      %s619 = ssub.s32 %s40, %s47
      %p620 = scmp.eq.s32.totalorder %s619, 0
      %s622 = sadd.s32 %s621, 1
      %s623 = scalar_select %p620, %s621, %s622
      %p626 = pneg %p620
      %p627 = scmp.eq.s32.totalorder %s40, 1
      %p628 = por %p626, %p627
      %p629 = scmp.ne.s32.totalorder %s621, %s624
      %p630 = scmp.eq.s32.totalorder %s40, 0
      %p631 = por %p629, %p630
      %p632 = scmp.ne.s32.totalorder %s621, %s624
      %p633 = scmp.eq.s32.totalorder %s45, 1
      %p634 = por %p632, %p633
      %p635 = scmp.ne.s32.totalorder %s624, %s625
      %p636 = scmp.eq.s32.totalorder %s45, 0
      %p637 = por %p635, %p636
      %p638 = scmp.ne.s32.totalorder %s624, %s625
      %p639 = scmp.eq.s32.totalorder %s46, 1
      %p640 = por %p638, %p639
      %p642 = scmp.ne.s32.totalorder %s625, %s641
      %p643 = scmp.eq.s32.totalorder %s46, 0
      %p644 = por %p642, %p643
      %s645 = ssub.s32 %s40, %s47
      %p646 = scmp.eq.s32.totalorder %s645, 0
      %s648 = sadd.s32 %s647, 1
      %s649 = scalar_select %p646, %s647, %s648
      %p652 = pneg %p646
      %p653 = scmp.eq.s32.totalorder %s40, 1
      %p654 = por %p652, %p653
      %p655 = scmp.ne.s32.totalorder %s647, %s650
      %p656 = scmp.eq.s32.totalorder %s40, 0
      %p657 = por %p655, %p656
      %p658 = scmp.ne.s32.totalorder %s647, %s650
      %p659 = scmp.eq.s32.totalorder %s45, 1
      %p660 = por %p658, %p659
      %p661 = scmp.ne.s32.totalorder %s650, %s651
      %p662 = scmp.eq.s32.totalorder %s45, 0
      %p663 = por %p661, %p662
      %p664 = scmp.ne.s32.totalorder %s650, %s651
      %p665 = scmp.eq.s32.totalorder %s46, 1
      %p666 = por %p664, %p665
      %p668 = scmp.ne.s32.totalorder %s651, %s667
      %p669 = scmp.eq.s32.totalorder %s46, 0
      %p670 = por %p668, %p669
      %p671 = scmp.le.s32.totalorder 1, %s40
      %p672 = scmp.lt.s32.totalorder %s40, 3
      %p673 = pnand %p671, %p672
      %p674 = pneg %p673
      // Predicated region
      $region9: #{forward.1} parent=5 // pred_check
        _
      $region10: #{forward.1} parent=5 // pred_check_branch
        %676 = sbr.rel (%p673) target = $region12
      $region11: #{forward.1} parent=5 // pred_region
        %s677 = ssub.s32 %s40, 1
        // Predicated region
        $region13: #{forward.1} parent=11 // pred_check
          %p678 = pneg %p87
        $region14: #{forward.1} parent=11 // pred_check_branch
          %680 = sbr.rel (%p678) target = $region16
        $region15: #{forward.1} parent=11 // pred_region
          _
        $region16: #{forward.1} parent=11 // pred_fallthru
          _
        // Predicated region
        $region17: #{forward.1} parent=11 // pred_check
          %p681 = pneg %p108
        $region18: #{forward.1} parent=11 // pred_check_branch
          %683 = sbr.rel (%p681) target = $region20
        $region19: #{forward.1} parent=11 // pred_region
          _
        $region20: #{forward.1} parent=11 // pred_fallthru
          _
        // Predicated region
        $region21: #{forward.1} parent=11 // pred_check
          %p684 = pneg %p129
        $region22: #{forward.1} parent=11 // pred_check_branch
          %686 = sbr.rel (%p684) target = $region24
        $region23: #{forward.1} parent=11 // pred_region
          _
        $region24: #{forward.1} parent=11 // pred_fallthru
          _
        // Predicated region
        $region25: #{forward.1} parent=11 // pred_check
          %p687 = pneg %p150
        $region26: #{forward.1} parent=11 // pred_check_branch
          %689 = sbr.rel (%p687) target = $region28
        $region27: #{forward.1} parent=11 // pred_region
          _
        $region28: #{forward.1} parent=11 // pred_fallthru
          _
        // Predicated region
        $region29: #{forward.1} parent=11 // pred_check
          %p690 = pneg %p171
        $region30: #{forward.1} parent=11 // pred_check_branch
          %692 = sbr.rel (%p690) target = $region32
        $region31: #{forward.1} parent=11 // pred_region
          _
        $region32: #{forward.1} parent=11 // pred_fallthru
          _
        // Predicated region
        $region33: #{forward.1} parent=11 // pred_check
          %p693 = pneg %p192
        $region34: #{forward.1} parent=11 // pred_check_branch
          %695 = sbr.rel (%p693) target = $region36
        $region35: #{forward.1} parent=11 // pred_region
          _
        $region36: #{forward.1} parent=11 // pred_fallthru
          _
        // Predicated region
        $region37: #{forward.1} parent=11 // pred_check
          %p696 = pneg %p213
        $region38: #{forward.1} parent=11 // pred_check_branch
          %698 = sbr.rel (%p696) target = $region40
        $region39: #{forward.1} parent=11 // pred_region
          _
        $region40: #{forward.1} parent=11 // pred_fallthru
          _
        // Predicated region
        $region41: #{forward.1} parent=11 // pred_check
          %p699 = pneg %p234
        $region42: #{forward.1} parent=11 // pred_check_branch
          %701 = sbr.rel (%p699) target = $region44
        $region43: #{forward.1} parent=11 // pred_region
          _
        $region44: #{forward.1} parent=11 // pred_fallthru
          _
        // Predicated region
        $region45: #{forward.1} parent=11 // pred_check
          %p702 = pneg %p333
        $region46: #{forward.1} parent=11 // pred_check_branch
          %704 = sbr.rel (%p702) target = $region48
        $region47: #{forward.1} parent=11 // pred_region
          _
        $region48: #{forward.1} parent=11 // pred_fallthru
          _
        // Predicated region
        $region49: #{forward.1} parent=11 // pred_check
          %p705 = pneg %p354
        $region50: #{forward.1} parent=11 // pred_check_branch
          %707 = sbr.rel (%p705) target = $region52
        $region51: #{forward.1} parent=11 // pred_region
          _
        $region52: #{forward.1} parent=11 // pred_fallthru
          _
        // Predicated region
        $region53: #{forward.1} parent=11 // pred_check
          %p708 = pneg %p375
        $region54: #{forward.1} parent=11 // pred_check_branch
          %710 = sbr.rel (%p708) target = $region56
        $region55: #{forward.1} parent=11 // pred_region
          _
        $region56: #{forward.1} parent=11 // pred_fallthru
          _
        // Predicated region
        $region57: #{forward.1} parent=11 // pred_check
          %p711 = pneg %p396
        $region58: #{forward.1} parent=11 // pred_check_branch
          %713 = sbr.rel (%p711) target = $region60
        $region59: #{forward.1} parent=11 // pred_region
          _
        $region60: #{forward.1} parent=11 // pred_fallthru
          _
        // Predicated region
        $region61: #{forward.1} parent=11 // pred_check
          %p714 = pneg %p417
        $region62: #{forward.1} parent=11 // pred_check_branch
          %716 = sbr.rel (%p714) target = $region64
        $region63: #{forward.1} parent=11 // pred_region
          _
        $region64: #{forward.1} parent=11 // pred_fallthru
          _
        // Predicated region
        $region65: #{forward.1} parent=11 // pred_check
          %p717 = pneg %p438
        $region66: #{forward.1} parent=11 // pred_check_branch
          %719 = sbr.rel (%p717) target = $region68
        $region67: #{forward.1} parent=11 // pred_region
          _
        $region68: #{forward.1} parent=11 // pred_fallthru
          _
        // Predicated region
        $region69: #{forward.1} parent=11 // pred_check
          %p720 = pneg %p459
        $region70: #{forward.1} parent=11 // pred_check_branch
          %722 = sbr.rel (%p720) target = $region72
        $region71: #{forward.1} parent=11 // pred_region
          _
        $region72: #{forward.1} parent=11 // pred_fallthru
          _
        // Predicated region
        $region73: #{forward.1} parent=11 // pred_check
          %p723 = pneg %p480
        $region74: #{forward.1} parent=11 // pred_check_branch
          %725 = sbr.rel (%p723) target = $region76
        $region75: #{forward.1} parent=11 // pred_region
          _
        $region76: #{forward.1} parent=11 // pred_fallthru
          _
        // Predicated region
        $region77: #{forward.1} parent=11 // pred_check
          %p726 = pneg %p501
        $region78: #{forward.1} parent=11 // pred_check_branch
          %728 = sbr.rel (%p726) target = $region80
        $region79: #{forward.1} parent=11 // pred_region
          _
        $region80: #{forward.1} parent=11 // pred_fallthru
          _
        // Predicated region
        $region81: #{forward.1} parent=11 // pred_check
          %p729 = pneg %p522
        $region82: #{forward.1} parent=11 // pred_check_branch
          %731 = sbr.rel (%p729) target = $region84
        $region83: #{forward.1} parent=11 // pred_region
          _
        $region84: #{forward.1} parent=11 // pred_fallthru
          _
        // Predicated region
        $region85: #{forward.1} parent=11 // pred_check
          %p732 = pneg %p543
        $region86: #{forward.1} parent=11 // pred_check_branch
          %734 = sbr.rel (%p732) target = $region88
        $region87: #{forward.1} parent=11 // pred_region
          _
        $region88: #{forward.1} parent=11 // pred_fallthru
          _
        // Predicated region
        $region89: #{forward.1} parent=11 // pred_check
          %p735 = pneg %p564
        $region90: #{forward.1} parent=11 // pred_check_branch
          %737 = sbr.rel (%p735) target = $region92
        $region91: #{forward.1} parent=11 // pred_region
          _
        $region92: #{forward.1} parent=11 // pred_fallthru
          _
        // Predicated region
        $region93: #{forward.1} parent=11 // pred_check
          %p738 = pneg %p585
        $region94: #{forward.1} parent=11 // pred_check_branch
          %740 = sbr.rel (%p738) target = $region96
        $region95: #{forward.1} parent=11 // pred_region
          _
        $region96: #{forward.1} parent=11 // pred_fallthru
          _
      $region12: #{forward.1} parent=5 // pred_fallthru
        _
      %p741 = scmp.lt.s32.totalorder %s40, 2
      // Predicated region
      $region97: #{forward.1} parent=5 // pred_check
        %p742 = pneg %p741
      $region98: #{forward.1} parent=5 // pred_check_branch
        %744 = sbr.rel (%p742) target = $region100
      $region99: #{forward.1} parent=5 // pred_region
        // Predicated region
        $region101: #{forward.1} parent=99 // pred_check
          %p745 = pneg %p60
        $region102: #{forward.1} parent=99 // pred_check_branch
          %747 = sbr.rel (%p745) target = $region104
        $region103: #{forward.1} parent=99 // pred_region
          %p748 = scmp.lt.s32.totalorder %s40, 1
          %s749 = scalar_select %p748, %s40, 1
          %s750 = smul.addr %s749, 8
          %s751 = scalar_lea.vmem %s0, %s750
        $region104: #{forward.1} parent=99 // pred_fallthru
          _
        // Predicated region
        $region105: #{forward.1} parent=99 // pred_check
          %p752 = pneg %p254
        $region106: #{forward.1} parent=99 // pred_check_branch
          %754 = sbr.rel (%p752) target = $region108
        $region107: #{forward.1} parent=99 // pred_region
          %p755 = scmp.lt.s32.totalorder %s40, 1
          %s756 = scalar_select %p755, %s40, 1
          %s757 = smul.addr %s756, 4
          %s758 = scalar_lea.vmem %s9, %s757
        $region108: #{forward.1} parent=99 // pred_fallthru
          _
        // Predicated region
        $region109: #{forward.1} parent=99 // pred_check
          %p759 = pneg %p280
        $region110: #{forward.1} parent=99 // pred_check_branch
          %761 = sbr.rel (%p759) target = $region112
        $region111: #{forward.1} parent=99 // pred_region
          %p762 = scmp.lt.s32.totalorder %s40, 1
          %s763 = scalar_select %p762, %s40, 1
          %s764 = scalar_lea.vmem %s10, %s763
        $region112: #{forward.1} parent=99 // pred_fallthru
          _
        // Predicated region
        $region113: #{forward.1} parent=99 // pred_check
          %p765 = pneg %p306
        $region114: #{forward.1} parent=99 // pred_check_branch
          %767 = sbr.rel (%p765) target = $region116
        $region115: #{forward.1} parent=99 // pred_region
          %p768 = scmp.lt.s32.totalorder %s40, 1
          %s769 = scalar_select %p768, %s40, 1
          %s770 = scalar_lea.vmem %s11, %s769
        $region116: #{forward.1} parent=99 // pred_fallthru
          _
      $region100: #{forward.1} parent=5 // pred_fallthru
        _
      %p771 = scmp.le.s32.totalorder 1, %s40
      %p772 = scmp.lt.s32.totalorder %s40, 3
      %p773 = pnand %p771, %p772
      %p774 = pneg %p773
      // Predicated region
      $region117: #{forward.1} parent=5 // pred_check
        _
      $region118: #{forward.1} parent=5 // pred_check_branch
        %776 = sbr.rel (%p773) target = $region120
      $region119: #{forward.1} parent=5 // pred_region
        %s777 = ssub.s32 %s40, 1
        %p778 = scmp.lt.s32.totalorder %s45, 1
        %s779 = scalar_select %p778, %s45, 1
        %s780 = smul.addr %s779, 8
        %s781 = scalar_lea.vmem %s0, %s780
        %p782 = pneg %p66
        %p783 = pneg %p63
        %p784 = pneg %p87
        %p785 = pneg %p84
        %p786 = pneg %p108
        %p787 = pneg %p105
        %p788 = pneg %p129
        %p789 = pneg %p126
        %p790 = pneg %p150
        %p791 = pneg %p147
        %p792 = pneg %p171
        %p793 = pneg %p168
        %p794 = pneg %p192
        %p795 = pneg %p189
        %p796 = pneg %p213
        %p797 = pneg %p210
        %p798 = pneg %p234
        %p799 = pneg %p231
        %p800 = scmp.lt.s32.totalorder %s45, 1
        %s801 = scalar_select %p800, %s45, 1
        %s802 = smul.addr %s801, 4
        %s803 = scalar_lea.vmem %s9, %s802
        %p804 = pneg %p260
        %p805 = pneg %p257
        %p806 = scmp.lt.s32.totalorder %s45, 1
        %s807 = scalar_select %p806, %s45, 1
        %s808 = scalar_lea.vmem %s10, %s807
        %p809 = pneg %p286
        %p810 = pneg %p283
        %p811 = scmp.lt.s32.totalorder %s45, 1
        %s812 = scalar_select %p811, %s45, 1
        %s813 = scalar_lea.vmem %s11, %s812
        %p814 = pneg %p312
        %p815 = pneg %p309
        %p816 = pneg %p333
        %p817 = pneg %p330
        %p818 = pneg %p354
        %p819 = pneg %p351
        %p820 = pneg %p375
        %p821 = pneg %p372
        %p822 = pneg %p396
        %p823 = pneg %p393
        %p824 = pneg %p417
        %p825 = pneg %p414
        %p826 = pneg %p438
        %p827 = pneg %p435
        %p828 = pneg %p459
        %p829 = pneg %p456
        %p830 = pneg %p480
        %p831 = pneg %p477
        %p832 = pneg %p501
        %p833 = pneg %p498
        %p834 = pneg %p522
        %p835 = pneg %p519
        %p836 = pneg %p543
        %p837 = pneg %p540
        %p838 = pneg %p564
        %p839 = pneg %p561
        %p840 = pneg %p585
        %p841 = pneg %p582
        %p842 = pneg %p611
        %p843 = pneg %p608
        %p844 = scmp.lt.s32.totalorder %s45, 1
        %s845 = scalar_select %p844, %s45, 1
        %s846 = smul.addr %s845, 4
        %s847 = scalar_lea.vmem %s25, %s846
        %p848 = pneg %p637
        %p849 = pneg %p634
        %s850 = sand.u32 %s624, 1
        %s851 = scalar_lea.sflag [#allocation7], %s850
        %s852 = sand.u32 %s624, 1
        %s853 = scalar_lea.vmem [#allocation6], %s852
        %p854 = pneg %p663
        %p855 = pneg %p660
        %s856 = sand.u32 %s650, 1
        %s857 = scalar_lea.sflag [#allocation9], %s856
        %s858 = sand.u32 %s650, 1
        %s859 = scalar_lea.vmem [#allocation8], %s858
        %p860 = scmp.lt.s32.totalorder %s45, 1
        %s861 = scalar_select %p860, %s45, 1
        %s862 = smul.addr %s861, 8
        %s863 = scalar_lea.vmem %s0, %s862
        %p864 = scmp.lt.s32.totalorder %s45, 1
        %s865 = scalar_select %p864, %s45, 1
        %s866 = smul.addr %s865, 4
        %s867 = scalar_lea.vmem %s9, %s866
        %p868 = scmp.lt.s32.totalorder %s45, 1
        %s869 = scalar_select %p868, %s45, 1
        %s870 = scalar_lea.vmem %s10, %s869
        %p871 = scmp.lt.s32.totalorder %s45, 1
        %s872 = scalar_select %p871, %s45, 1
        %s873 = scalar_lea.vmem %s11, %s872
        %p874 = scmp.lt.s32.totalorder %s45, 1
        %s875 = scalar_select %p874, %s45, 1
        %s876 = smul.addr %s875, 4
        %s877 = scalar_lea.vmem %s25, %s876
        %v879 = vld [vmem:[%s863] sm:$0xff]
        %v880 = vpack.c.bf16 %v879, %v879
        %v881 = vld [vmem:[%s1] sm:$0xf]
        %v882 = vld [vmem:[%s1 + $0x4] sm:$0xf]
        %s883 = scalar_lea.vmem %s1, 8
        %v884 = vld [vmem:[%s883] sm:$0xf]
        %v885 = vld [vmem:[%s883 + $0x4] sm:$0xf]
        %v887 = vshrl.u32 %v880, 16
        %v889 = vshll.u32 %v880, 16
        %v891 = vrot.slane %v889, 1
        %v892 = vor.u32 %v887, %v891
        %v895 = vunpack.c.l.b16 %v884
        %v896 = vunpack.c.l.b16 %v885
        %v897 = vpack.c.b16 %v896, %v895
        %vm899 = vcmask 130048
        %v901 = vsel %vm899, %v892, 0
        %903 = vmatpush.bf16.msra.mxu0 0
        %904 = vmatpush.bf16.msra.mxu0 0
        %905 = vmatpush.bf16.msra.mxu0 0
        %906 = vmatpush.bf16.msra.mxu0 0
        %907 = vmatpush.bf16.msra.mxu0 0
        %908 = vmatpush.bf16.msra.mxu0 0
        %909 = vmatpush.bf16.msra.mxu0 0
        %910 = vmatpush.bf16.msra.mxu0 %v897
        %911 = vmatmul.bf16.gmra.mxu0 %v901
        %v912 = vpop.f32.mrf.mxu0
        %v913 = vadd.f32 0.0, %v912
        %v914 = vpop.f32.mrf.mxu0
        %915 = vdwg.mxu0
        %v918 = vunpack.c.l.b16 %v881
        %v919 = vunpack.c.l.b16 %v882
        %v920 = vpack.c.b16 %v919, %v918
        %v922 = vsel %vm899, %v880, 0
        %924 = vmatpush.bf16.msra.mxu0 0
        %925 = vmatpush.bf16.msra.mxu0 0
        %926 = vmatpush.bf16.msra.mxu0 0
        %927 = vmatpush.bf16.msra.mxu0 0
        %928 = vmatpush.bf16.msra.mxu0 0
        %929 = vmatpush.bf16.msra.mxu0 0
        %930 = vmatpush.bf16.msra.mxu0 0
        %931 = vmatpush.bf16.msra.mxu0 %v920
        %932 = vmatmul.bf16.gmra.mxu0 %v922
        %v933 = vpop.f32.mrf.mxu0
        %v934 = vadd.f32 %v913, %v933
        %v935 = vpop.f32.mrf.mxu0
        %936 = vdwg.mxu0
        %s937 = scalar_lea.vmem %s1, 16
        %v938 = vld [vmem:[%s937] sm:$0xf]
        %v939 = vld [vmem:[%s937 + $0x4] sm:$0xf]
        %v941 = vrot.slane %v880, 1
        %v944 = vunpack.c.l.b16 %v938
        %v945 = vunpack.c.l.b16 %v939
        %v946 = vpack.c.b16 %v945, %v944
        %v949 = vsel %vm899, %v941, 0
        %951 = vmatpush.bf16.msra.mxu0 0
        %952 = vmatpush.bf16.msra.mxu0 0
        %953 = vmatpush.bf16.msra.mxu0 0
        %954 = vmatpush.bf16.msra.mxu0 0
        %955 = vmatpush.bf16.msra.mxu0 0
        %956 = vmatpush.bf16.msra.mxu0 0
        %957 = vmatpush.bf16.msra.mxu0 0
        %958 = vmatpush.bf16.msra.mxu0 %v946
        %959 = vmatmul.bf16.gmra.mxu0 %v949
        %v960 = vpop.f32.mrf.mxu0
        %v961 = vadd.f32 0.0, %v960
        %v962 = vpop.f32.mrf.mxu0
        %963 = vdwg.mxu0
        %v964 = vadd.f32 %v934, %v961
        %v965 = vld [vmem:[%s2] sm:$0x1]
        %v967 = vperm.slane %v965, 0
        %v969 = vadd.f32 %v964, %v967
        %v970 = vtanh.pop %v969
        %v971 = vpack.c.bf16 %v970, %v970
        %v972 = vld [vmem:[%s3] sm:$0xf]
        %v973 = vld [vmem:[%s3 + $0x4] sm:$0xf]
        %v974 = vld [vmem:[%s3 + $0x8] sm:$0xf]
        %v975 = vld [vmem:[%s3 + $0xc] sm:$0xf]
        %s976 = scalar_lea.vmem %s3, 16
        %v977 = vld [vmem:[%s976] sm:$0xf]
        %v978 = vld [vmem:[%s976 + $0x4] sm:$0xf]
        %v979 = vld [vmem:[%s976 + $0x8] sm:$0xf]
        %v980 = vld [vmem:[%s976 + $0xc] sm:$0xf]
        %v982 = vshrl.u32 %v971, 16
        %v984 = vshll.u32 %v971, 16
        %v986 = vrot.slane %v984, 1
        %v987 = vor.u32 %v982, %v986
        %v992 = vunpack.c.l.b16 %v977
        %v993 = vunpack.c.l.b16 %v978
        %v994 = vunpack.c.l.b16 %v979
        %v995 = vunpack.c.l.b16 %v980
        %v996 = vpack.c.b16 %v993, %v992
        %v997 = vpack.c.b16 %v995, %v994
        %vm1000 = vcmask 261120
        %v1002 = vsel %vm1000, %v987, 0
        %1004 = vmatpush.bf16.msra.mxu0 0
        %1005 = vmatpush.bf16.msra.mxu0 0
        %1006 = vmatpush.bf16.msra.mxu0 0
        %1007 = vmatpush.bf16.msra.mxu0 0
        %1008 = vmatpush.bf16.msra.mxu0 0
        %1009 = vmatpush.bf16.msra.mxu0 0
        %1010 = vmatpush.bf16.msra.mxu0 %v997
        %1011 = vmatpush.bf16.msra.mxu0 %v996
        %1012 = vmatmul.bf16.gmra.mxu0 %v1002
        %v1013 = vpop.f32.mrf.mxu0
        %v1014 = vadd.f32 0.0, %v1013
        %v1015 = vpop.f32.mrf.mxu0
        %1016 = vdwg.mxu0
        %v1021 = vunpack.c.l.b16 %v972
        %v1022 = vunpack.c.l.b16 %v973
        %v1023 = vunpack.c.l.b16 %v974
        %v1024 = vunpack.c.l.b16 %v975
        %v1025 = vpack.c.b16 %v1022, %v1021
        %v1026 = vpack.c.b16 %v1024, %v1023
        %v1029 = vsel %vm1000, %v971, 0
        %1031 = vmatpush.bf16.msra.mxu0 0
        %1032 = vmatpush.bf16.msra.mxu0 0
        %1033 = vmatpush.bf16.msra.mxu0 0
        %1034 = vmatpush.bf16.msra.mxu0 0
        %1035 = vmatpush.bf16.msra.mxu0 0
        %1036 = vmatpush.bf16.msra.mxu0 0
        %1037 = vmatpush.bf16.msra.mxu0 %v1026
        %1038 = vmatpush.bf16.msra.mxu0 %v1025
        %1039 = vmatmul.bf16.gmra.mxu0 %v1029
        %v1040 = vpop.f32.mrf.mxu0
        %v1041 = vadd.f32 %v1014, %v1040
        %v1042 = vpop.f32.mrf.mxu0
        %1043 = vdwg.mxu0
        %s1044 = scalar_lea.vmem %s3, 32
        %v1045 = vld [vmem:[%s1044] sm:$0xf]
        %v1046 = vld [vmem:[%s1044 + $0x4] sm:$0xf]
        %v1047 = vld [vmem:[%s1044 + $0x8] sm:$0xf]
        %v1048 = vld [vmem:[%s1044 + $0xc] sm:$0xf]
        %v1050 = vrot.slane %v971, 1
        %v1055 = vunpack.c.l.b16 %v1045
        %v1056 = vunpack.c.l.b16 %v1046
        %v1057 = vunpack.c.l.b16 %v1047
        %v1058 = vunpack.c.l.b16 %v1048
        %v1059 = vpack.c.b16 %v1056, %v1055
        %v1060 = vpack.c.b16 %v1058, %v1057
        %v1064 = vsel %vm1000, %v1050, 0
        %1066 = vmatpush.bf16.msra.mxu0 0
        %1067 = vmatpush.bf16.msra.mxu0 0
        %1068 = vmatpush.bf16.msra.mxu0 0
        %1069 = vmatpush.bf16.msra.mxu0 0
        %1070 = vmatpush.bf16.msra.mxu0 0
        %1071 = vmatpush.bf16.msra.mxu0 0
        %1072 = vmatpush.bf16.msra.mxu0 %v1060
        %1073 = vmatpush.bf16.msra.mxu0 %v1059
        %1074 = vmatmul.bf16.gmra.mxu0 %v1064
        %v1075 = vpop.f32.mrf.mxu0
        %v1076 = vadd.f32 0.0, %v1075
        %v1077 = vpop.f32.mrf.mxu0
        %1078 = vdwg.mxu0
        %v1079 = vadd.f32 %v1041, %v1076
        %v1080 = vld [vmem:[%s4] sm:$0x1]
        %v1082 = vperm.slane %v1080, 0
        %v1084 = vadd.f32 %v1079, %v1082
        %v1085 = vtanh.pop %v1084
        %v1086 = vpack.c.bf16 %v1085, %v1085
        %v1087 = vld [vmem:[%s5] sm:$0xf]
        %v1088 = vld [vmem:[%s5 + $0x4] sm:$0xf]
        %v1089 = vld [vmem:[%s5 + $0x8] sm:$0xf]
        %v1090 = vld [vmem:[%s5 + $0xc] sm:$0xf]
        %v1091 = vld [vmem:[%s6] sm:$0x1]
        %v1093 = vperm.slane %v1091, 0
        %v1099 = vunpack.c.l.b16 %v1087
        %v1100 = vunpack.c.l.b16 %v1088
        %v1101 = vunpack.c.l.b16 %v1089
        %v1102 = vunpack.c.l.b16 %v1090
        %v1103 = vpack.c.b16 %v1100, %v1099
        %v1104 = vpack.c.b16 %v1102, %v1101
        %v1108 = vsel %vm1000, %v1086, 0
        %1110 = vmatpush.bf16.msra.mxu0 0
        %1111 = vmatpush.bf16.msra.mxu0 0
        %1112 = vmatpush.bf16.msra.mxu0 0
        %1113 = vmatpush.bf16.msra.mxu0 0
        %1114 = vmatpush.bf16.msra.mxu0 0
        %1115 = vmatpush.bf16.msra.mxu0 0
        %1116 = vmatpush.bf16.msra.mxu0 %v1104
        %1117 = vmatpush.bf16.msra.mxu0 %v1103
        %1118 = vmatmul.bf16.gmra.mxu0 %v1108
        %v1119 = vpop.f32.mrf.mxu0
        %v1120 = vadd.f32 %v1093, %v1119
        %v1121 = vpop.f32.mrf.mxu0
        %1122 = vdwg.mxu0
        %v1123 = vtanh.pop %v1120
        %v1124 = vpack.c.bf16 %v1123, %v1123
        %v1125 = vld [vmem:[%s7] sm:$0xf]
        %v1126 = vld [vmem:[%s7 + $0x4] sm:$0xf]
        %v1127 = vld [vmem:[%s7 + $0x8] sm:$0xf]
        %v1128 = vld [vmem:[%s7 + $0xc] sm:$0xf]
        %v1129 = vld [vmem:[%s8] sm:$0x1]
        %v1131 = vperm.slane %v1129, 0
        %v1137 = vunpack.c.l.b16 %v1125
        %v1138 = vunpack.c.l.b16 %v1126
        %v1139 = vunpack.c.l.b16 %v1127
        %v1140 = vunpack.c.l.b16 %v1128
        %v1141 = vpack.c.b16 %v1138, %v1137
        %v1142 = vpack.c.b16 %v1140, %v1139
        %v1146 = vsel %vm1000, %v1124, 0
        %1148 = vmatpush.bf16.msra.mxu0 0
        %1149 = vmatpush.bf16.msra.mxu0 0
        %1150 = vmatpush.bf16.msra.mxu0 0
        %1151 = vmatpush.bf16.msra.mxu0 0
        %1152 = vmatpush.bf16.msra.mxu0 0
        %1153 = vmatpush.bf16.msra.mxu0 0
        %1154 = vmatpush.bf16.msra.mxu0 %v1142
        %1155 = vmatpush.bf16.msra.mxu0 %v1141
        %1156 = vmatmul.bf16.gmra.mxu0 %v1146
        %v1157 = vpop.f32.mrf.mxu0
        %v1158 = vadd.f32 %v1131, %v1157
        %v1159 = vpop.f32.mrf.mxu0
        %1160 = vdwg.mxu0
        %v1161 = vtanh.pop %v1158
        %v1162 = vpack.c.bf16 %v1161, %v1161
        %v1163 = vld [vmem:[%s867] sm:$0xf]
        %v1164 = vpack.c.bf16 %v1163, %v1163
        %v1165 = vld [vmem:[%s12] sm:$0xff]
        %v1166 = vld [vmem:[%s12 + $0x8] sm:$0xf]
        %v1167 = vld [vmem:[%s12 + $0xc] sm:$0xff]
        %v1168 = vld [vmem:[%s12 + $0x14] sm:$0xf]
        %v1169 = vld [vmem:[%s12 + $0x18] sm:$0xff]
        %v1170 = vld [vmem:[%s12 + $0x20] sm:$0xf]
        %v1171 = vld [vmem:[%s12 + $0x24] sm:$0xff]
        %v1172 = vld [vmem:[%s12 + $0x2c] sm:$0xf]
        %v1173 = vld [vmem:[%s12 + $0x30] sm:$0xff]
        %v1174 = vld [vmem:[%s12 + $0x38] sm:$0xf]
        %v1175 = vld [vmem:[%s12 + $0x3c] sm:$0xff]
        %v1176 = vld [vmem:[%s12 + $0x44] sm:$0xf]
        %v1177 = vld [vmem:[%s12 + $0x48] sm:$0xff]
        %v1178 = vld [vmem:[%s12 + $0x50] sm:$0xf]
        %v1179 = vld [vmem:[%s12 + $0x54] sm:$0xff]
        %v1180 = vld [vmem:[%s12 + $0x5c] sm:$0xf]
        %v1181 = vld [vmem:[%s12 + $0x60] sm:$0xff]
        %v1182 = vld [vmem:[%s12 + $0x68] sm:$0xf]
        %v1183 = vld [vmem:[%s12 + $0x6c] sm:$0xff]
        %v1184 = vld [vmem:[%s12 + $0x74] sm:$0xf]
        %v1185 = vld [vmem:[%s12 + $0x78] sm:$0xff]
        %v1186 = vld [vmem:[%s12 + $0x80] sm:$0xf]
        %v1187 = vld [vmem:[%s12 + $0x84] sm:$0xff]
        %v1188 = vld [vmem:[%s12 + $0x8c] sm:$0xf]
        %v1189 = vld [vmem:[%s13] sm:$0xff]
        %v1190 = vld [vmem:[%s13 + $0x8] sm:$0xf]
        %v1191 = vld [vmem:[%s13 + $0xc] sm:$0xff]
        %v1192 = vld [vmem:[%s13 + $0x14] sm:$0xf]
        %v1193 = vld [vmem:[%s13 + $0x18] sm:$0xff]
        %v1194 = vld [vmem:[%s13 + $0x20] sm:$0xf]
        %v1195 = vld [vmem:[%s13 + $0x24] sm:$0xff]
        %v1196 = vld [vmem:[%s13 + $0x2c] sm:$0xf]
        %v1205 = vunpack.c.l.b16 %v1189
        %v1206 = vunpack.c.h.b16 %v1189
        %v1207 = vunpack.c.l.b16 %v1190
        %v1208 = vunpack.c.l.b16 %v1191
        %v1209 = vunpack.c.h.b16 %v1191
        %v1210 = vunpack.c.l.b16 %v1192
        %v1211 = vunpack.c.l.b16 %v1193
        %v1212 = vunpack.c.h.b16 %v1193
        %v1213 = vunpack.c.l.b16 %v1194
        %v1214 = vunpack.c.l.b16 %v1195
        %v1215 = vunpack.c.h.b16 %v1195
        %v1216 = vunpack.c.l.b16 %v1196
        %v1217 = vpack.c.b16 %v1208, %v1205
        %v1218 = vpack.c.b16 %v1209, %v1206
        %v1219 = vpack.c.b16 %v1210, %v1207
        %v1220 = vpack.c.b16 %v1214, %v1211
        %v1221 = vpack.c.b16 %v1215, %v1212
        %v1222 = vpack.c.b16 %v1216, %v1213
        %v1230 = vsel %vm1000, %v1162, 0
        %1232 = vmatpush.bf16.msra.mxu0 0
        %1233 = vmatpush.bf16.msra.mxu0 0
        %1234 = vmatpush.bf16.msra.mxu0 0
        %1235 = vmatpush.bf16.msra.mxu0 0
        %1236 = vmatpush.bf16.msra.mxu0 0
        %1237 = vmatpush.bf16.msra.mxu0 0
        %1238 = vmatpush.bf16.msra.mxu0 %v1220
        %1239 = vmatpush.bf16.msra.mxu0 %v1217
        %1240 = vmatmul.bf16.gmra.mxu0 %v1230
        %v1241 = vpop.f32.mrf.mxu0
        %v1242 = vadd.f32 0.0, %v1241
        %v1243 = vpop.f32.mrf.mxu0
        %1244 = vdwg.mxu0
        %1245 = vmatpush.bf16.msra.mxu0 0
        %1246 = vmatpush.bf16.msra.mxu0 0
        %1247 = vmatpush.bf16.msra.mxu0 0
        %1248 = vmatpush.bf16.msra.mxu0 0
        %1249 = vmatpush.bf16.msra.mxu0 0
        %1250 = vmatpush.bf16.msra.mxu0 0
        %1251 = vmatpush.bf16.msra.mxu0 %v1221
        %1252 = vmatpush.bf16.msra.mxu0 %v1218
        %1253 = vmatmul.bf16.gmra.mxu0 %v1230
        %v1254 = vpop.f32.mrf.mxu0
        %v1255 = vadd.f32 0.0, %v1254
        %v1256 = vpop.f32.mrf.mxu0
        %1257 = vdwg.mxu0
        %1258 = vmatpush.bf16.msra.mxu0 0
        %1259 = vmatpush.bf16.msra.mxu0 0
        %1260 = vmatpush.bf16.msra.mxu0 0
        %1261 = vmatpush.bf16.msra.mxu0 0
        %1262 = vmatpush.bf16.msra.mxu0 0
        %1263 = vmatpush.bf16.msra.mxu0 0
        %1264 = vmatpush.bf16.msra.mxu0 %v1222
        %1265 = vmatpush.bf16.msra.mxu0 %v1219
        %1266 = vmatmul.bf16.gmra.mxu0 %v1230
        %v1267 = vpop.f32.mrf.mxu0
        %v1268 = vadd.f32 0.0, %v1267
        %v1269 = vpop.f32.mrf.mxu0
        %1270 = vdwg.mxu0
        %v1295 = vunpack.c.l.b16 %v1165
        %v1296 = vunpack.c.h.b16 %v1165
        %v1297 = vunpack.c.l.b16 %v1166
        %v1298 = vunpack.c.l.b16 %v1167
        %v1299 = vunpack.c.h.b16 %v1167
        %v1300 = vunpack.c.l.b16 %v1168
        %v1301 = vunpack.c.l.b16 %v1169
        %v1302 = vunpack.c.h.b16 %v1169
        %v1303 = vunpack.c.l.b16 %v1170
        %v1304 = vunpack.c.l.b16 %v1171
        %v1305 = vunpack.c.h.b16 %v1171
        %v1306 = vunpack.c.l.b16 %v1172
        %v1307 = vunpack.c.l.b16 %v1173
        %v1308 = vunpack.c.h.b16 %v1173
        %v1309 = vunpack.c.l.b16 %v1174
        %v1310 = vunpack.c.l.b16 %v1175
        %v1311 = vunpack.c.h.b16 %v1175
        %v1312 = vunpack.c.l.b16 %v1176
        %v1313 = vunpack.c.l.b16 %v1177
        %v1314 = vunpack.c.h.b16 %v1177
        %v1315 = vunpack.c.l.b16 %v1178
        %v1316 = vunpack.c.l.b16 %v1179
        %v1317 = vunpack.c.h.b16 %v1179
        %v1318 = vunpack.c.l.b16 %v1180
        %v1319 = vunpack.c.l.b16 %v1181
        %v1320 = vunpack.c.h.b16 %v1181
        %v1321 = vunpack.c.l.b16 %v1182
        %v1322 = vunpack.c.l.b16 %v1183
        %v1323 = vunpack.c.h.b16 %v1183
        %v1324 = vunpack.c.l.b16 %v1184
        %v1325 = vunpack.c.l.b16 %v1185
        %v1326 = vunpack.c.h.b16 %v1185
        %v1327 = vunpack.c.l.b16 %v1186
        %v1328 = vunpack.c.l.b16 %v1187
        %v1329 = vunpack.c.h.b16 %v1187
        %v1330 = vunpack.c.l.b16 %v1188
        %v1331 = vpack.c.b16 %v1298, %v1295
        %v1332 = vpack.c.b16 %v1299, %v1296
        %v1333 = vpack.c.b16 %v1300, %v1297
        %v1334 = vpack.c.b16 %v1304, %v1301
        %v1335 = vpack.c.b16 %v1305, %v1302
        %v1336 = vpack.c.b16 %v1306, %v1303
        %v1337 = vpack.c.b16 %v1310, %v1307
        %v1338 = vpack.c.b16 %v1311, %v1308
        %v1339 = vpack.c.b16 %v1312, %v1309
        %v1340 = vpack.c.b16 %v1316, %v1313
        %v1341 = vpack.c.b16 %v1317, %v1314
        %v1342 = vpack.c.b16 %v1318, %v1315
        %v1343 = vpack.c.b16 %v1322, %v1319
        %v1344 = vpack.c.b16 %v1323, %v1320
        %v1345 = vpack.c.b16 %v1324, %v1321
        %v1346 = vpack.c.b16 %v1328, %v1325
        %v1347 = vpack.c.b16 %v1329, %v1326
        %v1348 = vpack.c.b16 %v1330, %v1327
        %vm1367 = vcmask 785408
        %v1369 = vsel %vm1367, %v1164, 0
        %1371 = vmatpush.bf16.msra.mxu0 0
        %1372 = vmatpush.bf16.msra.mxu0 0
        %1373 = vmatpush.bf16.msra.mxu0 %v1346
        %1374 = vmatpush.bf16.msra.mxu0 %v1343
        %1375 = vmatpush.bf16.msra.mxu0 %v1340
        %1376 = vmatpush.bf16.msra.mxu0 %v1337
        %1377 = vmatpush.bf16.msra.mxu0 %v1334
        %1378 = vmatpush.bf16.msra.mxu0 %v1331
        %1379 = vmatmul.bf16.gmra.mxu0 %v1369
        %v1380 = vpop.f32.mrf.mxu0
        %v1381 = vadd.f32 %v1242, %v1380
        %v1382 = vpop.f32.mrf.mxu0
        %1383 = vdwg.mxu0
        %1384 = vmatpush.bf16.msra.mxu0 0
        %1385 = vmatpush.bf16.msra.mxu0 0
        %1386 = vmatpush.bf16.msra.mxu0 %v1347
        %1387 = vmatpush.bf16.msra.mxu0 %v1344
        %1388 = vmatpush.bf16.msra.mxu0 %v1341
        %1389 = vmatpush.bf16.msra.mxu0 %v1338
        %1390 = vmatpush.bf16.msra.mxu0 %v1335
        %1391 = vmatpush.bf16.msra.mxu0 %v1332
        %1392 = vmatmul.bf16.gmra.mxu0 %v1369
        %v1393 = vpop.f32.mrf.mxu0
        %v1394 = vadd.f32 %v1255, %v1393
        %v1395 = vpop.f32.mrf.mxu0
        %1396 = vdwg.mxu0
        %1397 = vmatpush.bf16.msra.mxu0 0
        %1398 = vmatpush.bf16.msra.mxu0 0
        %1399 = vmatpush.bf16.msra.mxu0 %v1348
        %1400 = vmatpush.bf16.msra.mxu0 %v1345
        %1401 = vmatpush.bf16.msra.mxu0 %v1342
        %1402 = vmatpush.bf16.msra.mxu0 %v1339
        %1403 = vmatpush.bf16.msra.mxu0 %v1336
        %1404 = vmatpush.bf16.msra.mxu0 %v1333
        %1405 = vmatmul.bf16.gmra.mxu0 %v1369
        %v1406 = vpop.f32.mrf.mxu0
        %v1407 = vadd.f32 %v1268, %v1406
        %v1408 = vpop.f32.mrf.mxu0
        %1409 = vdwg.mxu0
        %v1410 = vld [vmem:[%s14] sm:$0x7]
        %v1412 = vperm.slane %v1410, 0
        %v1413 = vperm.slane %v1410, 1
        %v1414 = vperm.slane %v1410, 2
        %v1418 = vadd.f32 %v1381, %v1412
        %v1419 = vadd.f32 %v1394, %v1413
        %v1420 = vadd.f32 %v1407, %v1414
        %v1423 = vrot.slane %v1419, 4
        %vm1424 = vcmask 1043456
        %v1425 = vsel %vm1424, %v1418, %v1423
        %1427 = vst [vmem:[#allocation2] sm:$0xff] %v1425
        %1428 = vst [vmem:[#allocation2 + $0x8] sm:$0xf] %v1420
        %v1429 = vld [vmem:[%s18] sm:$0xff]
        %v1430 = vld [vmem:[%s18 + $0x8] sm:$0xff]
        %v1431 = vld [vmem:[%s18 + $0x10] sm:$0xff]
        %v1432 = vld [vmem:[%s18 + $0x18] sm:$0xff]
        %v1433 = vld [vmem:[%s19] sm:$0x3]
        %v1435 = vperm.slane %v1433, 0
        %v1436 = vperm.slane %v1433, 1
        %v1443 = vunpack.c.l.b16 %v1429
        %v1444 = vunpack.c.h.b16 %v1429
        %v1445 = vunpack.c.l.b16 %v1430
        %v1446 = vunpack.c.h.b16 %v1430
        %v1447 = vunpack.c.l.b16 %v1431
        %v1448 = vunpack.c.h.b16 %v1431
        %v1449 = vunpack.c.l.b16 %v1432
        %v1450 = vunpack.c.h.b16 %v1432
        %v1451 = vpack.c.b16 %v1445, %v1443
        %v1452 = vpack.c.b16 %v1446, %v1444
        %v1453 = vpack.c.b16 %v1449, %v1447
        %v1454 = vpack.c.b16 %v1450, %v1448
        %1459 = vmatpush.bf16.msra.mxu0 0
        %1460 = vmatpush.bf16.msra.mxu0 0
        %1461 = vmatpush.bf16.msra.mxu0 0
        %1462 = vmatpush.bf16.msra.mxu0 0
        %1463 = vmatpush.bf16.msra.mxu0 0
        %1464 = vmatpush.bf16.msra.mxu0 0
        %1465 = vmatpush.bf16.msra.mxu0 %v1453
        %1466 = vmatpush.bf16.msra.mxu0 %v1451
        %1467 = vmatmul.bf16.gmra.mxu0 %v1230
        %v1468 = vpop.f32.mrf.mxu0
        %v1469 = vadd.f32 %v1435, %v1468
        %v1470 = vpop.f32.mrf.mxu0
        %1471 = vdwg.mxu0
        %1472 = vmatpush.bf16.msra.mxu0 0
        %1473 = vmatpush.bf16.msra.mxu0 0
        %1474 = vmatpush.bf16.msra.mxu0 0
        %1475 = vmatpush.bf16.msra.mxu0 0
        %1476 = vmatpush.bf16.msra.mxu0 0
        %1477 = vmatpush.bf16.msra.mxu0 0
        %1478 = vmatpush.bf16.msra.mxu0 %v1454
        %1479 = vmatpush.bf16.msra.mxu0 %v1452
        %1480 = vmatmul.bf16.gmra.mxu0 %v1230
        %v1481 = vpop.f32.mrf.mxu0
        %v1482 = vadd.f32 %v1436, %v1481
        %v1483 = vpop.f32.mrf.mxu0
        %1484 = vdwg.mxu0
        %v1487 = vrot.slane %v1482, 4
        %v1488 = vsel %vm1424, %v1469, %v1487
        %vm1490 = vcmask 523268
        %vm1491 = vmor %vm1490, %vm1424
        %1492 = vst.msk [vmem:[#allocation4] sm:$0xff] %vm1491, %v1488
        %v1493 = vld [vmem:[%s15] sm:$0xf]
        %v1494 = vld [vmem:[%s15 + $0x4] sm:$0xf]
        %v1495 = vld [vmem:[%s15 + $0x8] sm:$0xf]
        %v1496 = vld [vmem:[%s15 + $0xc] sm:$0xf]
        %v1497 = vld [vmem:[%s16] sm:$0x1]
        %v1498 = vld [vmem:[%s870] sm:$0x1]
        loop: start=0, step=1, limit=4
        $region121: #{forward.1} parent=119 // loop_pre_header
          _
        $region122: #{forward.1} parent=119 // loop_header
          %s1500 = sphi 0, %s1504
          %p1501 = scmp.ge.s32.totalorder %s1500, 4
          %v1505 = vphi %v1498, %v1833
        $region123: #{forward.1} parent=119 // loop_header_branch
          %1503 = sbr.rel (%p1501) target = $region127
        $region124: #{forward.1} parent=119 // loop_body
          %s1506 = sshra.s32 %s1500, 2
          %s1507 = sand.u32 %s1500, 3
          %s1508 = sshra.s32 %s1500, 2
          %s1509 = sand.u32 %s1500, 3
          %s1510 = smul.u32 %s1506, 3
          %s1511 = smul.u32 %s1510, 4
          %s1512 = sadd.s32 %s1511, %s1509
          %s1513 = scalar_lea.vmem [#allocation2], %s1512
          %v1514 = vld [vmem:[%s1513] ss:$4 sm:$0x7]
          %v1515 = vpack.c.bf16 %v1505, %v1505
          %v1520 = vunpack.c.l.b16 %v1493
          %v1521 = vunpack.c.l.b16 %v1494
          %v1522 = vunpack.c.l.b16 %v1495
          %v1523 = vunpack.c.l.b16 %v1496
          %v1524 = vpack.c.b16 %v1521, %v1520
          %v1525 = vpack.c.b16 %v1523, %v1522
          %v1529 = vsel %vm1000, %v1515, 0
          %1531 = vmatpush.bf16.msra.mxu0 0
          %1532 = vmatpush.bf16.msra.mxu0 0
          %1533 = vmatpush.bf16.msra.mxu0 0
          %1534 = vmatpush.bf16.msra.mxu0 0
          %1535 = vmatpush.bf16.msra.mxu0 0
          %1536 = vmatpush.bf16.msra.mxu0 0
          %1537 = vmatpush.bf16.msra.mxu0 %v1525
          %1538 = vmatpush.bf16.msra.mxu0 %v1524
          %1539 = vmatmul.bf16.gmra.mxu0 %v1529
          %v1540 = vpop.f32.mrf.mxu0
          %v1541 = vadd.f32 %v1497, %v1540
          %v1542 = vpop.f32.mrf.mxu0
          %1543 = vdwg.mxu0
          %v1544 = vadd.f32 %v1514, %v1541
          %v1545 = vxor.u32 %v1544, 2147483648
          %v1546 = vmul.f32 %v1545, 1.442695
          %v1547 = vpow.pop %v1546
          %v1548 = vadd.f32 %v1547, 1.0
          %v1549 = vrcp.pop %v1548
          %v1550 = vmul.f32 %v1548, %v1549
          %v1551 = vsub.f32 1.0, %v1550
          %v1552 = vmul.f32 %v1549, %v1551
          %v1553 = vadd.f32 %v1549, %v1552
          %vm1554 = vweird.f32 %v1548
          %vm1555 = vweird.f32 %v1549
          %vm1556 = vmor %vm1554, %vm1555
          %v1557 = vsel %vm1556, %v1549, %v1553
          %v1558 = vand.u32 2147483647, %v1548
          %vm1559 = vcmp.eq.f32.partialorder %v1558, 8.507059e+37
          %v1560 = vand.u32 %v1548, 2147483648
          %v1561 = vor.u32 1.1754944e-38, %v1560
          %v1562 = vsel %vm1559, %v1561, %v1557
          %v1563 = vmul.f32 1.0, %v1562
          %1565 = vrot.lane.b32.xlu0 %v1541, 64
          %v1566 = vpop.permute.xlu0 %1565
          %v1568 = vmul.f32 %v1563, %v1566
          %1570 = vrot.lane.b32.xlu0 %v1568, 64
          %v1571 = vpop.permute.xlu0 %1570
          %v1573 = vadd.f32 %v1514, %v1571
          %v1574 = vtanh.pop %v1573
          %v1575 = vsub.f32 1.0, %v1563
          %1577 = vrot.lane.b32.xlu0 %v1574, 96
          %v1578 = vpop.permute.xlu0 %1577
          %v1580 = vmul.f32 %v1575, %v1578
          %1582 = vrot.lane.b32.xlu0 %v1505, 32
          %v1583 = vpop.permute.xlu0 %1582
          %v1585 = vmul.f32 %v1563, %v1583
          %v1586 = vadd.f32 %v1580, %v1585
          %v1587 = vpack.c.bf16 %v1586, %v1586
          %1589 = vrot.lane.b32.xlu0 %v1587, 96
          %v1590 = vpop.permute.xlu0 %1589
          %v1592 = vsel %vm1000, %v1590, 0
          %1594 = vmatpush.bf16.msra.mxu0 0
          %1595 = vmatpush.bf16.msra.mxu0 0
          %1596 = vmatpush.bf16.msra.mxu0 0
          %1597 = vmatpush.bf16.msra.mxu0 0
          %1598 = vmatpush.bf16.msra.mxu0 0
          %1599 = vmatpush.bf16.msra.mxu0 0
          %1600 = vmatpush.bf16.msra.mxu0 %v1525
          %1601 = vmatpush.bf16.msra.mxu0 %v1524
          %1602 = vmatmul.bf16.gmra.mxu0 %v1592
          %v1603 = vpop.f32.mrf.mxu0
          %v1604 = vadd.f32 %v1497, %v1603
          %v1605 = vpop.f32.mrf.mxu0
          %1606 = vdwg.mxu0
          %1608 = vrot.lane.b32.xlu0 %v1604, 96
          %v1609 = vpop.permute.xlu0 %1608
          %v1611 = vadd.f32 %v1514, %v1609
          %v1612 = vxor.u32 %v1611, 2147483648
          %v1613 = vmul.f32 %v1612, 1.442695
          %v1614 = vpow.pop %v1613
          %v1615 = vadd.f32 %v1614, 1.0
          %v1616 = vrcp.pop %v1615
          %v1617 = vmul.f32 %v1615, %v1616
          %v1618 = vsub.f32 1.0, %v1617
          %v1619 = vmul.f32 %v1616, %v1618
          %v1620 = vadd.f32 %v1616, %v1619
          %vm1621 = vweird.f32 %v1615
          %vm1622 = vweird.f32 %v1616
          %vm1623 = vmor %vm1621, %vm1622
          %v1624 = vsel %vm1623, %v1616, %v1620
          %v1625 = vand.u32 2147483647, %v1615
          %vm1626 = vcmp.eq.f32.partialorder %v1625, 8.507059e+37
          %v1627 = vand.u32 %v1615, 2147483648
          %v1628 = vor.u32 1.1754944e-38, %v1627
          %v1629 = vsel %vm1626, %v1628, %v1624
          %v1630 = vmul.f32 1.0, %v1629
          %v1632 = vrot.slane %v1514, 1
          %v1634 = vadd.f32 %v1632, %v1609
          %v1635 = vxor.u32 %v1634, 2147483648
          %v1636 = vmul.f32 %v1635, 1.442695
          %v1637 = vpow.pop %v1636
          %v1638 = vadd.f32 %v1637, 1.0
          %v1639 = vrcp.pop %v1638
          %v1640 = vmul.f32 %v1638, %v1639
          %v1641 = vsub.f32 1.0, %v1640
          %v1642 = vmul.f32 %v1639, %v1641
          %v1643 = vadd.f32 %v1639, %v1642
          %vm1644 = vweird.f32 %v1638
          %vm1645 = vweird.f32 %v1639
          %vm1646 = vmor %vm1644, %vm1645
          %v1647 = vsel %vm1646, %v1639, %v1643
          %v1648 = vand.u32 2147483647, %v1638
          %vm1649 = vcmp.eq.f32.partialorder %v1648, 8.507059e+37
          %v1650 = vand.u32 %v1638, 2147483648
          %v1651 = vor.u32 1.1754944e-38, %v1650
          %v1652 = vsel %vm1649, %v1651, %v1647
          %v1653 = vmul.f32 1.0, %v1652
          %1654 = vrot.lane.b32.xlu0 %v1604, 32
          %v1655 = vpop.permute.xlu0 %1654
          %v1657 = vmul.f32 %v1630, %v1655
          %1658 = vrot.lane.b32.xlu0 %v1514, 96
          %v1659 = vpop.permute.xlu0 %1658
          %v1660 = vrot.slane %v1659, 1
          %1663 = vrot.lane.b32.xlu0 %v1657, 32
          %v1664 = vpop.permute.xlu0 %1663
          %v1666 = vadd.f32 %v1660, %v1664
          %v1667 = vtanh.pop %v1666
          %v1668 = vsub.f32 1.0, %v1653
          %v1669 = vmul.f32 %v1668, %v1667
          %1671 = vrot.lane.b32.xlu0 %v1586, 96
          %v1672 = vpop.permute.xlu0 %1671
          %v1674 = vmul.f32 %v1653, %v1672
          %v1675 = vadd.f32 %v1669, %v1674
          %v1676 = vpack.c.bf16 %v1675, %v1675
          %v1678 = vsel %vm1000, %v1676, 0
          %1680 = vmatpush.bf16.msra.mxu0 0
          %1681 = vmatpush.bf16.msra.mxu0 0
          %1682 = vmatpush.bf16.msra.mxu0 0
          %1683 = vmatpush.bf16.msra.mxu0 0
          %1684 = vmatpush.bf16.msra.mxu0 0
          %1685 = vmatpush.bf16.msra.mxu0 0
          %1686 = vmatpush.bf16.msra.mxu0 %v1525
          %1687 = vmatpush.bf16.msra.mxu0 %v1524
          %1688 = vmatmul.bf16.gmra.mxu0 %v1678
          %v1689 = vpop.f32.mrf.mxu0
          %v1690 = vadd.f32 %v1497, %v1689
          %v1691 = vpop.f32.mrf.mxu0
          %1692 = vdwg.mxu0
          %1693 = vrot.lane.b32.xlu0 %v1514, 64
          %v1694 = vpop.permute.xlu0 %1693
          %v1695 = vrot.slane %v1694, 1
          %v1697 = vadd.f32 %v1695, %v1690
          %v1698 = vxor.u32 %v1697, 2147483648
          %v1699 = vmul.f32 %v1698, 1.442695
          %v1700 = vpow.pop %v1699
          %v1701 = vadd.f32 %v1700, 1.0
          %v1702 = vrcp.pop %v1701
          %v1703 = vmul.f32 %v1701, %v1702
          %v1704 = vsub.f32 1.0, %v1703
          %v1705 = vmul.f32 %v1702, %v1704
          %v1706 = vadd.f32 %v1702, %v1705
          %vm1707 = vweird.f32 %v1701
          %vm1708 = vweird.f32 %v1702
          %vm1709 = vmor %vm1707, %vm1708
          %v1710 = vsel %vm1709, %v1702, %v1706
          %v1711 = vand.u32 2147483647, %v1701
          %vm1712 = vcmp.eq.f32.partialorder %v1711, 8.507059e+37
          %v1713 = vand.u32 %v1701, 2147483648
          %v1714 = vor.u32 1.1754944e-38, %v1713
          %v1715 = vsel %vm1712, %v1714, %v1710
          %v1716 = vmul.f32 1.0, %v1715
          %1717 = vrot.lane.b32.xlu0 %v1514, 32
          %v1718 = vpop.permute.xlu0 %1717
          %v1719 = vrot.slane %v1718, 1
          %1722 = vrot.lane.b32.xlu0 %v1690, 96
          %v1723 = vpop.permute.xlu0 %1722
          %v1725 = vadd.f32 %v1719, %v1723
          %v1726 = vxor.u32 %v1725, 2147483648
          %v1727 = vmul.f32 %v1726, 1.442695
          %v1728 = vpow.pop %v1727
          %v1729 = vadd.f32 %v1728, 1.0
          %v1730 = vrcp.pop %v1729
          %v1731 = vmul.f32 %v1729, %v1730
          %v1732 = vsub.f32 1.0, %v1731
          %v1733 = vmul.f32 %v1730, %v1732
          %v1734 = vadd.f32 %v1730, %v1733
          %vm1735 = vweird.f32 %v1729
          %vm1736 = vweird.f32 %v1730
          %vm1737 = vmor %vm1735, %vm1736
          %v1738 = vsel %vm1737, %v1730, %v1734
          %v1739 = vand.u32 2147483647, %v1729
          %vm1740 = vcmp.eq.f32.partialorder %v1739, 8.507059e+37
          %v1741 = vand.u32 %v1729, 2147483648
          %v1742 = vor.u32 1.1754944e-38, %v1741
          %v1743 = vsel %vm1740, %v1742, %v1738
          %v1744 = vmul.f32 1.0, %v1743
          %1745 = vrot.lane.b32.xlu0 %v1690, 64
          %v1746 = vpop.permute.xlu0 %1745
          %v1748 = vmul.f32 %v1716, %v1746
          %v1749 = vrot.slane %v1514, 2
          %v1751 = vadd.f32 %v1749, %v1748
          %v1752 = vtanh.pop %v1751
          %v1753 = vsub.f32 1.0, %v1744
          %v1754 = vmul.f32 %v1753, %v1752
          %v1755 = vmul.f32 %v1744, %v1675
          %v1756 = vadd.f32 %v1754, %v1755
          %v1757 = vpack.c.bf16 %v1756, %v1756
          %v1759 = vsel %vm1000, %v1757, 0
          %1761 = vmatpush.bf16.msra.mxu0 0
          %1762 = vmatpush.bf16.msra.mxu0 0
          %1763 = vmatpush.bf16.msra.mxu0 0
          %1764 = vmatpush.bf16.msra.mxu0 0
          %1765 = vmatpush.bf16.msra.mxu0 0
          %1766 = vmatpush.bf16.msra.mxu0 0
          %1767 = vmatpush.bf16.msra.mxu0 %v1525
          %1768 = vmatpush.bf16.msra.mxu0 %v1524
          %1769 = vmatmul.bf16.gmra.mxu0 %v1759
          %v1770 = vpop.f32.mrf.mxu0
          %v1771 = vadd.f32 %v1497, %v1770
          %v1772 = vpop.f32.mrf.mxu0
          %1773 = vdwg.mxu0
          %v1774 = vrot.slane %v1659, 2
          %v1776 = vadd.f32 %v1774, %v1771
          %v1777 = vxor.u32 %v1776, 2147483648
          %v1778 = vmul.f32 %v1777, 1.442695
          %v1779 = vpow.pop %v1778
          %v1780 = vadd.f32 %v1779, 1.0
          %v1781 = vrcp.pop %v1780
          %v1782 = vmul.f32 %v1780, %v1781
          %v1783 = vsub.f32 1.0, %v1782
          %v1784 = vmul.f32 %v1781, %v1783
          %v1785 = vadd.f32 %v1781, %v1784
          %vm1786 = vweird.f32 %v1780
          %vm1787 = vweird.f32 %v1781
          %vm1788 = vmor %vm1786, %vm1787
          %v1789 = vsel %vm1788, %v1781, %v1785
          %v1790 = vand.u32 2147483647, %v1780
          %vm1791 = vcmp.eq.f32.partialorder %v1790, 8.507059e+37
          %v1792 = vand.u32 %v1780, 2147483648
          %v1793 = vor.u32 1.1754944e-38, %v1792
          %v1794 = vsel %vm1791, %v1793, %v1789
          %v1795 = vmul.f32 1.0, %v1794
          %v1796 = vrot.slane %v1694, 2
          %1799 = vrot.lane.b32.xlu0 %v1771, 96
          %v1800 = vpop.permute.xlu0 %1799
          %v1802 = vadd.f32 %v1796, %v1800
          %v1803 = vxor.u32 %v1802, 2147483648
          %v1804 = vmul.f32 %v1803, 1.442695
          %v1805 = vpow.pop %v1804
          %v1806 = vadd.f32 %v1805, 1.0
          %v1807 = vrcp.pop %v1806
          %v1808 = vmul.f32 %v1806, %v1807
          %v1809 = vsub.f32 1.0, %v1808
          %v1810 = vmul.f32 %v1807, %v1809
          %v1811 = vadd.f32 %v1807, %v1810
          %vm1812 = vweird.f32 %v1806
          %vm1813 = vweird.f32 %v1807
          %vm1814 = vmor %vm1812, %vm1813
          %v1815 = vsel %vm1814, %v1807, %v1811
          %v1816 = vand.u32 2147483647, %v1806
          %vm1817 = vcmp.eq.f32.partialorder %v1816, 8.507059e+37
          %v1818 = vand.u32 %v1806, 2147483648
          %v1819 = vor.u32 1.1754944e-38, %v1818
          %v1820 = vsel %vm1817, %v1819, %v1815
          %v1821 = vmul.f32 1.0, %v1820
          %1822 = vrot.lane.b32.xlu0 %v1771, 64
          %v1823 = vpop.permute.xlu0 %1822
          %v1825 = vmul.f32 %v1795, %v1823
          %v1826 = vrot.slane %v1718, 2
          %v1828 = vadd.f32 %v1826, %v1825
          %v1829 = vtanh.pop %v1828
          %v1830 = vsub.f32 1.0, %v1821
          %v1831 = vmul.f32 %v1830, %v1829
          %v1832 = vmul.f32 %v1821, %v1756
          %v1833 = vadd.f32 %v1831, %v1832
          %v1834 = vperm.slane %v1586, 0
          %1835 = vrot.lane.b32.xlu0 %v1834, 96
          %v1836 = vpop.permute.xlu0 %1835
          %v1839 = vperm.slane %v1675, 0
          %1840 = vrot.lane.b32.xlu0 %v1839, 32
          %v1841 = vpop.permute.xlu0 %1840
          %v1844 = vperm.slane %v1756, 0
          %1845 = vrot.lane.b32.xlu0 %v1844, 64
          %v1846 = vpop.permute.xlu0 %1845
          %v1849 = vperm.slane %v1833, 0
          %1850 = vrot.lane.b32.xlu0 %v1849, 96
          %v1851 = vpop.permute.xlu0 %1850
          %v1853 = vsel %vm1000, %v1836, %v1841
          %vm1854 = vcmask 523264
          %v1855 = vsel %vm1854, %v1853, %v1846
          %v1856 = vsel %vm1367, %v1855, %v1851
          %s1857 = scalar_lea.vmem [#allocation3], %s1500
          %1858 = vst [vmem:[%s1857] sm:$0x1] %v1856
        $region125: #{forward.1} parent=119 // loop_footer
          %s1504 = sadd.s32 1, %s1500
        $region126: #{forward.1} parent=119 // loop_footer_branch
          %1499 = sbr.rel target = $region122
        $region127: #{forward.1} parent=119 // loop_exit
          _
        %v1859 = vld [vmem:[#allocation4] sm:$0xff]
        %v1860 = vld [vmem:[#allocation3] sm:$0xf]
        %v1861 = vpack.c.bf16 %v1860, %v1860
        %v1862 = vld [vmem:[%s17] sm:$0xff]
        %v1863 = vld [vmem:[%s17 + $0x8] sm:$0xff]
        %v1864 = vld [vmem:[%s17 + $0x10] sm:$0xff]
        %v1865 = vld [vmem:[%s17 + $0x18] sm:$0xff]
        %v1866 = vld [vmem:[%s17 + $0x20] sm:$0xff]
        %v1867 = vld [vmem:[%s17 + $0x28] sm:$0xff]
        %v1868 = vld [vmem:[%s17 + $0x30] sm:$0xff]
        %v1869 = vld [vmem:[%s17 + $0x38] sm:$0xff]
        %v1870 = vld [vmem:[%s17 + $0x40] sm:$0xff]
        %v1871 = vld [vmem:[%s17 + $0x48] sm:$0xff]
        %v1872 = vld [vmem:[%s17 + $0x50] sm:$0xff]
        %v1873 = vld [vmem:[%s17 + $0x58] sm:$0xff]
        %v1874 = vld [vmem:[%s17 + $0x60] sm:$0xff]
        %v1875 = vld [vmem:[%s17 + $0x68] sm:$0xff]
        %v1876 = vld [vmem:[%s17 + $0x70] sm:$0xff]
        %v1877 = vld [vmem:[%s17 + $0x78] sm:$0xff]
        %v1894 = vunpack.c.l.b16 %v1862
        %v1895 = vunpack.c.h.b16 %v1862
        %v1896 = vunpack.c.l.b16 %v1863
        %v1897 = vunpack.c.h.b16 %v1863
        %v1898 = vunpack.c.l.b16 %v1864
        %v1899 = vunpack.c.h.b16 %v1864
        %v1900 = vunpack.c.l.b16 %v1865
        %v1901 = vunpack.c.h.b16 %v1865
        %v1902 = vunpack.c.l.b16 %v1866
        %v1903 = vunpack.c.h.b16 %v1866
        %v1904 = vunpack.c.l.b16 %v1867
        %v1905 = vunpack.c.h.b16 %v1867
        %v1906 = vunpack.c.l.b16 %v1868
        %v1907 = vunpack.c.h.b16 %v1868
        %v1908 = vunpack.c.l.b16 %v1869
        %v1909 = vunpack.c.h.b16 %v1869
        %v1910 = vunpack.c.l.b16 %v1870
        %v1911 = vunpack.c.h.b16 %v1870
        %v1912 = vunpack.c.l.b16 %v1871
        %v1913 = vunpack.c.h.b16 %v1871
        %v1914 = vunpack.c.l.b16 %v1872
        %v1915 = vunpack.c.h.b16 %v1872
        %v1916 = vunpack.c.l.b16 %v1873
        %v1917 = vunpack.c.h.b16 %v1873
        %v1918 = vunpack.c.l.b16 %v1874
        %v1919 = vunpack.c.h.b16 %v1874
        %v1920 = vunpack.c.l.b16 %v1875
        %v1921 = vunpack.c.h.b16 %v1875
        %v1922 = vunpack.c.l.b16 %v1876
        %v1923 = vunpack.c.h.b16 %v1876
        %v1924 = vunpack.c.l.b16 %v1877
        %v1925 = vunpack.c.h.b16 %v1877
        %v1926 = vpack.c.b16 %v1896, %v1894
        %v1927 = vpack.c.b16 %v1897, %v1895
        %v1928 = vpack.c.b16 %v1900, %v1898
        %v1929 = vpack.c.b16 %v1901, %v1899
        %v1930 = vpack.c.b16 %v1904, %v1902
        %v1931 = vpack.c.b16 %v1905, %v1903
        %v1932 = vpack.c.b16 %v1908, %v1906
        %v1933 = vpack.c.b16 %v1909, %v1907
        %v1934 = vpack.c.b16 %v1912, %v1910
        %v1935 = vpack.c.b16 %v1913, %v1911
        %v1936 = vpack.c.b16 %v1916, %v1914
        %v1937 = vpack.c.b16 %v1917, %v1915
        %v1938 = vpack.c.b16 %v1920, %v1918
        %v1939 = vpack.c.b16 %v1921, %v1919
        %v1940 = vpack.c.b16 %v1924, %v1922
        %v1941 = vpack.c.b16 %v1925, %v1923
        %1958 = vmatpush.bf16.msra.mxu0 %v1940
        %1959 = vmatpush.bf16.msra.mxu0 %v1938
        %1960 = vmatpush.bf16.msra.mxu0 %v1936
        %1961 = vmatpush.bf16.msra.mxu0 %v1934
        %1962 = vmatpush.bf16.msra.mxu0 %v1932
        %1963 = vmatpush.bf16.msra.mxu0 %v1930
        %1964 = vmatpush.bf16.msra.mxu0 %v1928
        %1965 = vmatpush.bf16.msra.mxu0 %v1926
        %1966 = vmatmul.bf16.gmra.mxu0 %v1861
        %v1967 = vpop.f32.mrf.mxu0
        %v1968 = vadd.f32 0.0, %v1967
        %v1969 = vpop.f32.mrf.mxu0
        %1970 = vdwg.mxu0
        %1971 = vmatpush.bf16.msra.mxu0 %v1941
        %1972 = vmatpush.bf16.msra.mxu0 %v1939
        %1973 = vmatpush.bf16.msra.mxu0 %v1937
        %1974 = vmatpush.bf16.msra.mxu0 %v1935
        %1975 = vmatpush.bf16.msra.mxu0 %v1933
        %1976 = vmatpush.bf16.msra.mxu0 %v1931
        %1977 = vmatpush.bf16.msra.mxu0 %v1929
        %1978 = vmatpush.bf16.msra.mxu0 %v1927
        %1979 = vmatmul.bf16.gmra.mxu0 %v1861
        %v1980 = vpop.f32.mrf.mxu0
        %v1981 = vadd.f32 0.0, %v1980
        %v1982 = vpop.f32.mrf.mxu0
        %1983 = vdwg.mxu0
        %v1986 = vrot.slane %v1981, 4
        %v1987 = vsel %vm1424, %v1968, %v1986
        %v1989 = vadd.f32 %v1859, %v1987
        %1990 = vst.msk [vmem:[#allocation4] sm:$0xff] %vm1491, %v1989
        %v1991 = vld [vmem:[%s20] sm:$0xf]
        %v1992 = vld [vmem:[%s20 + $0x4] sm:$0xf]
        %v1993 = vld [vmem:[%s21] sm:$0x1]
        %v1994 = vld [vmem:[%s873] sm:$0x1]
        loop: start=0, step=1, limit=4
        $region128: #{forward.1} parent=119 // loop_pre_header
          _
        $region129: #{forward.1} parent=119 // loop_header
          %s1996 = sphi 0, %s2000
          %p1997 = scmp.ge.s32.totalorder %s1996, 4
          %v2001 = vphi %v1994, %v2301
        $region130: #{forward.1} parent=119 // loop_header_branch
          %1999 = sbr.rel (%p1997) target = $region134
        $region131: #{forward.1} parent=119 // loop_body
          %s2002 = sshra.s32 %s1996, 2
          %s2003 = sand.u32 %s1996, 3
          %s2004 = sshra.s32 %s1996, 2
          %s2005 = sand.u32 %s1996, 3
          %s2006 = smul.u32 %s2002, 2
          %s2007 = smul.u32 %s2006, 4
          %s2008 = sadd.s32 %s2007, %s2005
          %s2009 = scalar_lea.vmem [#allocation4], %s2008
          %v2010 = vld [vmem:[%s2009] ss:$4 sm:$0x3]
          %v2011 = vpack.c.bf16 %v2001, %v2001
          %v2014 = vunpack.c.l.b16 %v1991
          %v2015 = vunpack.c.l.b16 %v1992
          %v2016 = vpack.c.b16 %v2015, %v2014
          %v2019 = vsel %vm899, %v2011, 0
          %2021 = vmatpush.bf16.msra.mxu0 0
          %2022 = vmatpush.bf16.msra.mxu0 0
          %2023 = vmatpush.bf16.msra.mxu0 0
          %2024 = vmatpush.bf16.msra.mxu0 0
          %2025 = vmatpush.bf16.msra.mxu0 0
          %2026 = vmatpush.bf16.msra.mxu0 0
          %2027 = vmatpush.bf16.msra.mxu0 0
          %2028 = vmatpush.bf16.msra.mxu0 %v2016
          %2029 = vmatmul.bf16.gmra.mxu0 %v2019
          %v2030 = vpop.f32.mrf.mxu0
          %v2031 = vadd.f32 %v1993, %v2030
          %v2032 = vpop.f32.mrf.mxu0
          %2033 = vdwg.mxu0
          %v2034 = vadd.f32 %v2010, %v2031
          %v2035 = vxor.u32 %v2034, 2147483648
          %v2036 = vmul.f32 %v2035, 1.442695
          %v2037 = vpow.pop %v2036
          %v2038 = vadd.f32 %v2037, 1.0
          %v2039 = vrcp.pop %v2038
          %v2040 = vmul.f32 %v2038, %v2039
          %v2041 = vsub.f32 1.0, %v2040
          %v2042 = vmul.f32 %v2039, %v2041
          %v2043 = vadd.f32 %v2039, %v2042
          %vm2044 = vweird.f32 %v2038
          %vm2045 = vweird.f32 %v2039
          %vm2046 = vmor %vm2044, %vm2045
          %v2047 = vsel %vm2046, %v2039, %v2043
          %v2048 = vand.u32 2147483647, %v2038
          %vm2049 = vcmp.eq.f32.partialorder %v2048, 8.507059e+37
          %v2050 = vand.u32 %v2038, 2147483648
          %v2051 = vor.u32 1.1754944e-38, %v2050
          %v2052 = vsel %vm2049, %v2051, %v2047
          %v2053 = vmul.f32 1.0, %v2052
          %2055 = vrot.lane.b32.xlu0 %v2031, 96
          %v2056 = vpop.permute.xlu0 %2055
          %v2058 = vmul.f32 %v2053, %v2056
          %2060 = vrot.lane.b32.xlu0 %v2058, 32
          %v2061 = vpop.permute.xlu0 %2060
          %v2063 = vadd.f32 %v2010, %v2061
          %v2064 = vtanh.pop %v2063
          %v2065 = vsub.f32 1.0, %v2053
          %2067 = vrot.lane.b32.xlu0 %v2064, 112
          %v2068 = vpop.permute.xlu0 %2067
          %v2070 = vmul.f32 %v2065, %v2068
          %2072 = vrot.lane.b32.xlu0 %v2001, 16
          %v2073 = vpop.permute.xlu0 %2072
          %v2075 = vmul.f32 %v2053, %v2073
          %v2076 = vadd.f32 %v2070, %v2075
          %v2077 = vpack.c.bf16 %v2076, %v2076
          %2079 = vrot.lane.b32.xlu0 %v2077, 112
          %v2080 = vpop.permute.xlu0 %2079
          %v2082 = vsel %vm899, %v2080, 0
          %2084 = vmatpush.bf16.msra.mxu0 0
          %2085 = vmatpush.bf16.msra.mxu0 0
          %2086 = vmatpush.bf16.msra.mxu0 0
          %2087 = vmatpush.bf16.msra.mxu0 0
          %2088 = vmatpush.bf16.msra.mxu0 0
          %2089 = vmatpush.bf16.msra.mxu0 0
          %2090 = vmatpush.bf16.msra.mxu0 0
          %2091 = vmatpush.bf16.msra.mxu0 %v2016
          %2092 = vmatmul.bf16.gmra.mxu0 %v2082
          %v2093 = vpop.f32.mrf.mxu0
          %v2094 = vadd.f32 %v1993, %v2093
          %v2095 = vpop.f32.mrf.mxu0
          %2096 = vdwg.mxu0
          %2098 = vrot.lane.b32.xlu0 %v2094, 48
          %v2099 = vpop.permute.xlu0 %2098
          %v2101 = vadd.f32 %v2010, %v2099
          %v2102 = vxor.u32 %v2101, 2147483648
          %v2103 = vmul.f32 %v2102, 1.442695
          %v2104 = vpow.pop %v2103
          %v2105 = vadd.f32 %v2104, 1.0
          %v2106 = vrcp.pop %v2105
          %v2107 = vmul.f32 %v2105, %v2106
          %v2108 = vsub.f32 1.0, %v2107
          %v2109 = vmul.f32 %v2106, %v2108
          %v2110 = vadd.f32 %v2106, %v2109
          %vm2111 = vweird.f32 %v2105
          %vm2112 = vweird.f32 %v2106
          %vm2113 = vmor %vm2111, %vm2112
          %v2114 = vsel %vm2113, %v2106, %v2110
          %v2115 = vand.u32 2147483647, %v2105
          %vm2116 = vcmp.eq.f32.partialorder %v2115, 8.507059e+37
          %v2117 = vand.u32 %v2105, 2147483648
          %v2118 = vor.u32 1.1754944e-38, %v2117
          %v2119 = vsel %vm2116, %v2118, %v2114
          %v2120 = vmul.f32 1.0, %v2119
          %2121 = vrot.lane.b32.xlu0 %v2094, 16
          %v2122 = vpop.permute.xlu0 %2121
          %v2124 = vmul.f32 %v2120, %v2122
          %2126 = vrot.lane.b32.xlu0 %v2124, 32
          %v2127 = vpop.permute.xlu0 %2126
          %v2129 = vadd.f32 %v2010, %v2127
          %v2130 = vtanh.pop %v2129
          %v2131 = vsub.f32 1.0, %v2120
          %2133 = vrot.lane.b32.xlu0 %v2130, 112
          %v2134 = vpop.permute.xlu0 %2133
          %v2136 = vmul.f32 %v2131, %v2134
          %2138 = vrot.lane.b32.xlu0 %v2076, 48
          %v2139 = vpop.permute.xlu0 %2138
          %v2141 = vmul.f32 %v2120, %v2139
          %v2142 = vadd.f32 %v2136, %v2141
          %v2143 = vpack.c.bf16 %v2142, %v2142
          %2145 = vrot.lane.b32.xlu0 %v2143, 64
          %v2146 = vpop.permute.xlu0 %2145
          %v2148 = vsel %vm899, %v2146, 0
          %2150 = vmatpush.bf16.msra.mxu0 0
          %2151 = vmatpush.bf16.msra.mxu0 0
          %2152 = vmatpush.bf16.msra.mxu0 0
          %2153 = vmatpush.bf16.msra.mxu0 0
          %2154 = vmatpush.bf16.msra.mxu0 0
          %2155 = vmatpush.bf16.msra.mxu0 0
          %2156 = vmatpush.bf16.msra.mxu0 0
          %2157 = vmatpush.bf16.msra.mxu0 %v2016
          %2158 = vmatmul.bf16.gmra.mxu0 %v2148
          %v2159 = vpop.f32.mrf.mxu0
          %v2160 = vadd.f32 %v1993, %v2159
          %v2161 = vpop.f32.mrf.mxu0
          %2162 = vdwg.mxu0
          %2164 = vrot.lane.b32.xlu0 %v2160, 96
          %v2165 = vpop.permute.xlu0 %2164
          %v2167 = vadd.f32 %v2010, %v2165
          %v2168 = vxor.u32 %v2167, 2147483648
          %v2169 = vmul.f32 %v2168, 1.442695
          %v2170 = vpow.pop %v2169
          %v2171 = vadd.f32 %v2170, 1.0
          %v2172 = vrcp.pop %v2171
          %v2173 = vmul.f32 %v2171, %v2172
          %v2174 = vsub.f32 1.0, %v2173
          %v2175 = vmul.f32 %v2172, %v2174
          %v2176 = vadd.f32 %v2172, %v2175
          %vm2177 = vweird.f32 %v2171
          %vm2178 = vweird.f32 %v2172
          %vm2179 = vmor %vm2177, %vm2178
          %v2180 = vsel %vm2179, %v2172, %v2176
          %v2181 = vand.u32 2147483647, %v2171
          %vm2182 = vcmp.eq.f32.partialorder %v2181, 8.507059e+37
          %v2183 = vand.u32 %v2171, 2147483648
          %v2184 = vor.u32 1.1754944e-38, %v2183
          %v2185 = vsel %vm2182, %v2184, %v2180
          %v2186 = vmul.f32 1.0, %v2185
          %2187 = vrot.lane.b32.xlu0 %v2160, 64
          %v2188 = vpop.permute.xlu0 %2187
          %v2190 = vmul.f32 %v2186, %v2188
          %v2192 = vrot.slane %v2010, 1
          %2195 = vrot.lane.b32.xlu0 %v2190, 32
          %v2196 = vpop.permute.xlu0 %2195
          %v2198 = vadd.f32 %v2192, %v2196
          %v2199 = vtanh.pop %v2198
          %v2200 = vsub.f32 1.0, %v2186
          %2202 = vrot.lane.b32.xlu0 %v2199, 112
          %v2203 = vpop.permute.xlu0 %2202
          %v2205 = vmul.f32 %v2200, %v2203
          %2207 = vrot.lane.b32.xlu0 %v2142, 48
          %v2208 = vpop.permute.xlu0 %2207
          %v2210 = vmul.f32 %v2186, %v2208
          %v2211 = vadd.f32 %v2205, %v2210
          %v2212 = vpack.c.bf16 %v2211, %v2211
          %2214 = vrot.lane.b32.xlu0 %v2212, 16
          %v2215 = vpop.permute.xlu0 %2214
          %v2217 = vsel %vm899, %v2215, 0
          %2219 = vmatpush.bf16.msra.mxu0 0
          %2220 = vmatpush.bf16.msra.mxu0 0
          %2221 = vmatpush.bf16.msra.mxu0 0
          %2222 = vmatpush.bf16.msra.mxu0 0
          %2223 = vmatpush.bf16.msra.mxu0 0
          %2224 = vmatpush.bf16.msra.mxu0 0
          %2225 = vmatpush.bf16.msra.mxu0 0
          %2226 = vmatpush.bf16.msra.mxu0 %v2016
          %2227 = vmatmul.bf16.gmra.mxu0 %v2217
          %v2228 = vpop.f32.mrf.mxu0
          %v2229 = vadd.f32 %v1993, %v2228
          %v2230 = vpop.f32.mrf.mxu0
          %2231 = vdwg.mxu0
          %2232 = vrot.lane.b32.xlu0 %v2010, 112
          %v2233 = vpop.permute.xlu0 %2232
          %v2234 = vrot.slane %v2233, 1
          %v2236 = vadd.f32 %v2234, %v2229
          %v2237 = vxor.u32 %v2236, 2147483648
          %v2238 = vmul.f32 %v2237, 1.442695
          %v2239 = vpow.pop %v2238
          %v2240 = vadd.f32 %v2239, 1.0
          %v2241 = vrcp.pop %v2240
          %v2242 = vmul.f32 %v2240, %v2241
          %v2243 = vsub.f32 1.0, %v2242
          %v2244 = vmul.f32 %v2241, %v2243
          %v2245 = vadd.f32 %v2241, %v2244
          %vm2246 = vweird.f32 %v2240
          %vm2247 = vweird.f32 %v2241
          %vm2248 = vmor %vm2246, %vm2247
          %v2249 = vsel %vm2248, %v2241, %v2245
          %v2250 = vand.u32 2147483647, %v2240
          %vm2251 = vcmp.eq.f32.partialorder %v2250, 8.507059e+37
          %v2252 = vand.u32 %v2240, 2147483648
          %v2253 = vor.u32 1.1754944e-38, %v2252
          %v2254 = vsel %vm2251, %v2253, %v2249
          %v2255 = vmul.f32 1.0, %v2254
          %2256 = vrot.lane.b32.xlu0 %v2010, 96
          %v2257 = vpop.permute.xlu0 %2256
          %v2258 = vrot.slane %v2257, 1
          %2261 = vrot.lane.b32.xlu0 %v2229, 112
          %v2262 = vpop.permute.xlu0 %2261
          %v2264 = vadd.f32 %v2258, %v2262
          %v2265 = vxor.u32 %v2264, 2147483648
          %v2266 = vmul.f32 %v2265, 1.442695
          %v2267 = vpow.pop %v2266
          %v2268 = vadd.f32 %v2267, 1.0
          %v2269 = vrcp.pop %v2268
          %v2270 = vmul.f32 %v2268, %v2269
          %v2271 = vsub.f32 1.0, %v2270
          %v2272 = vmul.f32 %v2269, %v2271
          %v2273 = vadd.f32 %v2269, %v2272
          %vm2274 = vweird.f32 %v2268
          %vm2275 = vweird.f32 %v2269
          %vm2276 = vmor %vm2274, %vm2275
          %v2277 = vsel %vm2276, %v2269, %v2273
          %v2278 = vand.u32 2147483647, %v2268
          %vm2279 = vcmp.eq.f32.partialorder %v2278, 8.507059e+37
          %v2280 = vand.u32 %v2268, 2147483648
          %v2281 = vor.u32 1.1754944e-38, %v2280
          %v2282 = vsel %vm2279, %v2281, %v2277
          %v2283 = vmul.f32 1.0, %v2282
          %2284 = vrot.lane.b32.xlu0 %v2229, 96
          %v2285 = vpop.permute.xlu0 %2284
          %v2287 = vmul.f32 %v2255, %v2285
          %2288 = vrot.lane.b32.xlu0 %v2010, 80
          %v2289 = vpop.permute.xlu0 %2288
          %v2290 = vrot.slane %v2289, 1
          %v2292 = vadd.f32 %v2290, %v2287
          %v2293 = vtanh.pop %v2292
          %v2294 = vsub.f32 1.0, %v2283
          %v2295 = vmul.f32 %v2294, %v2293
          %2297 = vrot.lane.b32.xlu0 %v2211, 16
          %v2298 = vpop.permute.xlu0 %2297
          %v2300 = vmul.f32 %v2283, %v2298
          %v2301 = vadd.f32 %v2295, %v2300
          %v2302 = vperm.slane %v2076, 0
          %2303 = vrot.lane.b32.xlu0 %v2302, 112
          %v2304 = vpop.permute.xlu0 %2303
          %v2306 = vperm.slane %v2142, 0
          %2307 = vrot.lane.b32.xlu0 %v2306, 80
          %v2308 = vpop.permute.xlu0 %2307
          %v2310 = vperm.slane %v2211, 0
          %2311 = vrot.lane.b32.xlu0 %v2310, 48
          %v2312 = vpop.permute.xlu0 %2311
          %v2315 = vperm.slane %v2301, 0
          %2316 = vrot.lane.b32.xlu0 %v2315, 48
          %v2317 = vpop.permute.xlu0 %2316
          %v2319 = vsel %vm899, %v2304, %v2308
          %v2320 = vsel %vm1000, %v2319, %v2312
          %vm2321 = vcmask 392192
          %v2322 = vsel %vm2321, %v2320, %v2317
          %s2323 = scalar_lea.vmem [#allocation5], %s1996
          %vm2324 = vcmask 516096
          %2325 = vst.msk [vmem:[%s2323] sm:$0x1] %vm2324, %v2322
        $region132: #{forward.1} parent=119 // loop_footer
          %s2000 = sadd.s32 1, %s1996
        $region133: #{forward.1} parent=119 // loop_footer_branch
          %1995 = sbr.rel target = $region129
        $region134: #{forward.1} parent=119 // loop_exit
          _
        %v2326 = vld [vmem:[#allocation5] sm:$0xf]
        %v2327 = vpack.c.bf16 %v2326, %v2326
        %v2328 = vld [vmem:[%s22] sm:$0xff]
        %v2329 = vld [vmem:[%s22 + $0x8] sm:$0xff]
        %v2330 = vld [vmem:[%s22 + $0x10] sm:$0xff]
        %v2331 = vld [vmem:[%s22 + $0x18] sm:$0xff]
        %v2332 = vld [vmem:[%s22 + $0x20] sm:$0xff]
        %v2333 = vld [vmem:[%s22 + $0x28] sm:$0xff]
        %v2334 = vld [vmem:[%s22 + $0x30] sm:$0xff]
        %v2335 = vld [vmem:[%s22 + $0x38] sm:$0xff]
        %v2336 = vld [vmem:[%s23] sm:$0x3]
        %v2338 = vperm.slane %v2336, 0
        %v2339 = vperm.slane %v2336, 1
        %v2350 = vunpack.c.l.b16 %v2328
        %v2351 = vunpack.c.h.b16 %v2328
        %v2352 = vunpack.c.l.b16 %v2329
        %v2353 = vunpack.c.h.b16 %v2329
        %v2354 = vunpack.c.l.b16 %v2330
        %v2355 = vunpack.c.h.b16 %v2330
        %v2356 = vunpack.c.l.b16 %v2331
        %v2357 = vunpack.c.h.b16 %v2331
        %v2358 = vunpack.c.l.b16 %v2332
        %v2359 = vunpack.c.h.b16 %v2332
        %v2360 = vunpack.c.l.b16 %v2333
        %v2361 = vunpack.c.h.b16 %v2333
        %v2362 = vunpack.c.l.b16 %v2334
        %v2363 = vunpack.c.h.b16 %v2334
        %v2364 = vunpack.c.l.b16 %v2335
        %v2365 = vunpack.c.h.b16 %v2335
        %v2366 = vpack.c.b16 %v2352, %v2350
        %v2367 = vpack.c.b16 %v2353, %v2351
        %v2368 = vpack.c.b16 %v2356, %v2354
        %v2369 = vpack.c.b16 %v2357, %v2355
        %v2370 = vpack.c.b16 %v2360, %v2358
        %v2371 = vpack.c.b16 %v2361, %v2359
        %v2372 = vpack.c.b16 %v2364, %v2362
        %v2373 = vpack.c.b16 %v2365, %v2363
        %vm2382 = vcmask 523264
        %v2384 = vsel %vm2382, %v2327, 0
        %2386 = vmatpush.bf16.msra.mxu0 0
        %2387 = vmatpush.bf16.msra.mxu0 0
        %2388 = vmatpush.bf16.msra.mxu0 0
        %2389 = vmatpush.bf16.msra.mxu0 0
        %2390 = vmatpush.bf16.msra.mxu0 %v2372
        %2391 = vmatpush.bf16.msra.mxu0 %v2370
        %2392 = vmatpush.bf16.msra.mxu0 %v2368
        %2393 = vmatpush.bf16.msra.mxu0 %v2366
        %2394 = vmatmul.bf16.gmra.mxu0 %v2384
        %v2395 = vpop.f32.mrf.mxu0
        %v2396 = vadd.f32 %v2338, %v2395
        %v2397 = vpop.f32.mrf.mxu0
        %2398 = vdwg.mxu0
        %2399 = vmatpush.bf16.msra.mxu0 0
        %2400 = vmatpush.bf16.msra.mxu0 0
        %2401 = vmatpush.bf16.msra.mxu0 0
        %2402 = vmatpush.bf16.msra.mxu0 0
        %2403 = vmatpush.bf16.msra.mxu0 %v2373
        %2404 = vmatpush.bf16.msra.mxu0 %v2371
        %2405 = vmatpush.bf16.msra.mxu0 %v2369
        %2406 = vmatpush.bf16.msra.mxu0 %v2367
        %2407 = vmatmul.bf16.gmra.mxu0 %v2384
        %v2408 = vpop.f32.mrf.mxu0
        %v2409 = vadd.f32 %v2339, %v2408
        %v2410 = vpop.f32.mrf.mxu0
        %2411 = vdwg.mxu0
        %v2412 = vld [vmem:[%s24] sm:$0x3]
        %v2413 = vtanh.pop %v2396
        %v2414 = vtanh.pop %v2409
        %v2416 = vperm.slane %v2412, 0
        %v2417 = vperm.slane %v2412, 1
        %v2420 = vmul.f32 %v2416, %v2413
        %v2421 = vmul.f32 %v2417, %v2414
        %2423 = vrot.lane.b32.xlu0 %v2420, 96
        %v2424 = vpop.permute.xlu0 %2423
        %v2426 = vadd.f32 %v2420, %v2424
        %vm2427 = vcmask 257024
        %v2428 = vsel %vm2427, %v2426, -inf
        %2429 = vmax.xlane.f32.xlu0 %v2428
        %v2430 = vpop.xlane.xlu0 %2429
        %v2431 = vsub.f32 %v2426, %v2430
        %v2432 = vmul.f32 %v2431, 1.442695
        %v2433 = vpow.pop %v2432
        %v2434 = vsel %vm2427, %v2433, 0.0
        %2435 = vadd.xlane.f32.xlu0 %v2434
        %v2436 = vpop.xlane.xlu0 %2435
        %v2437 = vlog2.pop %v2436
        %v2438 = vmul.f32 %v2437, 0.6931472
        %v2439 = vsub.f32 %v2431, %v2438
        %vm2440 = vcmask 781824
        %v2441 = vsel %vm2440, %v2426, -inf
        %2442 = vmax.xlane.f32.xlu0 %v2441
        %v2443 = vpop.xlane.xlu0 %2442
        %v2444 = vsub.f32 %v2426, %v2443
        %v2445 = vmul.f32 %v2444, 1.442695
        %v2446 = vpow.pop %v2445
        %2448 = vrot.lane.b32.xlu0 %v2446, 64
        %v2449 = vpop.permute.xlu0 %2448
        %v2451 = vsel %vm2427, %v2449, 0.0
        %2452 = vadd.xlane.f32.xlu0 %v2451
        %v2453 = vpop.xlane.xlu0 %2452
        %v2454 = vlog2.pop %v2453
        %v2455 = vmul.f32 %v2454, 0.6931472
        %v2456 = vsub.f32 %v2444, %v2455
        %2458 = vrot.lane.b32.xlu0 %v2421, 96
        %v2459 = vpop.permute.xlu0 %2458
        %v2461 = vadd.f32 %v2421, %v2459
        %v2462 = vsel %vm2427, %v2461, -inf
        %2463 = vmax.xlane.f32.xlu0 %v2462
        %v2464 = vpop.xlane.xlu0 %2463
        %v2465 = vsub.f32 %v2461, %v2464
        %v2466 = vmul.f32 %v2465, 1.442695
        %v2467 = vpow.pop %v2466
        %v2468 = vsel %vm2427, %v2467, 0.0
        %2469 = vadd.xlane.f32.xlu0 %v2468
        %v2470 = vpop.xlane.xlu0 %2469
        %v2471 = vlog2.pop %v2470
        %v2472 = vmul.f32 %v2471, 0.6931472
        %v2473 = vsub.f32 %v2465, %v2472
        %v2474 = vsel %vm2440, %v2461, -inf
        %2475 = vmax.xlane.f32.xlu0 %v2474
        %v2476 = vpop.xlane.xlu0 %2475
        %v2477 = vsub.f32 %v2461, %v2476
        %v2478 = vmul.f32 %v2477, 1.442695
        %v2479 = vpow.pop %v2478
        %2481 = vrot.lane.b32.xlu0 %v2479, 64
        %v2482 = vpop.permute.xlu0 %2481
        %v2484 = vsel %vm2427, %v2482, 0.0
        %2485 = vadd.xlane.f32.xlu0 %v2484
        %v2486 = vpop.xlane.xlu0 %2485
        %v2487 = vlog2.pop %v2486
        %v2488 = vmul.f32 %v2487, 0.6931472
        %v2489 = vsub.f32 %v2477, %v2488
        %2491 = vrot.lane.b32.xlu0 %v2456, 96
        %v2492 = vpop.permute.xlu0 %2491
        %2495 = vrot.lane.b32.xlu0 %v2473, 64
        %v2496 = vpop.permute.xlu0 %2495
        %2499 = vrot.lane.b32.xlu0 %v2489, 32
        %v2500 = vpop.permute.xlu0 %2499
        %v2502 = vsel %vm1000, %v2439, %v2492
        %v2503 = vsel %vm2382, %v2502, %v2496
        %v2504 = vsel %vm1367, %v2503, %v2500
        %2505 = vst [vmem:[%s877] sm:$0xf] %v2504
        %vm2506 = vcmask 253952
        %2507 = vst.msk [vmem:[%s853] sm:$0x1] %vm2506, %v1505
        %vm2508 = vcmask 122880
        %2509 = vst.msk [vmem:[%s859] sm:$0x1] %vm2508, %v2001
        %p2510 = scmp.lt.s32.totalorder %s45, 1
        %s2511 = scalar_select %p2510, %s45, 1
        %s2512 = smul.addr %s2511, 4
        %s2513 = scalar_lea.vmem %s25, %s2512
        %s2514 = sand.u32 %s624, 1
        %s2515 = scalar_lea.sflag [#allocation7], %s2514
        %s2516 = sand.u32 %s624, 1
        %s2517 = scalar_lea.vmem [#allocation6], %s2516
        %s2518 = sand.u32 %s650, 1
        %s2519 = scalar_lea.sflag [#allocation9], %s2518
        %s2520 = sand.u32 %s650, 1
        %s2521 = scalar_lea.vmem [#allocation8], %s2520
        // Predicated region
        $region135: #{forward.1} parent=119 // pred_check
          %p2522 = pneg %p608
        $region136: #{forward.1} parent=119 // pred_check_branch
          %2524 = sbr.rel (%p2522) target = $region138
        $region137: #{forward.1} parent=119 // pred_region
          _
        $region138: #{forward.1} parent=119 // pred_fallthru
          _
        // Predicated region
        $region139: #{forward.1} parent=119 // pred_check
          %p2525 = pneg %p634
        $region140: #{forward.1} parent=119 // pred_check_branch
          %2527 = sbr.rel (%p2525) target = $region142
        $region141: #{forward.1} parent=119 // pred_region
          %2529 = vsyncadd %s2515, 0
          %s2530 = scalar_lea.hbm %s26, %s45
          %s2532 = sshll.u32 %s2517, 4
          %s2533 = int_to_ptr.vmem [resolvable:$true] %s2532
          %s2534 = sshll.u32 %s2530, 4
          %s2535 = int_to_ptr.hbm [resolvable:$true] %s2534
          %2537 = dma.vmem_to_hbm [thread:$0]  %s2533, 16, %s2535, %s2515
        $region142: #{forward.1} parent=119 // pred_fallthru
          _
        // Predicated region
        $region143: #{forward.1} parent=119 // pred_check
          %p2538 = pneg %p660
        $region144: #{forward.1} parent=119 // pred_check_branch
          %2540 = sbr.rel (%p2538) target = $region146
        $region145: #{forward.1} parent=119 // pred_region
          %2542 = vsyncadd %s2519, 0
          %s2543 = scalar_lea.hbm %s27, %s45
          %s2545 = sshll.u32 %s2521, 4
          %s2546 = int_to_ptr.vmem [resolvable:$true] %s2545
          %s2547 = sshll.u32 %s2543, 4
          %s2548 = int_to_ptr.hbm [resolvable:$true] %s2547
          %2550 = dma.vmem_to_hbm [thread:$0]  %s2546, 16, %s2548, %s2519
        $region146: #{forward.1} parent=119 // pred_fallthru
          _
      $region120: #{forward.1} parent=5 // pred_fallthru
        _
      %p2551 = scmp.le.s32.totalorder 2, %s40
      // Predicated region
      $region147: #{forward.1} parent=5 // pred_check
        %p2552 = pneg %p2551
      $region148: #{forward.1} parent=5 // pred_check_branch
        %2554 = sbr.rel (%p2552) target = $region150
      $region149: #{forward.1} parent=5 // pred_region
        %s2555 = ssub.s32 %s40, 2
        // Predicated region
        $region151: #{forward.1} parent=149 // pred_check
          %p2556 = pneg %p614
        $region152: #{forward.1} parent=149 // pred_check_branch
          %2558 = sbr.rel (%p2556) target = $region154
        $region153: #{forward.1} parent=149 // pred_region
          %p2559 = scmp.lt.s32.totalorder %s46, 1
          %s2560 = scalar_select %p2559, %s46, 1
          %s2561 = smul.addr %s2560, 4
          %s2562 = scalar_lea.vmem %s25, %s2561
        $region154: #{forward.1} parent=149 // pred_fallthru
          _
        // Predicated region
        $region155: #{forward.1} parent=149 // pred_check
          %p2563 = pneg %p640
        $region156: #{forward.1} parent=149 // pred_check_branch
          %2565 = sbr.rel (%p2563) target = $region158
        $region157: #{forward.1} parent=149 // pred_region
          %s2566 = sand.u32 %s625, 1
          %s2567 = scalar_lea.sflag [#allocation7], %s2566
          %s2568 = sand.u32 %s625, 1
          %s2569 = scalar_lea.vmem [#allocation6], %s2568
          %2571 = dma.done %s2567, 16
        $region158: #{forward.1} parent=149 // pred_fallthru
          _
        // Predicated region
        $region159: #{forward.1} parent=149 // pred_check
          %p2572 = pneg %p666
        $region160: #{forward.1} parent=149 // pred_check_branch
          %2574 = sbr.rel (%p2572) target = $region162
        $region161: #{forward.1} parent=149 // pred_region
          %s2575 = sand.u32 %s651, 1
          %s2576 = scalar_lea.sflag [#allocation9], %s2575
          %s2577 = sand.u32 %s651, 1
          %s2578 = scalar_lea.vmem [#allocation8], %s2577
          %2580 = dma.done %s2576, 16
        $region162: #{forward.1} parent=149 // pred_fallthru
          _
      $region150: #{forward.1} parent=5 // pred_fallthru
        _
    $region6: #{forward.1} parent=1 // loop_footer
      %s44 = sadd.s32 1, %s40
    $region7: #{forward.1} parent=1 // loop_footer_branch
      %39 = sbr.rel target = $region3
    $region8: #{forward.1} parent=1 // loop_exit
      _
    %2581 = vsyncpa [#allocation7], 1
    %s2582 = scalar_lea.sflag [#allocation7], 1
    %2583 = vsyncpa %s2582, 1
    %2584 = vsyncpa [#allocation9], 1
    %s2585 = scalar_lea.sflag [#allocation9], 1
    %2586 = vsyncpa %s2585, 1

</llo_original>
